<compile_context>
chip_gen: v7x
topology: tpu7x:2x2x1
jax: 0.10.0
libtpu: 0.0.40
codegen_flags: <defaults>
</compile_context>

<pallas_src>
import jax
import jax.numpy as jnp
from jax.experimental import pallas as pl
from jax.experimental.pallas import tpu as pltpu


# ------------------------------ fused kernel --------------------------------

def _lenet_fused_kernel(patches_ref, w1_ref, b1_ref, w2_ref, b2_ref,
                        wf1_ref, bf1_ref, wf2_ref, bf2_ref, wf3_ref, bf3_ref,
                        out_ref,
                        p1_ref, x2_ref, p2_ref):
    """Whole LeNet forward for one batch tile; activations stay in VMEM."""
    f32 = jnp.float32
    bt = out_ref.shape[1]          # batch tile
    C1 = w1_ref.shape[1]           # conv1 out channels
    C2 = b2_ref.shape[1]           # conv2 out channels

    # ---- conv1: ONE matmul over the whole tile -------------------------------
    # patch rows are ordered (b, q=2*ph+pw, i, jp) with conv1-output pixel
    # (h, w) = (2*i+ph, 2*jp+pw); jp is padded 12 -> 16 so every reshape below
    # is an (8, lane)-tile-aligned reinterpretation.
    c1 = jnp.dot(patches_ref[...], w1_ref[...], preferred_element_type=f32)
    c1 = c1.reshape(bt, 4, 12, 16, C1)

    # ---- max_pool2d(2) #1 + bias + ReLU (3 whole-plane maxima, 1 store) ------
    p1 = jnp.maximum(jnp.maximum(c1[:, 0], c1[:, 1]),
                     jnp.maximum(c1[:, 2], c1[:, 3]))
    p1_ref[...] = jnp.maximum(p1 + b1_ref[...], 0.0)          # (bt, 12, 16, C1)

    # ---- conv2: in-VMEM im2col (25 window stores) + ONE matmul ---------------
    for ki in range(5):
        for kj in range(5):
            win = p1_ref[:, ki:ki + 8, kj:kj + 8, :]          # (bt, 8, 8, C1)
            col = (ki * 5 + kj) * C1
            x2_ref[:, col:col + C1] = win.reshape(bt * 64, C1)
    c2 = jnp.dot(x2_ref[...], w2_ref[...], preferred_element_type=f32)

    # ---- max_pool2d(2) #2 + bias: vectorized h-pool, lane-dense staging ------
    c2 = c2.reshape(bt, 4, 2, 8, C2)                           # (b, i2, ph, ow, c)
    hmax = jnp.maximum(c2[:, :, 0], c2[:, :, 1]) + b2_ref[...]  # (bt, 4, 8, C2)
    for i2 in range(4):
        for j2 in range(4):
            p = i2 * 4 + j2
            p2_ref[:, p * C2:(p + 1) * C2] = jnp.maximum(
                hmax[:, i2, 2 * j2, :], hmax[:, i2, 2 * j2 + 1, :])

    # ---- fc1 + ReLU (single K=16*C2=128 matmul on the lane-dense staging) ----
    h = jnp.maximum(p2_ref[...], 0.0)                          # ReLU(pool2)
    h = jnp.maximum(jnp.dot(h, wf1_ref[...], preferred_element_type=f32)
                    + bf1_ref[...], 0.0)
    # TODO(synk): training-mode dropout (p=0.5 / p=0.2) not implemented; eval() identity.

    # ---- fc2 + ReLU, fc3 ------------------------------------------------------
    h = jnp.maximum(jnp.dot(h, wf2_ref[...], preferred_element_type=f32)
                    + bf2_ref[...], 0.0)
    out = jnp.dot(h, wf3_ref[...], preferred_element_type=f32) + bf3_ref[...]
    out_ref[0] = out.astype(out_ref.dtype)


# ------------------------------- glue (JAX) ---------------------------------

def _conv1_patches(x):
    """x:(B,1,28,28) -> (B*768, 25) im2col, rows ordered (b, q, i, jp).

    q = 2*ph + pw is the 2x2 pool parity, (i, jp) the pooled coordinate with
    jp zero-padded 12 -> 16; columns ordered (kh, kw).  Pure layout plumbing.
    """
    B = x.shape[0]
    cols = []
    for kh in range(5):
        for kw in range(5):
            cols.append(x[:, 0, kh:kh + 24, kw:kw + 24])        # (B, 24, 24)
    p = jnp.stack(cols, axis=-1)                                # (b, h, w, k)
    p = p.reshape(B, 12, 2, 12, 2, 25)                          # (b, i, ph, j, pw, k)
    p = p.transpose(0, 2, 4, 1, 3, 5)                           # (b, ph, pw, i, j, k)
    p = jnp.pad(p, ((0, 0),) * 4 + ((0, 4), (0, 0)))            # j: 12 -> 16
    return p.reshape(B * 4 * 12 * 16, 25)


def prepare_lenet_params(params):
    """One-time re-layout of PyTorch-convention weights into kernel layouts."""
    c1_w = params["conv1_w"]                  # (C1, 1, 5, 5)
    c2_w = params["conv2_w"]                  # (C2, C1, 5, 5)
    C1, C2 = c1_w.shape[0], c2_w.shape[0]
    OD = params["fc3_w"].shape[0]
    return {
        "w1": c1_w.reshape(C1, 25).T,                                   # (25, C1), K=(kh,kw)
        "b1": params["conv1_b"].reshape(1, C1),
        "w2": c2_w.transpose(2, 3, 1, 0).reshape(25 * C1, C2),          # K=(kh,kw,cin)
        "b2": params["conv2_b"].reshape(1, C2),
        # fc1 columns (c, h, w) regrouped to K=(h, w, c) to match pool2 staging:
        "wf1": params["fc1_w"].reshape(120, C2, 4, 4)
                              .transpose(2, 3, 1, 0).reshape(16 * C2, 120),
        "bf1": params["fc1_b"].reshape(1, 120),
        "wf2": params["fc2_w"].T,                                        # (120, 84)
        "bf2": params["fc2_b"].reshape(1, 84),
        "wf3": params["fc3_w"].T,                                        # (84, OD)
        "bf3": params["fc3_b"].reshape(1, OD),
    }


def _pick_batch_tile(B):
    """>=2 parallel grid steps whenever B>=2 (v7x megacore), modest VMEM/step."""
    if B <= 1:
        return 1
    cap = min(B // 2, 8)
    for t in range(cap, 0, -1):
        if B % t == 0:
            return t
    return 1


def lenet_forward(kparams, x):
    """x: (B, 1, 28, 28) NCHW -> (B, output_dim). Single fused Pallas kernel."""
    B = x.shape[0]
    assert x.shape[1:] == (1, 28, 28), "LeNet fc_1 geometry fixes the input to 1x28x28"
    C1 = kparams["w1"].shape[1]
    C2 = kparams["b2"].shape[1]
    OD = kparams["bf3"].shape[1]

    patches = _conv1_patches(x)                  # (B*768, 25) layout plumbing
    bt = _pick_batch_tile(B)
    nb = B // bt
    rows = bt * 4 * 12 * 16                      # conv1 matmul M per grid step

    rep2 = lambda ib: (0, 0)

    out = pl.pallas_call(
        _lenet_fused_kernel,
        out_shape=jax.ShapeDtypeStruct((nb, bt, OD), jnp.float32),
        grid=(nb,),
        in_specs=[
            pl.BlockSpec((rows, 25), lambda ib: (ib, 0)),
            pl.BlockSpec(kparams["w1"].shape, rep2),
            pl.BlockSpec(kparams["b1"].shape, rep2),
            pl.BlockSpec(kparams["w2"].shape, rep2),
            pl.BlockSpec(kparams["b2"].shape, rep2),
            pl.BlockSpec(kparams["wf1"].shape, rep2),
            pl.BlockSpec(kparams["bf1"].shape, rep2),
            pl.BlockSpec(kparams["wf2"].shape, rep2),
            pl.BlockSpec(kparams["bf2"].shape, rep2),
            pl.BlockSpec(kparams["wf3"].shape, rep2),
            pl.BlockSpec(kparams["bf3"].shape, rep2),
        ],
        out_specs=pl.BlockSpec((1, bt, OD), lambda ib: (ib, 0, 0)),
        scratch_shapes=[
            pltpu.VMEM((bt, 12, 16, C1), jnp.float32),    # pool1+relu (w padded to 16)
            pltpu.VMEM((bt * 64, 25 * C1), jnp.float32),  # conv2 im2col (lane-dense K=100)
            pltpu.VMEM((bt, 16 * C2), jnp.float32),       # pool2 staging (lane-dense K=128)
        ],
        compiler_params=pltpu.CompilerParams(
            dimension_semantics=("parallel",)),
    )(patches, kparams["w1"], kparams["b1"], kparams["w2"], kparams["b2"],
      kparams["wf1"], kparams["bf1"], kparams["wf2"], kparams["bf2"],
      kparams["wf3"], kparams["bf3"])
    return out.reshape(B, OD)


# ------------------------------- parameters ---------------------------------

def init_lenet_params(key, kernels, output_dim):
    k = jax.random.split(key, 10)
    k1, k2 = kernels
    s = 0.1
    return {
        "conv1_w": s * jax.random.normal(k[0], (k1, 1, 5, 5), jnp.float32),
        "conv1_b": s * jax.random.normal(k[1], (k1,), jnp.float32),
        "conv2_w": s * jax.random.normal(k[2], (k2, k1, 5, 5), jnp.float32),
        "conv2_b": s * jax.random.normal(k[3], (k2,), jnp.float32),
        "fc1_w": s * jax.random.normal(k[4], (120, k2 * 4 * 4), jnp.float32),
        "fc1_b": s * jax.random.normal(k[5], (120,), jnp.float32),
        "fc2_w": s * jax.random.normal(k[6], (84, 120), jnp.float32),
        "fc2_b": s * jax.random.normal(k[7], (84,), jnp.float32),
        "fc3_w": s * jax.random.normal(k[8], (output_dim, 84), jnp.float32),
        "fc3_b": s * jax.random.normal(k[9], (output_dim,), jnp.float32),
    }


# --------------------------- pure-JAX reference -----------------------------

def _im2col_ref(x, kh, kw):
    """x:(B,C,H,W) -> (B*OH*OW, C*kh*kw), K-axis ordered (c, kh, kw)."""
    B, C, H, W = x.shape
    OH, OW = H - kh + 1, W - kw + 1
    cols = []
    for i in range(kh):
        for j in range(kw):
            cols.append(x[:, :, i:i + OH, j:j + OW])
    p = jnp.stack(cols, axis=-1)          # (B, C, OH, OW, kh*kw)
    p = p.transpose(0, 2, 3, 1, 4)        # (B, OH, OW, C, kh*kw)
    return p.reshape(B * OH * OW, C * kh * kw)


def lenet_reference(params, x):
    def conv_ref(x, w, b):
        B, C, H, W = x.shape
        OC, _, KH, KW = w.shape
        OH, OW = H - KH + 1, W - KW + 1
        p = _im2col_ref(x, KH, KW)
        o = p @ w.reshape(OC, C * KH * KW).T + b
        return o.reshape(B, OH, OW, OC).transpose(0, 3, 1, 2)

    def pool_relu_ref(x):
        B, C, H, W = x.shape
        xr = x.reshape(B, C, H // 2, 2, W // 2, 2)
        return jnp.maximum(xr.max(axis=(3, 5)), 0.0)

    x = pool_relu_ref(conv_ref(x, params["conv1_w"], params["conv1_b"]))
    x = pool_relu_ref(conv_ref(x, params["conv2_w"], params["conv2_b"]))
    x = x.reshape(x.shape[0], -1)
    x = jnp.maximum(x @ params["fc1_w"].T + params["fc1_b"], 0.0)
    x = jnp.maximum(x @ params["fc2_w"].T + params["fc2_b"], 0.0)
    return x @ params["fc3_w"].T + params["fc3_b"]


# ----------------------------------- main -----------------------------------

if __name__ == "__main__":
    key = jax.random.PRNGKey(0)
    pkey, xkey = jax.random.split(key)

    kernels = (4, 8)     # small channel counts
    output_dim = 10
    batch = 2

    params = init_lenet_params(pkey, kernels, output_dim)
    kparams = prepare_lenet_params(params)           # one-time weight re-layout
    # MNIST-style input: the fc_1 layer (kernels[1]*4*4) fixes spatial to 28x28.
    x = jax.random.normal(xkey, (batch, 1, 28, 28), jnp.float32)

    fwd = jax.jit(lenet_forward)
    out = jax.block_until_ready(fwd(kparams, x))

    ref = lenet_reference(params, x)
    assert out.shape == (batch, output_dim)
    assert jnp.allclose(out, ref, atol=1e-4, rtol=1e-4), "mismatch vs reference"

    print("KERNEL_OK")
</pallas_src>

<mosaic_0001>
module attributes {stable_mosaic.version = 11 : i64} {
  func.func @_lenet_fused_kernel(%arg0: i32, %arg1: memref<768x25xf32, #tpu.memory_space<vmem>>, %arg2: memref<25x4xf32, #tpu.memory_space<vmem>>, %arg3: memref<1x4xf32, #tpu.memory_space<vmem>>, %arg4: memref<100x8xf32, #tpu.memory_space<vmem>>, %arg5: memref<1x8xf32, #tpu.memory_space<vmem>>, %arg6: memref<128x120xf32, #tpu.memory_space<vmem>>, %arg7: memref<1x120xf32, #tpu.memory_space<vmem>>, %arg8: memref<120x84xf32, #tpu.memory_space<vmem>>, %arg9: memref<1x84xf32, #tpu.memory_space<vmem>>, %arg10: memref<84x10xf32, #tpu.memory_space<vmem>>, %arg11: memref<1x10xf32, #tpu.memory_space<vmem>>, %arg12: memref<1x1x10xf32, #tpu.memory_space<vmem>>, %arg13: memref<1x12x16x4xf32, #tpu.memory_space<vmem>>, %arg14: memref<64x100xf32, #tpu.memory_space<vmem>>, %arg15: memref<1x128xf32, #tpu.memory_space<vmem>>) attributes {dimension_semantics = [#tpu.dimension_semantics<parallel>], iteration_bounds = array<i64: 2>, scalar_prefetch = 0 : i64, scratch_operands = 3 : i64, tpu.core_type = #tpu.core_type<tc>, window_params = [{transform_indices = @transform_0, window_bounds = array<i64: 768, 25>}, {pipeline_mode = #tpu.pipeline_mode<synchronous>, transform_indices = @transform_1, window_bounds = array<i64: 25, 4>}, {pipeline_mode = #tpu.pipeline_mode<synchronous>, transform_indices = @transform_2, window_bounds = array<i64: 1, 4>}, {pipeline_mode = #tpu.pipeline_mode<synchronous>, transform_indices = @transform_3, window_bounds = array<i64: 100, 8>}, {pipeline_mode = #tpu.pipeline_mode<synchronous>, transform_indices = @transform_4, window_bounds = array<i64: 1, 8>}, {pipeline_mode = #tpu.pipeline_mode<synchronous>, transform_indices = @transform_5, window_bounds = array<i64: 128, 120>}, {pipeline_mode = #tpu.pipeline_mode<synchronous>, transform_indices = @transform_6, window_bounds = array<i64: 1, 120>}, {pipeline_mode = #tpu.pipeline_mode<synchronous>, transform_indices = @transform_7, window_bounds = array<i64: 120, 84>}, {pipeline_mode = #tpu.pipeline_mode<synchronous>, transform_indices = @transform_8, window_bounds = array<i64: 1, 84>}, {pipeline_mode = #tpu.pipeline_mode<synchronous>, transform_indices = @transform_9, window_bounds = array<i64: 84, 10>}, {pipeline_mode = #tpu.pipeline_mode<synchronous>, transform_indices = @transform_10, window_bounds = array<i64: 1, 10>}, {transform_indices = @transform_11, window_bounds = array<i64: 1, 1, 10>}]} {
    %c0 = arith.constant 0 : index
    %c0_0 = arith.constant 0 : index
    %0 = vector.load %arg1[%c0, %c0_0] : memref<768x25xf32, #tpu.memory_space<vmem>>, vector<768x25xf32>
    %c0_1 = arith.constant 0 : index
    %c0_2 = arith.constant 0 : index
    %1 = vector.load %arg2[%c0_1, %c0_2] : memref<25x4xf32, #tpu.memory_space<vmem>>, vector<25x4xf32>
    %cst = arith.constant dense<0.000000e+00> : vector<768x4xf32>
    %2 = tpu.matmul %0, %1, %cst {dimension_numbers = #tpu.dot_dimension_numbers<[1], [0], [0], [1], [0, 0, 1, 1], [], []>} : vector<768x25xf32>, vector<25x4xf32>, vector<768x4xf32> -> vector<768x4xf32>
    %3 = vector.shape_cast %2 : vector<768x4xf32> to vector<1x4x12x16x4xf32>
    %4 = vector.extract_strided_slice %3 {offsets = [0, 0, 0, 0, 0], sizes = [1, 1, 12, 16, 4], strides = [1, 1, 1, 1, 1]} : vector<1x4x12x16x4xf32> to vector<1x1x12x16x4xf32>
    %5 = vector.shape_cast %4 : vector<1x1x12x16x4xf32> to vector<1x12x16x4xf32>
    %6 = vector.extract_strided_slice %3 {offsets = [0, 1, 0, 0, 0], sizes = [1, 1, 12, 16, 4], strides = [1, 1, 1, 1, 1]} : vector<1x4x12x16x4xf32> to vector<1x1x12x16x4xf32>
    %7 = vector.shape_cast %6 : vector<1x1x12x16x4xf32> to vector<1x12x16x4xf32>
    %8 = arith.maximumf %5, %7 : vector<1x12x16x4xf32>
    %9 = vector.extract_strided_slice %3 {offsets = [0, 2, 0, 0, 0], sizes = [1, 1, 12, 16, 4], strides = [1, 1, 1, 1, 1]} : vector<1x4x12x16x4xf32> to vector<1x1x12x16x4xf32>
    %10 = vector.shape_cast %9 : vector<1x1x12x16x4xf32> to vector<1x12x16x4xf32>
    %11 = vector.extract_strided_slice %3 {offsets = [0, 3, 0, 0, 0], sizes = [1, 1, 12, 16, 4], strides = [1, 1, 1, 1, 1]} : vector<1x4x12x16x4xf32> to vector<1x1x12x16x4xf32>
    %12 = vector.shape_cast %11 : vector<1x1x12x16x4xf32> to vector<1x12x16x4xf32>
    %13 = arith.maximumf %10, %12 : vector<1x12x16x4xf32>
    %14 = arith.maximumf %8, %13 : vector<1x12x16x4xf32>
    %c0_3 = arith.constant 0 : index
    %c0_4 = arith.constant 0 : index
    %15 = vector.load %arg3[%c0_3, %c0_4] : memref<1x4xf32, #tpu.memory_space<vmem>>, vector<1x4xf32>
    %16 = vector.shape_cast %15 : vector<1x4xf32> to vector<1x1x1x4xf32>
    %17 = vector.broadcast %16 : vector<1x1x1x4xf32> to vector<1x12x16x4xf32>
    %18 = arith.addf %14, %17 : vector<1x12x16x4xf32>
    %cst_5 = arith.constant 0.000000e+00 : f32
    %19 = vector.broadcast %cst_5 : f32 to vector<1x12x16x4xf32>
    %20 = arith.maximumf %18, %19 : vector<1x12x16x4xf32>
    %c0_6 = arith.constant 0 : index
    %c0_7 = arith.constant 0 : index
    %c0_8 = arith.constant 0 : index
    %c0_9 = arith.constant 0 : index
    %21 = vector.load %arg13[%c0_6, %c0_7, %c0_8, %c0_9] : memref<1x12x16x4xf32, #tpu.memory_space<vmem>>, vector<1x12x16x4xf32>
    tpu.vector_store %arg13[%c0_6, %c0_7, %c0_8, %c0_9], %20 {strides = array<i32>} : memref<1x12x16x4xf32, #tpu.memory_space<vmem>>, vector<1x12x16x4xf32>,
    %c0_10 = arith.constant 0 : index
    %c0_11 = arith.constant 0 : index
    %c0_12 = arith.constant 0 : index
    %c0_13 = arith.constant 0 : index
    %22 = vector.load %arg13[%c0_10, %c0_11, %c0_12, %c0_13] : memref<1x12x16x4xf32, #tpu.memory_space<vmem>>, vector<1x8x8x4xf32>
    %23 = vector.shape_cast %22 : vector<1x8x8x4xf32> to vector<64x4xf32>
    %c0_14 = arith.constant 0 : index
    %c0_15 = arith.constant 0 : index
    %24 = vector.load %arg14[%c0_14, %c0_15] : memref<64x100xf32, #tpu.memory_space<vmem>>, vector<64x4xf32>
    tpu.vector_store %arg14[%c0_14, %c0_15], %23 {strides = array<i32>} : memref<64x100xf32, #tpu.memory_space<vmem>>, vector<64x4xf32>,
    %c0_16 = arith.constant 0 : index
    %c0_17 = arith.constant 0 : index
    %c1 = arith.constant 1 : index
    %c0_18 = arith.constant 0 : index
    %25 = vector.load %arg13[%c0_16, %c0_17, %c1, %c0_18] : memref<1x12x16x4xf32, #tpu.memory_space<vmem>>, vector<1x8x8x4xf32>
    %26 = vector.shape_cast %25 : vector<1x8x8x4xf32> to vector<64x4xf32>
    %c0_19 = arith.constant 0 : index
    %c4 = arith.constant 4 : index
    %27 = vector.load %arg14[%c0_19, %c4] : memref<64x100xf32, #tpu.memory_space<vmem>>, vector<64x4xf32>
    tpu.vector_store %arg14[%c0_19, %c4], %26 {strides = array<i32>} : memref<64x100xf32, #tpu.memory_space<vmem>>, vector<64x4xf32>,
    %c0_20 = arith.constant 0 : index
    %c0_21 = arith.constant 0 : index
    %c2 = arith.constant 2 : index
    %c0_22 = arith.constant 0 : index
    %28 = vector.load %arg13[%c0_20, %c0_21, %c2, %c0_22] : memref<1x12x16x4xf32, #tpu.memory_space<vmem>>, vector<1x8x8x4xf32>
    %29 = vector.shape_cast %28 : vector<1x8x8x4xf32> to vector<64x4xf32>
    %c0_23 = arith.constant 0 : index
    %c8 = arith.constant 8 : index
    %30 = vector.load %arg14[%c0_23, %c8] : memref<64x100xf32, #tpu.memory_space<vmem>>, vector<64x4xf32>
    tpu.vector_store %arg14[%c0_23, %c8], %29 {strides = array<i32>} : memref<64x100xf32, #tpu.memory_space<vmem>>, vector<64x4xf32>,
    %c0_24 = arith.constant 0 : index
    %c0_25 = arith.constant 0 : index
    %c3 = arith.constant 3 : index
    %c0_26 = arith.constant 0 : index
    %31 = vector.load %arg13[%c0_24, %c0_25, %c3, %c0_26] : memref<1x12x16x4xf32, #tpu.memory_space<vmem>>, vector<1x8x8x4xf32>
    %32 = vector.shape_cast %31 : vector<1x8x8x4xf32> to vector<64x4xf32>
    %c0_27 = arith.constant 0 : index
    %c12 = arith.constant 12 : index
    %33 = vector.load %arg14[%c0_27, %c12] : memref<64x100xf32, #tpu.memory_space<vmem>>, vector<64x4xf32>
    tpu.vector_store %arg14[%c0_27, %c12], %32 {strides = array<i32>} : memref<64x100xf32, #tpu.memory_space<vmem>>, vector<64x4xf32>,
    %c0_28 = arith.constant 0 : index
    %c0_29 = arith.constant 0 : index
    %c4_30 = arith.constant 4 : index
    %c0_31 = arith.constant 0 : index
    %34 = vector.load %arg13[%c0_28, %c0_29, %c4_30, %c0_31] : memref<1x12x16x4xf32, #tpu.memory_space<vmem>>, vector<1x8x8x4xf32>
    %35 = vector.shape_cast %34 : vector<1x8x8x4xf32> to vector<64x4xf32>
    %c0_32 = arith.constant 0 : index
    %c16 = arith.constant 16 : index
    %36 = vector.load %arg14[%c0_32, %c16] : memref<64x100xf32, #tpu.memory_space<vmem>>, vector<64x4xf32>
    tpu.vector_store %arg14[%c0_32, %c16], %35 {strides = array<i32>} : memref<64x100xf32, #tpu.memory_space<vmem>>, vector<64x4xf32>,
    %c0_33 = arith.constant 0 : index
    %c1_34 = arith.constant 1 : index
    %c0_35 = arith.constant 0 : index
    %c0_36 = arith.constant 0 : index
    %37 = vector.load %arg13[%c0_33, %c1_34, %c0_35, %c0_36] : memref<1x12x16x4xf32, #tpu.memory_space<vmem>>, vector<1x8x8x4xf32>
    %38 = vector.shape_cast %37 : vector<1x8x8x4xf32> to vector<64x4xf32>
    %c0_37 = arith.constant 0 : index
    %c20 = arith.constant 20 : index
    %39 = vector.load %arg14[%c0_37, %c20] : memref<64x100xf32, #tpu.memory_space<vmem>>, vector<64x4xf32>
    tpu.vector_store %arg14[%c0_37, %c20], %38 {strides = array<i32>} : memref<64x100xf32, #tpu.memory_space<vmem>>, vector<64x4xf32>,
    %c0_38 = arith.constant 0 : index
    %c1_39 = arith.constant 1 : index
    %c1_40 = arith.constant 1 : index
    %c0_41 = arith.constant 0 : index
    %40 = vector.load %arg13[%c0_38, %c1_39, %c1_40, %c0_41] : memref<1x12x16x4xf32, #tpu.memory_space<vmem>>, vector<1x8x8x4xf32>
    %41 = vector.shape_cast %40 : vector<1x8x8x4xf32> to vector<64x4xf32>
    %c0_42 = arith.constant 0 : index
    %c24 = arith.constant 24 : index
    %42 = vector.load %arg14[%c0_42, %c24] : memref<64x100xf32, #tpu.memory_space<vmem>>, vector<64x4xf32>
    tpu.vector_store %arg14[%c0_42, %c24], %41 {strides = array<i32>} : memref<64x100xf32, #tpu.memory_space<vmem>>, vector<64x4xf32>,
    %c0_43 = arith.constant 0 : index
    %c1_44 = arith.constant 1 : index
    %c2_45 = arith.constant 2 : index
    %c0_46 = arith.constant 0 : index
    %43 = vector.load %arg13[%c0_43, %c1_44, %c2_45, %c0_46] : memref<1x12x16x4xf32, #tpu.memory_space<vmem>>, vector<1x8x8x4xf32>
    %44 = vector.shape_cast %43 : vector<1x8x8x4xf32> to vector<64x4xf32>
    %c0_47 = arith.constant 0 : index
    %c28 = arith.constant 28 : index
    %45 = vector.load %arg14[%c0_47, %c28] : memref<64x100xf32, #tpu.memory_space<vmem>>, vector<64x4xf32>
    tpu.vector_store %arg14[%c0_47, %c28], %44 {strides = array<i32>} : memref<64x100xf32, #tpu.memory_space<vmem>>, vector<64x4xf32>,
    %c0_48 = arith.constant 0 : index
    %c1_49 = arith.constant 1 : index
    %c3_50 = arith.constant 3 : index
    %c0_51 = arith.constant 0 : index
    %46 = vector.load %arg13[%c0_48, %c1_49, %c3_50, %c0_51] : memref<1x12x16x4xf32, #tpu.memory_space<vmem>>, vector<1x8x8x4xf32>
    %47 = vector.shape_cast %46 : vector<1x8x8x4xf32> to vector<64x4xf32>
    %c0_52 = arith.constant 0 : index
    %c32 = arith.constant 32 : index
    %48 = vector.load %arg14[%c0_52, %c32] : memref<64x100xf32, #tpu.memory_space<vmem>>, vector<64x4xf32>
    tpu.vector_store %arg14[%c0_52, %c32], %47 {strides = array<i32>} : memref<64x100xf32, #tpu.memory_space<vmem>>, vector<64x4xf32>,
    %c0_53 = arith.constant 0 : index
    %c1_54 = arith.constant 1 : index
    %c4_55 = arith.constant 4 : index
    %c0_56 = arith.constant 0 : index
    %49 = vector.load %arg13[%c0_53, %c1_54, %c4_55, %c0_56] : memref<1x12x16x4xf32, #tpu.memory_space<vmem>>, vector<1x8x8x4xf32>
    %50 = vector.shape_cast %49 : vector<1x8x8x4xf32> to vector<64x4xf32>
    %c0_57 = arith.constant 0 : index
    %c36 = arith.constant 36 : index
    %51 = vector.load %arg14[%c0_57, %c36] : memref<64x100xf32, #tpu.memory_space<vmem>>, vector<64x4xf32>
    tpu.vector_store %arg14[%c0_57, %c36], %50 {strides = array<i32>} : memref<64x100xf32, #tpu.memory_space<vmem>>, vector<64x4xf32>,
    %c0_58 = arith.constant 0 : index
    %c2_59 = arith.constant 2 : index
    %c0_60 = arith.constant 0 : index
    %c0_61 = arith.constant 0 : index
    %52 = vector.load %arg13[%c0_58, %c2_59, %c0_60, %c0_61] : memref<1x12x16x4xf32, #tpu.memory_space<vmem>>, vector<1x8x8x4xf32>
    %53 = vector.shape_cast %52 : vector<1x8x8x4xf32> to vector<64x4xf32>
    %c0_62 = arith.constant 0 : index
    %c40 = arith.constant 40 : index
    %54 = vector.load %arg14[%c0_62, %c40] : memref<64x100xf32, #tpu.memory_space<vmem>>, vector<64x4xf32>
    tpu.vector_store %arg14[%c0_62, %c40], %53 {strides = array<i32>} : memref<64x100xf32, #tpu.memory_space<vmem>>, vector<64x4xf32>,
    %c0_63 = arith.constant 0 : index
    %c2_64 = arith.constant 2 : index
    %c1_65 = arith.constant 1 : index
    %c0_66 = arith.constant 0 : index
    %55 = vector.load %arg13[%c0_63, %c2_64, %c1_65, %c0_66] : memref<1x12x16x4xf32, #tpu.memory_space<vmem>>, vector<1x8x8x4xf32>
    %56 = vector.shape_cast %55 : vector<1x8x8x4xf32> to vector<64x4xf32>
    %c0_67 = arith.constant 0 : index
    %c44 = arith.constant 44 : index
    %57 = vector.load %arg14[%c0_67, %c44] : memref<64x100xf32, #tpu.memory_space<vmem>>, vector<64x4xf32>
    tpu.vector_store %arg14[%c0_67, %c44], %56 {strides = array<i32>} : memref<64x100xf32, #tpu.memory_space<vmem>>, vector<64x4xf32>,
    %c0_68 = arith.constant 0 : index
    %c2_69 = arith.constant 2 : index
    %c2_70 = arith.constant 2 : index
    %c0_71 = arith.constant 0 : index
    %58 = vector.load %arg13[%c0_68, %c2_69, %c2_70, %c0_71] : memref<1x12x16x4xf32, #tpu.memory_space<vmem>>, vector<1x8x8x4xf32>
    %59 = vector.shape_cast %58 : vector<1x8x8x4xf32> to vector<64x4xf32>
    %c0_72 = arith.constant 0 : index
    %c48 = arith.constant 48 : index
    %60 = vector.load %arg14[%c0_72, %c48] : memref<64x100xf32, #tpu.memory_space<vmem>>, vector<64x4xf32>
    tpu.vector_store %arg14[%c0_72, %c48], %59 {strides = array<i32>} : memref<64x100xf32, #tpu.memory_space<vmem>>, vector<64x4xf32>,
    %c0_73 = arith.constant 0 : index
    %c2_74 = arith.constant 2 : index
    %c3_75 = arith.constant 3 : index
    %c0_76 = arith.constant 0 : index
    %61 = vector.load %arg13[%c0_73, %c2_74, %c3_75, %c0_76] : memref<1x12x16x4xf32, #tpu.memory_space<vmem>>, vector<1x8x8x4xf32>
    %62 = vector.shape_cast %61 : vector<1x8x8x4xf32> to vector<64x4xf32>
    %c0_77 = arith.constant 0 : index
    %c52 = arith.constant 52 : index
    %63 = vector.load %arg14[%c0_77, %c52] : memref<64x100xf32, #tpu.memory_space<vmem>>, vector<64x4xf32>
    tpu.vector_store %arg14[%c0_77, %c52], %62 {strides = array<i32>} : memref<64x100xf32, #tpu.memory_space<vmem>>, vector<64x4xf32>,
    %c0_78 = arith.constant 0 : index
    %c2_79 = arith.constant 2 : index
    %c4_80 = arith.constant 4 : index
    %c0_81 = arith.constant 0 : index
    %64 = vector.load %arg13[%c0_78, %c2_79, %c4_80, %c0_81] : memref<1x12x16x4xf32, #tpu.memory_space<vmem>>, vector<1x8x8x4xf32>
    %65 = vector.shape_cast %64 : vector<1x8x8x4xf32> to vector<64x4xf32>
    %c0_82 = arith.constant 0 : index
    %c56 = arith.constant 56 : index
    %66 = vector.load %arg14[%c0_82, %c56] : memref<64x100xf32, #tpu.memory_space<vmem>>, vector<64x4xf32>
    tpu.vector_store %arg14[%c0_82, %c56], %65 {strides = array<i32>} : memref<64x100xf32, #tpu.memory_space<vmem>>, vector<64x4xf32>,
    %c0_83 = arith.constant 0 : index
    %c3_84 = arith.constant 3 : index
    %c0_85 = arith.constant 0 : index
    %c0_86 = arith.constant 0 : index
    %67 = vector.load %arg13[%c0_83, %c3_84, %c0_85, %c0_86] : memref<1x12x16x4xf32, #tpu.memory_space<vmem>>, vector<1x8x8x4xf32>
    %68 = vector.shape_cast %67 : vector<1x8x8x4xf32> to vector<64x4xf32>
    %c0_87 = arith.constant 0 : index
    %c60 = arith.constant 60 : index
    %69 = vector.load %arg14[%c0_87, %c60] : memref<64x100xf32, #tpu.memory_space<vmem>>, vector<64x4xf32>
    tpu.vector_store %arg14[%c0_87, %c60], %68 {strides = array<i32>} : memref<64x100xf32, #tpu.memory_space<vmem>>, vector<64x4xf32>,
    %c0_88 = arith.constant 0 : index
    %c3_89 = arith.constant 3 : index
    %c1_90 = arith.constant 1 : index
    %c0_91 = arith.constant 0 : index
    %70 = vector.load %arg13[%c0_88, %c3_89, %c1_90, %c0_91] : memref<1x12x16x4xf32, #tpu.memory_space<vmem>>, vector<1x8x8x4xf32>
    %71 = vector.shape_cast %70 : vector<1x8x8x4xf32> to vector<64x4xf32>
    %c0_92 = arith.constant 0 : index
    %c64 = arith.constant 64 : index
    %72 = vector.load %arg14[%c0_92, %c64] : memref<64x100xf32, #tpu.memory_space<vmem>>, vector<64x4xf32>
    tpu.vector_store %arg14[%c0_92, %c64], %71 {strides = array<i32>} : memref<64x100xf32, #tpu.memory_space<vmem>>, vector<64x4xf32>,
    %c0_93 = arith.constant 0 : index
    %c3_94 = arith.constant 3 : index
    %c2_95 = arith.constant 2 : index
    %c0_96 = arith.constant 0 : index
    %73 = vector.load %arg13[%c0_93, %c3_94, %c2_95, %c0_96] : memref<1x12x16x4xf32, #tpu.memory_space<vmem>>, vector<1x8x8x4xf32>
    %74 = vector.shape_cast %73 : vector<1x8x8x4xf32> to vector<64x4xf32>
    %c0_97 = arith.constant 0 : index
    %c68 = arith.constant 68 : index
    %75 = vector.load %arg14[%c0_97, %c68] : memref<64x100xf32, #tpu.memory_space<vmem>>, vector<64x4xf32>
    tpu.vector_store %arg14[%c0_97, %c68], %74 {strides = array<i32>} : memref<64x100xf32, #tpu.memory_space<vmem>>, vector<64x4xf32>,
    %c0_98 = arith.constant 0 : index
    %c3_99 = arith.constant 3 : index
    %c3_100 = arith.constant 3 : index
    %c0_101 = arith.constant 0 : index
    %76 = vector.load %arg13[%c0_98, %c3_99, %c3_100, %c0_101] : memref<1x12x16x4xf32, #tpu.memory_space<vmem>>, vector<1x8x8x4xf32>
    %77 = vector.shape_cast %76 : vector<1x8x8x4xf32> to vector<64x4xf32>
    %c0_102 = arith.constant 0 : index
    %c72 = arith.constant 72 : index
    %78 = vector.load %arg14[%c0_102, %c72] : memref<64x100xf32, #tpu.memory_space<vmem>>, vector<64x4xf32>
    tpu.vector_store %arg14[%c0_102, %c72], %77 {strides = array<i32>} : memref<64x100xf32, #tpu.memory_space<vmem>>, vector<64x4xf32>,
    %c0_103 = arith.constant 0 : index
    %c3_104 = arith.constant 3 : index
    %c4_105 = arith.constant 4 : index
    %c0_106 = arith.constant 0 : index
    %79 = vector.load %arg13[%c0_103, %c3_104, %c4_105, %c0_106] : memref<1x12x16x4xf32, #tpu.memory_space<vmem>>, vector<1x8x8x4xf32>
    %80 = vector.shape_cast %79 : vector<1x8x8x4xf32> to vector<64x4xf32>
    %c0_107 = arith.constant 0 : index
    %c76 = arith.constant 76 : index
    %81 = vector.load %arg14[%c0_107, %c76] : memref<64x100xf32, #tpu.memory_space<vmem>>, vector<64x4xf32>
    tpu.vector_store %arg14[%c0_107, %c76], %80 {strides = array<i32>} : memref<64x100xf32, #tpu.memory_space<vmem>>, vector<64x4xf32>,
    %c0_108 = arith.constant 0 : index
    %c4_109 = arith.constant 4 : index
    %c0_110 = arith.constant 0 : index
    %c0_111 = arith.constant 0 : index
    %82 = vector.load %arg13[%c0_108, %c4_109, %c0_110, %c0_111] : memref<1x12x16x4xf32, #tpu.memory_space<vmem>>, vector<1x8x8x4xf32>
    %83 = vector.shape_cast %82 : vector<1x8x8x4xf32> to vector<64x4xf32>
    %c0_112 = arith.constant 0 : index
    %c80 = arith.constant 80 : index
    %84 = vector.load %arg14[%c0_112, %c80] : memref<64x100xf32, #tpu.memory_space<vmem>>, vector<64x4xf32>
    tpu.vector_store %arg14[%c0_112, %c80], %83 {strides = array<i32>} : memref<64x100xf32, #tpu.memory_space<vmem>>, vector<64x4xf32>,
    %c0_113 = arith.constant 0 : index
    %c4_114 = arith.constant 4 : index
    %c1_115 = arith.constant 1 : index
    %c0_116 = arith.constant 0 : index
    %85 = vector.load %arg13[%c0_113, %c4_114, %c1_115, %c0_116] : memref<1x12x16x4xf32, #tpu.memory_space<vmem>>, vector<1x8x8x4xf32>
    %86 = vector.shape_cast %85 : vector<1x8x8x4xf32> to vector<64x4xf32>
    %c0_117 = arith.constant 0 : index
    %c84 = arith.constant 84 : index
    %87 = vector.load %arg14[%c0_117, %c84] : memref<64x100xf32, #tpu.memory_space<vmem>>, vector<64x4xf32>
    tpu.vector_store %arg14[%c0_117, %c84], %86 {strides = array<i32>} : memref<64x100xf32, #tpu.memory_space<vmem>>, vector<64x4xf32>,
    %c0_118 = arith.constant 0 : index
    %c4_119 = arith.constant 4 : index
    %c2_120 = arith.constant 2 : index
    %c0_121 = arith.constant 0 : index
    %88 = vector.load %arg13[%c0_118, %c4_119, %c2_120, %c0_121] : memref<1x12x16x4xf32, #tpu.memory_space<vmem>>, vector<1x8x8x4xf32>
    %89 = vector.shape_cast %88 : vector<1x8x8x4xf32> to vector<64x4xf32>
    %c0_122 = arith.constant 0 : index
    %c88 = arith.constant 88 : index
    %90 = vector.load %arg14[%c0_122, %c88] : memref<64x100xf32, #tpu.memory_space<vmem>>, vector<64x4xf32>
    tpu.vector_store %arg14[%c0_122, %c88], %89 {strides = array<i32>} : memref<64x100xf32, #tpu.memory_space<vmem>>, vector<64x4xf32>,
    %c0_123 = arith.constant 0 : index
    %c4_124 = arith.constant 4 : index
    %c3_125 = arith.constant 3 : index
    %c0_126 = arith.constant 0 : index
    %91 = vector.load %arg13[%c0_123, %c4_124, %c3_125, %c0_126] : memref<1x12x16x4xf32, #tpu.memory_space<vmem>>, vector<1x8x8x4xf32>
    %92 = vector.shape_cast %91 : vector<1x8x8x4xf32> to vector<64x4xf32>
    %c0_127 = arith.constant 0 : index
    %c92 = arith.constant 92 : index
    %93 = vector.load %arg14[%c0_127, %c92] : memref<64x100xf32, #tpu.memory_space<vmem>>, vector<64x4xf32>
    tpu.vector_store %arg14[%c0_127, %c92], %92 {strides = array<i32>} : memref<64x100xf32, #tpu.memory_space<vmem>>, vector<64x4xf32>,
    %c0_128 = arith.constant 0 : index
    %c4_129 = arith.constant 4 : index
    %c4_130 = arith.constant 4 : index
    %c0_131 = arith.constant 0 : index
    %94 = vector.load %arg13[%c0_128, %c4_129, %c4_130, %c0_131] : memref<1x12x16x4xf32, #tpu.memory_space<vmem>>, vector<1x8x8x4xf32>
    %95 = vector.shape_cast %94 : vector<1x8x8x4xf32> to vector<64x4xf32>
    %c0_132 = arith.constant 0 : index
    %c96 = arith.constant 96 : index
    %96 = vector.load %arg14[%c0_132, %c96] : memref<64x100xf32, #tpu.memory_space<vmem>>, vector<64x4xf32>
    tpu.vector_store %arg14[%c0_132, %c96], %95 {strides = array<i32>} : memref<64x100xf32, #tpu.memory_space<vmem>>, vector<64x4xf32>,
    %c0_133 = arith.constant 0 : index
    %c0_134 = arith.constant 0 : index
    %97 = vector.load %arg14[%c0_133, %c0_134] : memref<64x100xf32, #tpu.memory_space<vmem>>, vector<64x100xf32>
    %c0_135 = arith.constant 0 : index
    %c0_136 = arith.constant 0 : index
    %98 = vector.load %arg4[%c0_135, %c0_136] : memref<100x8xf32, #tpu.memory_space<vmem>>, vector<100x8xf32>
    %cst_137 = arith.constant dense<0.000000e+00> : vector<64x8xf32>
    %99 = tpu.matmul %97, %98, %cst_137 {dimension_numbers = #tpu.dot_dimension_numbers<[1], [0], [0], [1], [0, 0, 1, 1], [], []>} : vector<64x100xf32>, vector<100x8xf32>, vector<64x8xf32> -> vector<64x8xf32>
    %100 = vector.shape_cast %99 : vector<64x8xf32> to vector<1x4x2x8x8xf32>
    %101 = vector.extract_strided_slice %100 {offsets = [0, 0, 0, 0, 0], sizes = [1, 4, 1, 8, 8], strides = [1, 1, 1, 1, 1]} : vector<1x4x2x8x8xf32> to vector<1x4x1x8x8xf32>
    %102 = vector.shape_cast %101 : vector<1x4x1x8x8xf32> to vector<1x4x8x8xf32>
    %103 = vector.extract_strided_slice %100 {offsets = [0, 0, 1, 0, 0], sizes = [1, 4, 1, 8, 8], strides = [1, 1, 1, 1, 1]} : vector<1x4x2x8x8xf32> to vector<1x4x1x8x8xf32>
    %104 = vector.shape_cast %103 : vector<1x4x1x8x8xf32> to vector<1x4x8x8xf32>
    %105 = arith.maximumf %102, %104 : vector<1x4x8x8xf32>
    %c0_138 = arith.constant 0 : index
    %c0_139 = arith.constant 0 : index
    %106 = vector.load %arg5[%c0_138, %c0_139] : memref<1x8xf32, #tpu.memory_space<vmem>>, vector<1x8xf32>
    %107 = vector.shape_cast %106 : vector<1x8xf32> to vector<1x1x1x8xf32>
    %108 = vector.broadcast %107 : vector<1x1x1x8xf32> to vector<1x4x8x8xf32>
    %109 = arith.addf %105, %108 : vector<1x4x8x8xf32>
    %110 = vector.extract_strided_slice %109 {offsets = [0, 0, 0, 0], sizes = [1, 1, 1, 8], strides = [1, 1, 1, 1]} : vector<1x4x8x8xf32> to vector<1x1x1x8xf32>
    %111 = vector.shape_cast %110 : vector<1x1x1x8xf32> to vector<1x8xf32>
    %112 = vector.extract_strided_slice %109 {offsets = [0, 0, 1, 0], sizes = [1, 1, 1, 8], strides = [1, 1, 1, 1]} : vector<1x4x8x8xf32> to vector<1x1x1x8xf32>
    %113 = vector.shape_cast %112 : vector<1x1x1x8xf32> to vector<1x8xf32>
    %114 = arith.maximumf %111, %113 : vector<1x8xf32>
    %c0_140 = arith.constant 0 : index
    %c0_141 = arith.constant 0 : index
    %115 = vector.load %arg15[%c0_140, %c0_141] : memref<1x128xf32, #tpu.memory_space<vmem>>, vector<1x8xf32>
    tpu.vector_store %arg15[%c0_140, %c0_141], %114 {strides = array<i32>} : memref<1x128xf32, #tpu.memory_space<vmem>>, vector<1x8xf32>,
    %116 = vector.extract_strided_slice %109 {offsets = [0, 0, 2, 0], sizes = [1, 1, 1, 8], strides = [1, 1, 1, 1]} : vector<1x4x8x8xf32> to vector<1x1x1x8xf32>
    %117 = vector.shape_cast %116 : vector<1x1x1x8xf32> to vector<1x8xf32>
    %118 = vector.extract_strided_slice %109 {offsets = [0, 0, 3, 0], sizes = [1, 1, 1, 8], strides = [1, 1, 1, 1]} : vector<1x4x8x8xf32> to vector<1x1x1x8xf32>
    %119 = vector.shape_cast %118 : vector<1x1x1x8xf32> to vector<1x8xf32>
    %120 = arith.maximumf %117, %119 : vector<1x8xf32>
    %c0_142 = arith.constant 0 : index
    %c8_143 = arith.constant 8 : index
    %121 = vector.load %arg15[%c0_142, %c8_143] : memref<1x128xf32, #tpu.memory_space<vmem>>, vector<1x8xf32>
    tpu.vector_store %arg15[%c0_142, %c8_143], %120 {strides = array<i32>} : memref<1x128xf32, #tpu.memory_space<vmem>>, vector<1x8xf32>,
    %122 = vector.extract_strided_slice %109 {offsets = [0, 0, 4, 0], sizes = [1, 1, 1, 8], strides = [1, 1, 1, 1]} : vector<1x4x8x8xf32> to vector<1x1x1x8xf32>
    %123 = vector.shape_cast %122 : vector<1x1x1x8xf32> to vector<1x8xf32>
    %124 = vector.extract_strided_slice %109 {offsets = [0, 0, 5, 0], sizes = [1, 1, 1, 8], strides = [1, 1, 1, 1]} : vector<1x4x8x8xf32> to vector<1x1x1x8xf32>
    %125 = vector.shape_cast %124 : vector<1x1x1x8xf32> to vector<1x8xf32>
    %126 = arith.maximumf %123, %125 : vector<1x8xf32>
    %c0_144 = arith.constant 0 : index
    %c16_145 = arith.constant 16 : index
    %127 = vector.load %arg15[%c0_144, %c16_145] : memref<1x128xf32, #tpu.memory_space<vmem>>, vector<1x8xf32>
    tpu.vector_store %arg15[%c0_144, %c16_145], %126 {strides = array<i32>} : memref<1x128xf32, #tpu.memory_space<vmem>>, vector<1x8xf32>,
    %128 = vector.extract_strided_slice %109 {offsets = [0, 0, 6, 0], sizes = [1, 1, 1, 8], strides = [1, 1, 1, 1]} : vector<1x4x8x8xf32> to vector<1x1x1x8xf32>
    %129 = vector.shape_cast %128 : vector<1x1x1x8xf32> to vector<1x8xf32>
    %130 = vector.extract_strided_slice %109 {offsets = [0, 0, 7, 0], sizes = [1, 1, 1, 8], strides = [1, 1, 1, 1]} : vector<1x4x8x8xf32> to vector<1x1x1x8xf32>
    %131 = vector.shape_cast %130 : vector<1x1x1x8xf32> to vector<1x8xf32>
    %132 = arith.maximumf %129, %131 : vector<1x8xf32>
    %c0_146 = arith.constant 0 : index
    %c24_147 = arith.constant 24 : index
    %133 = vector.load %arg15[%c0_146, %c24_147] : memref<1x128xf32, #tpu.memory_space<vmem>>, vector<1x8xf32>
    tpu.vector_store %arg15[%c0_146, %c24_147], %132 {strides = array<i32>} : memref<1x128xf32, #tpu.memory_space<vmem>>, vector<1x8xf32>,
    %134 = vector.extract_strided_slice %109 {offsets = [0, 1, 0, 0], sizes = [1, 1, 1, 8], strides = [1, 1, 1, 1]} : vector<1x4x8x8xf32> to vector<1x1x1x8xf32>
    %135 = vector.shape_cast %134 : vector<1x1x1x8xf32> to vector<1x8xf32>
    %136 = vector.extract_strided_slice %109 {offsets = [0, 1, 1, 0], sizes = [1, 1, 1, 8], strides = [1, 1, 1, 1]} : vector<1x4x8x8xf32> to vector<1x1x1x8xf32>
    %137 = vector.shape_cast %136 : vector<1x1x1x8xf32> to vector<1x8xf32>
    %138 = arith.maximumf %135, %137 : vector<1x8xf32>
    %c0_148 = arith.constant 0 : index
    %c32_149 = arith.constant 32 : index
    %139 = vector.load %arg15[%c0_148, %c32_149] : memref<1x128xf32, #tpu.memory_space<vmem>>, vector<1x8xf32>
    tpu.vector_store %arg15[%c0_148, %c32_149], %138 {strides = array<i32>} : memref<1x128xf32, #tpu.memory_space<vmem>>, vector<1x8xf32>,
    %140 = vector.extract_strided_slice %109 {offsets = [0, 1, 2, 0], sizes = [1, 1, 1, 8], strides = [1, 1, 1, 1]} : vector<1x4x8x8xf32> to vector<1x1x1x8xf32>
    %141 = vector.shape_cast %140 : vector<1x1x1x8xf32> to vector<1x8xf32>
    %142 = vector.extract_strided_slice %109 {offsets = [0, 1, 3, 0], sizes = [1, 1, 1, 8], strides = [1, 1, 1, 1]} : vector<1x4x8x8xf32> to vector<1x1x1x8xf32>
    %143 = vector.shape_cast %142 : vector<1x1x1x8xf32> to vector<1x8xf32>
    %144 = arith.maximumf %141, %143 : vector<1x8xf32>
    %c0_150 = arith.constant 0 : index
    %c40_151 = arith.constant 40 : index
    %145 = vector.load %arg15[%c0_150, %c40_151] : memref<1x128xf32, #tpu.memory_space<vmem>>, vector<1x8xf32>
    tpu.vector_store %arg15[%c0_150, %c40_151], %144 {strides = array<i32>} : memref<1x128xf32, #tpu.memory_space<vmem>>, vector<1x8xf32>,
    %146 = vector.extract_strided_slice %109 {offsets = [0, 1, 4, 0], sizes = [1, 1, 1, 8], strides = [1, 1, 1, 1]} : vector<1x4x8x8xf32> to vector<1x1x1x8xf32>
    %147 = vector.shape_cast %146 : vector<1x1x1x8xf32> to vector<1x8xf32>
    %148 = vector.extract_strided_slice %109 {offsets = [0, 1, 5, 0], sizes = [1, 1, 1, 8], strides = [1, 1, 1, 1]} : vector<1x4x8x8xf32> to vector<1x1x1x8xf32>
    %149 = vector.shape_cast %148 : vector<1x1x1x8xf32> to vector<1x8xf32>
    %150 = arith.maximumf %147, %149 : vector<1x8xf32>
    %c0_152 = arith.constant 0 : index
    %c48_153 = arith.constant 48 : index
    %151 = vector.load %arg15[%c0_152, %c48_153] : memref<1x128xf32, #tpu.memory_space<vmem>>, vector<1x8xf32>
    tpu.vector_store %arg15[%c0_152, %c48_153], %150 {strides = array<i32>} : memref<1x128xf32, #tpu.memory_space<vmem>>, vector<1x8xf32>,
    %152 = vector.extract_strided_slice %109 {offsets = [0, 1, 6, 0], sizes = [1, 1, 1, 8], strides = [1, 1, 1, 1]} : vector<1x4x8x8xf32> to vector<1x1x1x8xf32>
    %153 = vector.shape_cast %152 : vector<1x1x1x8xf32> to vector<1x8xf32>
    %154 = vector.extract_strided_slice %109 {offsets = [0, 1, 7, 0], sizes = [1, 1, 1, 8], strides = [1, 1, 1, 1]} : vector<1x4x8x8xf32> to vector<1x1x1x8xf32>
    %155 = vector.shape_cast %154 : vector<1x1x1x8xf32> to vector<1x8xf32>
    %156 = arith.maximumf %153, %155 : vector<1x8xf32>
    %c0_154 = arith.constant 0 : index
    %c56_155 = arith.constant 56 : index
    %157 = vector.load %arg15[%c0_154, %c56_155] : memref<1x128xf32, #tpu.memory_space<vmem>>, vector<1x8xf32>
    tpu.vector_store %arg15[%c0_154, %c56_155], %156 {strides = array<i32>} : memref<1x128xf32, #tpu.memory_space<vmem>>, vector<1x8xf32>,
    %158 = vector.extract_strided_slice %109 {offsets = [0, 2, 0, 0], sizes = [1, 1, 1, 8], strides = [1, 1, 1, 1]} : vector<1x4x8x8xf32> to vector<1x1x1x8xf32>
    %159 = vector.shape_cast %158 : vector<1x1x1x8xf32> to vector<1x8xf32>
    %160 = vector.extract_strided_slice %109 {offsets = [0, 2, 1, 0], sizes = [1, 1, 1, 8], strides = [1, 1, 1, 1]} : vector<1x4x8x8xf32> to vector<1x1x1x8xf32>
    %161 = vector.shape_cast %160 : vector<1x1x1x8xf32> to vector<1x8xf32>
    %162 = arith.maximumf %159, %161 : vector<1x8xf32>
    %c0_156 = arith.constant 0 : index
    %c64_157 = arith.constant 64 : index
    %163 = vector.load %arg15[%c0_156, %c64_157] : memref<1x128xf32, #tpu.memory_space<vmem>>, vector<1x8xf32>
    tpu.vector_store %arg15[%c0_156, %c64_157], %162 {strides = array<i32>} : memref<1x128xf32, #tpu.memory_space<vmem>>, vector<1x8xf32>,
    %164 = vector.extract_strided_slice %109 {offsets = [0, 2, 2, 0], sizes = [1, 1, 1, 8], strides = [1, 1, 1, 1]} : vector<1x4x8x8xf32> to vector<1x1x1x8xf32>
    %165 = vector.shape_cast %164 : vector<1x1x1x8xf32> to vector<1x8xf32>
    %166 = vector.extract_strided_slice %109 {offsets = [0, 2, 3, 0], sizes = [1, 1, 1, 8], strides = [1, 1, 1, 1]} : vector<1x4x8x8xf32> to vector<1x1x1x8xf32>
    %167 = vector.shape_cast %166 : vector<1x1x1x8xf32> to vector<1x8xf32>
    %168 = arith.maximumf %165, %167 : vector<1x8xf32>
    %c0_158 = arith.constant 0 : index
    %c72_159 = arith.constant 72 : index
    %169 = vector.load %arg15[%c0_158, %c72_159] : memref<1x128xf32, #tpu.memory_space<vmem>>, vector<1x8xf32>
    tpu.vector_store %arg15[%c0_158, %c72_159], %168 {strides = array<i32>} : memref<1x128xf32, #tpu.memory_space<vmem>>, vector<1x8xf32>,
    %170 = vector.extract_strided_slice %109 {offsets = [0, 2, 4, 0], sizes = [1, 1, 1, 8], strides = [1, 1, 1, 1]} : vector<1x4x8x8xf32> to vector<1x1x1x8xf32>
    %171 = vector.shape_cast %170 : vector<1x1x1x8xf32> to vector<1x8xf32>
    %172 = vector.extract_strided_slice %109 {offsets = [0, 2, 5, 0], sizes = [1, 1, 1, 8], strides = [1, 1, 1, 1]} : vector<1x4x8x8xf32> to vector<1x1x1x8xf32>
    %173 = vector.shape_cast %172 : vector<1x1x1x8xf32> to vector<1x8xf32>
    %174 = arith.maximumf %171, %173 : vector<1x8xf32>
    %c0_160 = arith.constant 0 : index
    %c80_161 = arith.constant 80 : index
    %175 = vector.load %arg15[%c0_160, %c80_161] : memref<1x128xf32, #tpu.memory_space<vmem>>, vector<1x8xf32>
    tpu.vector_store %arg15[%c0_160, %c80_161], %174 {strides = array<i32>} : memref<1x128xf32, #tpu.memory_space<vmem>>, vector<1x8xf32>,
    %176 = vector.extract_strided_slice %109 {offsets = [0, 2, 6, 0], sizes = [1, 1, 1, 8], strides = [1, 1, 1, 1]} : vector<1x4x8x8xf32> to vector<1x1x1x8xf32>
    %177 = vector.shape_cast %176 : vector<1x1x1x8xf32> to vector<1x8xf32>
    %178 = vector.extract_strided_slice %109 {offsets = [0, 2, 7, 0], sizes = [1, 1, 1, 8], strides = [1, 1, 1, 1]} : vector<1x4x8x8xf32> to vector<1x1x1x8xf32>
    %179 = vector.shape_cast %178 : vector<1x1x1x8xf32> to vector<1x8xf32>
    %180 = arith.maximumf %177, %179 : vector<1x8xf32>
    %c0_162 = arith.constant 0 : index
    %c88_163 = arith.constant 88 : index
    %181 = vector.load %arg15[%c0_162, %c88_163] : memref<1x128xf32, #tpu.memory_space<vmem>>, vector<1x8xf32>
    tpu.vector_store %arg15[%c0_162, %c88_163], %180 {strides = array<i32>} : memref<1x128xf32, #tpu.memory_space<vmem>>, vector<1x8xf32>,
    %182 = vector.extract_strided_slice %109 {offsets = [0, 3, 0, 0], sizes = [1, 1, 1, 8], strides = [1, 1, 1, 1]} : vector<1x4x8x8xf32> to vector<1x1x1x8xf32>
    %183 = vector.shape_cast %182 : vector<1x1x1x8xf32> to vector<1x8xf32>
    %184 = vector.extract_strided_slice %109 {offsets = [0, 3, 1, 0], sizes = [1, 1, 1, 8], strides = [1, 1, 1, 1]} : vector<1x4x8x8xf32> to vector<1x1x1x8xf32>
    %185 = vector.shape_cast %184 : vector<1x1x1x8xf32> to vector<1x8xf32>
    %186 = arith.maximumf %183, %185 : vector<1x8xf32>
    %c0_164 = arith.constant 0 : index
    %c96_165 = arith.constant 96 : index
    %187 = vector.load %arg15[%c0_164, %c96_165] : memref<1x128xf32, #tpu.memory_space<vmem>>, vector<1x8xf32>
    tpu.vector_store %arg15[%c0_164, %c96_165], %186 {strides = array<i32>} : memref<1x128xf32, #tpu.memory_space<vmem>>, vector<1x8xf32>,
    %188 = vector.extract_strided_slice %109 {offsets = [0, 3, 2, 0], sizes = [1, 1, 1, 8], strides = [1, 1, 1, 1]} : vector<1x4x8x8xf32> to vector<1x1x1x8xf32>
    %189 = vector.shape_cast %188 : vector<1x1x1x8xf32> to vector<1x8xf32>
    %190 = vector.extract_strided_slice %109 {offsets = [0, 3, 3, 0], sizes = [1, 1, 1, 8], strides = [1, 1, 1, 1]} : vector<1x4x8x8xf32> to vector<1x1x1x8xf32>
    %191 = vector.shape_cast %190 : vector<1x1x1x8xf32> to vector<1x8xf32>
    %192 = arith.maximumf %189, %191 : vector<1x8xf32>
    %c0_166 = arith.constant 0 : index
    %c104 = arith.constant 104 : index
    %193 = vector.load %arg15[%c0_166, %c104] : memref<1x128xf32, #tpu.memory_space<vmem>>, vector<1x8xf32>
    tpu.vector_store %arg15[%c0_166, %c104], %192 {strides = array<i32>} : memref<1x128xf32, #tpu.memory_space<vmem>>, vector<1x8xf32>,
    %194 = vector.extract_strided_slice %109 {offsets = [0, 3, 4, 0], sizes = [1, 1, 1, 8], strides = [1, 1, 1, 1]} : vector<1x4x8x8xf32> to vector<1x1x1x8xf32>
    %195 = vector.shape_cast %194 : vector<1x1x1x8xf32> to vector<1x8xf32>
    %196 = vector.extract_strided_slice %109 {offsets = [0, 3, 5, 0], sizes = [1, 1, 1, 8], strides = [1, 1, 1, 1]} : vector<1x4x8x8xf32> to vector<1x1x1x8xf32>
    %197 = vector.shape_cast %196 : vector<1x1x1x8xf32> to vector<1x8xf32>
    %198 = arith.maximumf %195, %197 : vector<1x8xf32>
    %c0_167 = arith.constant 0 : index
    %c112 = arith.constant 112 : index
    %199 = vector.load %arg15[%c0_167, %c112] : memref<1x128xf32, #tpu.memory_space<vmem>>, vector<1x8xf32>
    tpu.vector_store %arg15[%c0_167, %c112], %198 {strides = array<i32>} : memref<1x128xf32, #tpu.memory_space<vmem>>, vector<1x8xf32>,
    %200 = vector.extract_strided_slice %109 {offsets = [0, 3, 6, 0], sizes = [1, 1, 1, 8], strides = [1, 1, 1, 1]} : vector<1x4x8x8xf32> to vector<1x1x1x8xf32>
    %201 = vector.shape_cast %200 : vector<1x1x1x8xf32> to vector<1x8xf32>
    %202 = vector.extract_strided_slice %109 {offsets = [0, 3, 7, 0], sizes = [1, 1, 1, 8], strides = [1, 1, 1, 1]} : vector<1x4x8x8xf32> to vector<1x1x1x8xf32>
    %203 = vector.shape_cast %202 : vector<1x1x1x8xf32> to vector<1x8xf32>
    %204 = arith.maximumf %201, %203 : vector<1x8xf32>
    %c0_168 = arith.constant 0 : index
    %c120 = arith.constant 120 : index
    %205 = vector.load %arg15[%c0_168, %c120] : memref<1x128xf32, #tpu.memory_space<vmem>>, vector<1x8xf32>
    tpu.vector_store %arg15[%c0_168, %c120], %204 {strides = array<i32>} : memref<1x128xf32, #tpu.memory_space<vmem>>, vector<1x8xf32>,
    %c0_169 = arith.constant 0 : index
    %c0_170 = arith.constant 0 : index
    %206 = vector.load %arg15[%c0_169, %c0_170] : memref<1x128xf32, #tpu.memory_space<vmem>>, vector<1x128xf32>
    %cst_171 = arith.constant 0.000000e+00 : f32
    %207 = vector.broadcast %cst_171 : f32 to vector<1x128xf32>
    %208 = arith.maximumf %206, %207 : vector<1x128xf32>
    %c0_172 = arith.constant 0 : index
    %c0_173 = arith.constant 0 : index
    %209 = vector.load %arg6[%c0_172, %c0_173] : memref<128x120xf32, #tpu.memory_space<vmem>>, vector<128x120xf32>
    %cst_174 = arith.constant dense<0.000000e+00> : vector<1x120xf32>
    %210 = tpu.matmul %208, %209, %cst_174 {dimension_numbers = #tpu.dot_dimension_numbers<[1], [0], [0], [1], [0, 0, 1, 1], [], []>} : vector<1x128xf32>, vector<128x120xf32>, vector<1x120xf32> -> vector<1x120xf32>
    %c0_175 = arith.constant 0 : index
    %c0_176 = arith.constant 0 : index
    %211 = vector.load %arg7[%c0_175, %c0_176] : memref<1x120xf32, #tpu.memory_space<vmem>>, vector<1x120xf32>
    %212 = arith.addf %210, %211 : vector<1x120xf32>
    %cst_177 = arith.constant 0.000000e+00 : f32
    %213 = vector.broadcast %cst_177 : f32 to vector<1x120xf32>
    %214 = arith.maximumf %212, %213 : vector<1x120xf32>
    %c0_178 = arith.constant 0 : index
    %c0_179 = arith.constant 0 : index
    %215 = vector.load %arg8[%c0_178, %c0_179] : memref<120x84xf32, #tpu.memory_space<vmem>>, vector<120x84xf32>
    %cst_180 = arith.constant dense<0.000000e+00> : vector<1x84xf32>
    %216 = tpu.matmul %214, %215, %cst_180 {dimension_numbers = #tpu.dot_dimension_numbers<[1], [0], [0], [1], [0, 0, 1, 1], [], []>} : vector<1x120xf32>, vector<120x84xf32>, vector<1x84xf32> -> vector<1x84xf32>
    %c0_181 = arith.constant 0 : index
    %c0_182 = arith.constant 0 : index
    %217 = vector.load %arg9[%c0_181, %c0_182] : memref<1x84xf32, #tpu.memory_space<vmem>>, vector<1x84xf32>
    %218 = arith.addf %216, %217 : vector<1x84xf32>
    %cst_183 = arith.constant 0.000000e+00 : f32
    %219 = vector.broadcast %cst_183 : f32 to vector<1x84xf32>
    %220 = arith.maximumf %218, %219 : vector<1x84xf32>
    %c0_184 = arith.constant 0 : index
    %c0_185 = arith.constant 0 : index
    %221 = vector.load %arg10[%c0_184, %c0_185] : memref<84x10xf32, #tpu.memory_space<vmem>>, vector<84x10xf32>
    %cst_186 = arith.constant dense<0.000000e+00> : vector<1x10xf32>
    %222 = tpu.matmul %220, %221, %cst_186 {dimension_numbers = #tpu.dot_dimension_numbers<[1], [0], [0], [1], [0, 0, 1, 1], [], []>} : vector<1x84xf32>, vector<84x10xf32>, vector<1x10xf32> -> vector<1x10xf32>
    %c0_187 = arith.constant 0 : index
    %c0_188 = arith.constant 0 : index
    %223 = vector.load %arg11[%c0_187, %c0_188] : memref<1x10xf32, #tpu.memory_space<vmem>>, vector<1x10xf32>
    %224 = arith.addf %222, %223 : vector<1x10xf32>
    %c0_189 = arith.constant 0 : index
    %c0_190 = arith.constant 0 : index
    %c0_191 = arith.constant 0 : index
    %225 = vector.load %arg12[%c0_189, %c0_190, %c0_191] : memref<1x1x10xf32, #tpu.memory_space<vmem>>, vector<1x1x10xf32>
    %226 = vector.shape_cast %225 : vector<1x1x10xf32> to vector<1x10xf32>
    %227 = vector.shape_cast %224 : vector<1x10xf32> to vector<1x1x10xf32>
    tpu.vector_store %arg12[%c0_189, %c0_190, %c0_191], %227 {strides = array<i32>} : memref<1x1x10xf32, #tpu.memory_space<vmem>>, vector<1x1x10xf32>,
    return
  }
  func.func @transform_0(%arg0: i32) -> (i32, i32) {
    %c0_i32 = arith.constant 0 : i32
    %c0_i32_0 = arith.constant 0 : i32
    return %arg0, %c0_i32 : i32, i32
  }
  func.func @transform_1(%arg0: i32) -> (i32, i32) {
    %c0_i32 = arith.constant 0 : i32
    %c0_i32_0 = arith.constant 0 : i32
    %c0_i32_1 = arith.constant 0 : i32
    return %c0_i32, %c0_i32_0 : i32, i32
  }
  func.func @transform_2(%arg0: i32) -> (i32, i32) {
    %c0_i32 = arith.constant 0 : i32
    %c0_i32_0 = arith.constant 0 : i32
    %c0_i32_1 = arith.constant 0 : i32
    return %c0_i32, %c0_i32_0 : i32, i32
  }
  func.func @transform_3(%arg0: i32) -> (i32, i32) {
    %c0_i32 = arith.constant 0 : i32
    %c0_i32_0 = arith.constant 0 : i32
    %c0_i32_1 = arith.constant 0 : i32
    return %c0_i32, %c0_i32_0 : i32, i32
  }
  func.func @transform_4(%arg0: i32) -> (i32, i32) {
    %c0_i32 = arith.constant 0 : i32
    %c0_i32_0 = arith.constant 0 : i32
    %c0_i32_1 = arith.constant 0 : i32
    return %c0_i32, %c0_i32_0 : i32, i32
  }
  func.func @transform_5(%arg0: i32) -> (i32, i32) {
    %c0_i32 = arith.constant 0 : i32
    %c0_i32_0 = arith.constant 0 : i32
    %c0_i32_1 = arith.constant 0 : i32
    return %c0_i32, %c0_i32_0 : i32, i32
  }
  func.func @transform_6(%arg0: i32) -> (i32, i32) {
    %c0_i32 = arith.constant 0 : i32
    %c0_i32_0 = arith.constant 0 : i32
    %c0_i32_1 = arith.constant 0 : i32
    return %c0_i32, %c0_i32_0 : i32, i32
  }
  func.func @transform_7(%arg0: i32) -> (i32, i32) {
    %c0_i32 = arith.constant 0 : i32
    %c0_i32_0 = arith.constant 0 : i32
    %c0_i32_1 = arith.constant 0 : i32
    return %c0_i32, %c0_i32_0 : i32, i32
  }
  func.func @transform_8(%arg0: i32) -> (i32, i32) {
    %c0_i32 = arith.constant 0 : i32
    %c0_i32_0 = arith.constant 0 : i32
    %c0_i32_1 = arith.constant 0 : i32
    return %c0_i32, %c0_i32_0 : i32, i32
  }
  func.func @transform_9(%arg0: i32) -> (i32, i32) {
    %c0_i32 = arith.constant 0 : i32
    %c0_i32_0 = arith.constant 0 : i32
    %c0_i32_1 = arith.constant 0 : i32
    return %c0_i32, %c0_i32_0 : i32, i32
  }
  func.func @transform_10(%arg0: i32) -> (i32, i32) {
    %c0_i32 = arith.constant 0 : i32
    %c0_i32_0 = arith.constant 0 : i32
    %c0_i32_1 = arith.constant 0 : i32
    return %c0_i32, %c0_i32_0 : i32, i32
  }
  func.func @transform_11(%arg0: i32) -> (i32, i32, i32) {
    %c0_i32 = arith.constant 0 : i32
    %c0_i32_0 = arith.constant 0 : i32
    %c0_i32_1 = arith.constant 0 : i32
    return %arg0, %c0_i32, %c0_i32_0 : i32, i32, i32
  }
}

</mosaic_0001>

<llo_original>
// kernel: lenet_forward.1
$region0: #{lenet_forward.1}
  #allocation0 [shape = 'u32[]', space=smem, size = 0x4, offset = 0x4, fixed_abs, tag = 'smem constant byte address 0x4 - core index']
  #allocation1 [shape = 'u32[144,128]{1,0:T(1,128)}', space=vmem, size = 0x12000, scoped, tag = 'internal scratch']
  #allocation2 [shape = 'f32[1,12,16,4]{3,2,1,0:T(8,128)}', space=vmem, size = 0x18000, scoped, tag = 'scratch operand']
  #allocation3 [shape = 'f32[64,100]{1,0:T(8,128)}', space=vmem, size = 0x8000, scoped, tag = 'scratch operand']
  #allocation4 [shape = 'f32[1,128]{1,0:T(1,128)}', space=vmem, size = 0x200, scoped, tag = 'scratch operand']
  %s0 = inlined_call_operand.vmem [shape: f32[1536,25], index: 0, kind: input, shape index: {}]
  %s1 = inlined_call_operand.vmem [shape: f32[25,4], index: 1, kind: input, shape index: {}]
  %s2 = inlined_call_operand.vmem [shape: f32[1,4], index: 2, kind: input, shape index: {}]
  %s3 = inlined_call_operand.vmem [shape: f32[100,8], index: 3, kind: input, shape index: {}]
  %s4 = inlined_call_operand.vmem [shape: f32[1,8], index: 4, kind: input, shape index: {}]
  %s5 = inlined_call_operand.vmem [shape: f32[128,120], index: 5, kind: input, shape index: {}]
  %s6 = inlined_call_operand.vmem [shape: f32[1,120], index: 6, kind: input, shape index: {}]
  %s7 = inlined_call_operand.vmem [shape: f32[120,84], index: 7, kind: input, shape index: {}]
  %s8 = inlined_call_operand.vmem [shape: f32[1,84], index: 8, kind: input, shape index: {}]
  %s9 = inlined_call_operand.vmem [shape: f32[84,10], index: 9, kind: input, shape index: {}]
  %s10 = inlined_call_operand.vmem [shape: f32[1,10], index: 10, kind: input, shape index: {}]
  %s11 = inlined_call_operand.hbm [shape: f32[2,1,10], index: 11, kind: output, shape index: {}]
  %s12 = sld [smem:[#allocation0]]
  $region77: #{lenet_forward.1} parent=0
    _
  %s14 = ssub.s32 1, %s12
  %s15 = scalar_select 0, %s14, %s12
  $region1: #{lenet_forward.1} parent=0
    #allocation5 [shape = 'u8[1024]{0}', space=vmem, size = 0x400, scoped, tag = 'output window, operand 0']
    #allocation6 [shape = 's32[2]{0}', space=sflag, size = 0x8, scoped, tag = 'scoped memory for lenet_forward.1']
    %16 = vsyncpa [#allocation6], 0
    %s17 = scalar_lea.sflag [#allocation6], 1
    %18 = vsyncpa %s17, 0
    loop: start=0, step=1, limit=4
    $region2: #{lenet_forward.1} parent=1 // loop_pre_header
      _
    $region3: #{lenet_forward.1} parent=1 // loop_header
      %s20 = sphi 0, %s24
      %p21 = scmp.ge.s32.totalorder %s20, 4
      %s30 = sphi 0, %s32
      %s33 = sphi 0, %s30
      %s34 = sphi 0, %s33
      %s50 = sphi 0, %s34
      %s54 = sphi 0, %s54
      %s56 = sphi 0, %s54
      %s57 = sphi 0, %s56
      %s71 = sphi 0, %s57
      %s75 = sphi 0, %s75
      %s77 = sphi 0, %s75
      %s78 = sphi 0, %s77
      %s92 = sphi 0, %s78
      %s96 = sphi 0, %s96
      %s98 = sphi 0, %s96
      %s99 = sphi 0, %s98
      %s113 = sphi 0, %s99
      %s117 = sphi 0, %s117
      %s119 = sphi 0, %s117
      %s120 = sphi 0, %s119
      %s134 = sphi 0, %s120
      %s138 = sphi 0, %s138
      %s140 = sphi 0, %s138
      %s141 = sphi 0, %s140
      %s155 = sphi 0, %s141
      %s159 = sphi 0, %s159
      %s161 = sphi 0, %s159
      %s162 = sphi 0, %s161
      %s176 = sphi 0, %s162
      %s180 = sphi 0, %s180
      %s182 = sphi 0, %s180
      %s183 = sphi 0, %s182
      %s197 = sphi 0, %s183
      %s201 = sphi 0, %s201
      %s203 = sphi 0, %s201
      %s204 = sphi 0, %s203
      %s218 = sphi 0, %s204
      %s222 = sphi 0, %s222
      %s224 = sphi 0, %s222
      %s225 = sphi 0, %s224
      %s239 = sphi 0, %s225
      %s243 = sphi 0, %s243
      %s245 = sphi 0, %s243
      %s246 = sphi 0, %s245
      %s260 = sphi 0, %s246
      %s266 = sphi 0, %s268
      %s269 = sphi 0, %s266
      %s270 = sphi 0, %s269
      %s286 = sphi 0, %s270
    $region4: #{lenet_forward.1} parent=1 // loop_header_branch
      %23 = sbr.rel (%p21) target = $region8
    $region5: #{lenet_forward.1} parent=1 // loop_body
      %s25 = ssub.s32 %s20, 1
      %s26 = ssub.s32 %s20, 2
      %s27 = sadd.s32 %s20, 1
      %s28 = ssub.s32 %s20, %s27
      %p29 = scmp.eq.s32.totalorder %s28, 0
      %s31 = sadd.s32 %s30, 1
      %s32 = scalar_select %p29, %s30, %s31
      %p35 = pneg %p29
      %p36 = scmp.eq.s32.totalorder %s20, 1
      %p37 = por %p35, %p36
      %p38 = scmp.ne.s32.totalorder %s30, %s33
      %p39 = scmp.eq.s32.totalorder %s20, 0
      %p40 = por %p38, %p39
      %p41 = scmp.ne.s32.totalorder %s30, %s33
      %p42 = scmp.eq.s32.totalorder %s25, 1
      %p43 = por %p41, %p42
      %p44 = scmp.ne.s32.totalorder %s33, %s34
      %p45 = scmp.eq.s32.totalorder %s25, 0
      %p46 = por %p44, %p45
      %p47 = scmp.ne.s32.totalorder %s33, %s34
      %p48 = scmp.eq.s32.totalorder %s26, 1
      %p49 = por %p47, %p48
      %p51 = scmp.ne.s32.totalorder %s34, %s50
      %p52 = scmp.eq.s32.totalorder %s26, 0
      %p53 = por %p51, %p52
      %s55 = sadd.s32 %s54, 1
      %p58 = scmp.eq.s32.totalorder %s20, 1
      %p59 = scmp.ne.s32.totalorder %s54, %s56
      %p60 = scmp.eq.s32.totalorder %s20, 0
      %p61 = por %p59, %p60
      %p62 = scmp.ne.s32.totalorder %s54, %s56
      %p63 = scmp.eq.s32.totalorder %s25, 1
      %p64 = por %p62, %p63
      %p65 = scmp.ne.s32.totalorder %s56, %s57
      %p66 = scmp.eq.s32.totalorder %s25, 0
      %p67 = por %p65, %p66
      %p68 = scmp.ne.s32.totalorder %s56, %s57
      %p69 = scmp.eq.s32.totalorder %s26, 1
      %p70 = por %p68, %p69
      %p72 = scmp.ne.s32.totalorder %s57, %s71
      %p73 = scmp.eq.s32.totalorder %s26, 0
      %p74 = por %p72, %p73
      %s76 = sadd.s32 %s75, 1
      %p79 = scmp.eq.s32.totalorder %s20, 1
      %p80 = scmp.ne.s32.totalorder %s75, %s77
      %p81 = scmp.eq.s32.totalorder %s20, 0
      %p82 = por %p80, %p81
      %p83 = scmp.ne.s32.totalorder %s75, %s77
      %p84 = scmp.eq.s32.totalorder %s25, 1
      %p85 = por %p83, %p84
      %p86 = scmp.ne.s32.totalorder %s77, %s78
      %p87 = scmp.eq.s32.totalorder %s25, 0
      %p88 = por %p86, %p87
      %p89 = scmp.ne.s32.totalorder %s77, %s78
      %p90 = scmp.eq.s32.totalorder %s26, 1
      %p91 = por %p89, %p90
      %p93 = scmp.ne.s32.totalorder %s78, %s92
      %p94 = scmp.eq.s32.totalorder %s26, 0
      %p95 = por %p93, %p94
      %s97 = sadd.s32 %s96, 1
      %p100 = scmp.eq.s32.totalorder %s20, 1
      %p101 = scmp.ne.s32.totalorder %s96, %s98
      %p102 = scmp.eq.s32.totalorder %s20, 0
      %p103 = por %p101, %p102
      %p104 = scmp.ne.s32.totalorder %s96, %s98
      %p105 = scmp.eq.s32.totalorder %s25, 1
      %p106 = por %p104, %p105
      %p107 = scmp.ne.s32.totalorder %s98, %s99
      %p108 = scmp.eq.s32.totalorder %s25, 0
      %p109 = por %p107, %p108
      %p110 = scmp.ne.s32.totalorder %s98, %s99
      %p111 = scmp.eq.s32.totalorder %s26, 1
      %p112 = por %p110, %p111
      %p114 = scmp.ne.s32.totalorder %s99, %s113
      %p115 = scmp.eq.s32.totalorder %s26, 0
      %p116 = por %p114, %p115
      %s118 = sadd.s32 %s117, 1
      %p121 = scmp.eq.s32.totalorder %s20, 1
      %p122 = scmp.ne.s32.totalorder %s117, %s119
      %p123 = scmp.eq.s32.totalorder %s20, 0
      %p124 = por %p122, %p123
      %p125 = scmp.ne.s32.totalorder %s117, %s119
      %p126 = scmp.eq.s32.totalorder %s25, 1
      %p127 = por %p125, %p126
      %p128 = scmp.ne.s32.totalorder %s119, %s120
      %p129 = scmp.eq.s32.totalorder %s25, 0
      %p130 = por %p128, %p129
      %p131 = scmp.ne.s32.totalorder %s119, %s120
      %p132 = scmp.eq.s32.totalorder %s26, 1
      %p133 = por %p131, %p132
      %p135 = scmp.ne.s32.totalorder %s120, %s134
      %p136 = scmp.eq.s32.totalorder %s26, 0
      %p137 = por %p135, %p136
      %s139 = sadd.s32 %s138, 1
      %p142 = scmp.eq.s32.totalorder %s20, 1
      %p143 = scmp.ne.s32.totalorder %s138, %s140
      %p144 = scmp.eq.s32.totalorder %s20, 0
      %p145 = por %p143, %p144
      %p146 = scmp.ne.s32.totalorder %s138, %s140
      %p147 = scmp.eq.s32.totalorder %s25, 1
      %p148 = por %p146, %p147
      %p149 = scmp.ne.s32.totalorder %s140, %s141
      %p150 = scmp.eq.s32.totalorder %s25, 0
      %p151 = por %p149, %p150
      %p152 = scmp.ne.s32.totalorder %s140, %s141
      %p153 = scmp.eq.s32.totalorder %s26, 1
      %p154 = por %p152, %p153
      %p156 = scmp.ne.s32.totalorder %s141, %s155
      %p157 = scmp.eq.s32.totalorder %s26, 0
      %p158 = por %p156, %p157
      %s160 = sadd.s32 %s159, 1
      %p163 = scmp.eq.s32.totalorder %s20, 1
      %p164 = scmp.ne.s32.totalorder %s159, %s161
      %p165 = scmp.eq.s32.totalorder %s20, 0
      %p166 = por %p164, %p165
      %p167 = scmp.ne.s32.totalorder %s159, %s161
      %p168 = scmp.eq.s32.totalorder %s25, 1
      %p169 = por %p167, %p168
      %p170 = scmp.ne.s32.totalorder %s161, %s162
      %p171 = scmp.eq.s32.totalorder %s25, 0
      %p172 = por %p170, %p171
      %p173 = scmp.ne.s32.totalorder %s161, %s162
      %p174 = scmp.eq.s32.totalorder %s26, 1
      %p175 = por %p173, %p174
      %p177 = scmp.ne.s32.totalorder %s162, %s176
      %p178 = scmp.eq.s32.totalorder %s26, 0
      %p179 = por %p177, %p178
      %s181 = sadd.s32 %s180, 1
      %p184 = scmp.eq.s32.totalorder %s20, 1
      %p185 = scmp.ne.s32.totalorder %s180, %s182
      %p186 = scmp.eq.s32.totalorder %s20, 0
      %p187 = por %p185, %p186
      %p188 = scmp.ne.s32.totalorder %s180, %s182
      %p189 = scmp.eq.s32.totalorder %s25, 1
      %p190 = por %p188, %p189
      %p191 = scmp.ne.s32.totalorder %s182, %s183
      %p192 = scmp.eq.s32.totalorder %s25, 0
      %p193 = por %p191, %p192
      %p194 = scmp.ne.s32.totalorder %s182, %s183
      %p195 = scmp.eq.s32.totalorder %s26, 1
      %p196 = por %p194, %p195
      %p198 = scmp.ne.s32.totalorder %s183, %s197
      %p199 = scmp.eq.s32.totalorder %s26, 0
      %p200 = por %p198, %p199
      %s202 = sadd.s32 %s201, 1
      %p205 = scmp.eq.s32.totalorder %s20, 1
      %p206 = scmp.ne.s32.totalorder %s201, %s203
      %p207 = scmp.eq.s32.totalorder %s20, 0
      %p208 = por %p206, %p207
      %p209 = scmp.ne.s32.totalorder %s201, %s203
      %p210 = scmp.eq.s32.totalorder %s25, 1
      %p211 = por %p209, %p210
      %p212 = scmp.ne.s32.totalorder %s203, %s204
      %p213 = scmp.eq.s32.totalorder %s25, 0
      %p214 = por %p212, %p213
      %p215 = scmp.ne.s32.totalorder %s203, %s204
      %p216 = scmp.eq.s32.totalorder %s26, 1
      %p217 = por %p215, %p216
      %p219 = scmp.ne.s32.totalorder %s204, %s218
      %p220 = scmp.eq.s32.totalorder %s26, 0
      %p221 = por %p219, %p220
      %s223 = sadd.s32 %s222, 1
      %p226 = scmp.eq.s32.totalorder %s20, 1
      %p227 = scmp.ne.s32.totalorder %s222, %s224
      %p228 = scmp.eq.s32.totalorder %s20, 0
      %p229 = por %p227, %p228
      %p230 = scmp.ne.s32.totalorder %s222, %s224
      %p231 = scmp.eq.s32.totalorder %s25, 1
      %p232 = por %p230, %p231
      %p233 = scmp.ne.s32.totalorder %s224, %s225
      %p234 = scmp.eq.s32.totalorder %s25, 0
      %p235 = por %p233, %p234
      %p236 = scmp.ne.s32.totalorder %s224, %s225
      %p237 = scmp.eq.s32.totalorder %s26, 1
      %p238 = por %p236, %p237
      %p240 = scmp.ne.s32.totalorder %s225, %s239
      %p241 = scmp.eq.s32.totalorder %s26, 0
      %p242 = por %p240, %p241
      %s244 = sadd.s32 %s243, 1
      %p247 = scmp.eq.s32.totalorder %s20, 1
      %p248 = scmp.ne.s32.totalorder %s243, %s245
      %p249 = scmp.eq.s32.totalorder %s20, 0
      %p250 = por %p248, %p249
      %p251 = scmp.ne.s32.totalorder %s243, %s245
      %p252 = scmp.eq.s32.totalorder %s25, 1
      %p253 = por %p251, %p252
      %p254 = scmp.ne.s32.totalorder %s245, %s246
      %p255 = scmp.eq.s32.totalorder %s25, 0
      %p256 = por %p254, %p255
      %p257 = scmp.ne.s32.totalorder %s245, %s246
      %p258 = scmp.eq.s32.totalorder %s26, 1
      %p259 = por %p257, %p258
      %p261 = scmp.ne.s32.totalorder %s246, %s260
      %p262 = scmp.eq.s32.totalorder %s26, 0
      %p263 = por %p261, %p262
      %s264 = ssub.s32 %s20, %s27
      %p265 = scmp.eq.s32.totalorder %s264, 0
      %s267 = sadd.s32 %s266, 1
      %s268 = scalar_select %p265, %s266, %s267
      %p271 = pneg %p265
      %p272 = scmp.eq.s32.totalorder %s20, 1
      %p273 = por %p271, %p272
      %p274 = scmp.ne.s32.totalorder %s266, %s269
      %p275 = scmp.eq.s32.totalorder %s20, 0
      %p276 = por %p274, %p275
      %p277 = scmp.ne.s32.totalorder %s266, %s269
      %p278 = scmp.eq.s32.totalorder %s25, 1
      %p279 = por %p277, %p278
      %p280 = scmp.ne.s32.totalorder %s269, %s270
      %p281 = scmp.eq.s32.totalorder %s25, 0
      %p282 = por %p280, %p281
      %p283 = scmp.ne.s32.totalorder %s269, %s270
      %p284 = scmp.eq.s32.totalorder %s26, 1
      %p285 = por %p283, %p284
      %p287 = scmp.ne.s32.totalorder %s270, %s286
      %p288 = scmp.eq.s32.totalorder %s26, 0
      %p289 = por %p287, %p288
      %p290 = scmp.le.s32.totalorder 1, %s20
      %p291 = scmp.lt.s32.totalorder %s20, 3
      %p292 = pnand %p290, %p291
      %p293 = pneg %p292
      // Predicated region
      $region9: #{lenet_forward.1} parent=5 // pred_check
        _
      $region10: #{lenet_forward.1} parent=5 // pred_check_branch
        %295 = sbr.rel (%p292) target = $region12
      $region11: #{lenet_forward.1} parent=5 // pred_region
        %s296 = ssub.s32 %s20, 1
        // Predicated region
        $region13: #{lenet_forward.1} parent=11 // pred_check
          %p297 = pneg %p67
        $region14: #{lenet_forward.1} parent=11 // pred_check_branch
          %299 = sbr.rel (%p297) target = $region16
        $region15: #{lenet_forward.1} parent=11 // pred_region
          _
        $region16: #{lenet_forward.1} parent=11 // pred_fallthru
          _
        // Predicated region
        $region17: #{lenet_forward.1} parent=11 // pred_check
          %p300 = pneg %p88
        $region18: #{lenet_forward.1} parent=11 // pred_check_branch
          %302 = sbr.rel (%p300) target = $region20
        $region19: #{lenet_forward.1} parent=11 // pred_region
          _
        $region20: #{lenet_forward.1} parent=11 // pred_fallthru
          _
        // Predicated region
        $region21: #{lenet_forward.1} parent=11 // pred_check
          %p303 = pneg %p109
        $region22: #{lenet_forward.1} parent=11 // pred_check_branch
          %305 = sbr.rel (%p303) target = $region24
        $region23: #{lenet_forward.1} parent=11 // pred_region
          _
        $region24: #{lenet_forward.1} parent=11 // pred_fallthru
          _
        // Predicated region
        $region25: #{lenet_forward.1} parent=11 // pred_check
          %p306 = pneg %p130
        $region26: #{lenet_forward.1} parent=11 // pred_check_branch
          %308 = sbr.rel (%p306) target = $region28
        $region27: #{lenet_forward.1} parent=11 // pred_region
          _
        $region28: #{lenet_forward.1} parent=11 // pred_fallthru
          _
        // Predicated region
        $region29: #{lenet_forward.1} parent=11 // pred_check
          %p309 = pneg %p151
        $region30: #{lenet_forward.1} parent=11 // pred_check_branch
          %311 = sbr.rel (%p309) target = $region32
        $region31: #{lenet_forward.1} parent=11 // pred_region
          _
        $region32: #{lenet_forward.1} parent=11 // pred_fallthru
          _
        // Predicated region
        $region33: #{lenet_forward.1} parent=11 // pred_check
          %p312 = pneg %p172
        $region34: #{lenet_forward.1} parent=11 // pred_check_branch
          %314 = sbr.rel (%p312) target = $region36
        $region35: #{lenet_forward.1} parent=11 // pred_region
          _
        $region36: #{lenet_forward.1} parent=11 // pred_fallthru
          _
        // Predicated region
        $region37: #{lenet_forward.1} parent=11 // pred_check
          %p315 = pneg %p193
        $region38: #{lenet_forward.1} parent=11 // pred_check_branch
          %317 = sbr.rel (%p315) target = $region40
        $region39: #{lenet_forward.1} parent=11 // pred_region
          _
        $region40: #{lenet_forward.1} parent=11 // pred_fallthru
          _
        // Predicated region
        $region41: #{lenet_forward.1} parent=11 // pred_check
          %p318 = pneg %p214
        $region42: #{lenet_forward.1} parent=11 // pred_check_branch
          %320 = sbr.rel (%p318) target = $region44
        $region43: #{lenet_forward.1} parent=11 // pred_region
          _
        $region44: #{lenet_forward.1} parent=11 // pred_fallthru
          _
        // Predicated region
        $region45: #{lenet_forward.1} parent=11 // pred_check
          %p321 = pneg %p235
        $region46: #{lenet_forward.1} parent=11 // pred_check_branch
          %323 = sbr.rel (%p321) target = $region48
        $region47: #{lenet_forward.1} parent=11 // pred_region
          _
        $region48: #{lenet_forward.1} parent=11 // pred_fallthru
          _
        // Predicated region
        $region49: #{lenet_forward.1} parent=11 // pred_check
          %p324 = pneg %p256
        $region50: #{lenet_forward.1} parent=11 // pred_check_branch
          %326 = sbr.rel (%p324) target = $region52
        $region51: #{lenet_forward.1} parent=11 // pred_region
          _
        $region52: #{lenet_forward.1} parent=11 // pred_fallthru
          _
      $region12: #{lenet_forward.1} parent=5 // pred_fallthru
        _
      %p327 = scmp.lt.s32.totalorder %s20, 2
      // Predicated region
      $region53: #{lenet_forward.1} parent=5 // pred_check
        %p328 = pneg %p327
      $region54: #{lenet_forward.1} parent=5 // pred_check_branch
        %330 = sbr.rel (%p328) target = $region56
      $region55: #{lenet_forward.1} parent=5 // pred_region
        // Predicated region
        $region57: #{lenet_forward.1} parent=55 // pred_check
          %p331 = pneg %p40
        $region58: #{lenet_forward.1} parent=55 // pred_check_branch
          %333 = sbr.rel (%p331) target = $region60
        $region59: #{lenet_forward.1} parent=55 // pred_region
          %s334 = smul.u32 96, %s20
          %p335 = scmp.lt.s32.totalorder %s334, 191
          %s336 = scalar_select %p335, %s334, 191
          %s337 = smul.addr %s336, 8
          %s338 = scalar_lea.vmem %s0, %s337
          %s339 = smul.u32 96, %s20
        $region60: #{lenet_forward.1} parent=55 // pred_fallthru
          _
      $region56: #{lenet_forward.1} parent=5 // pred_fallthru
        _
      %p340 = scmp.le.s32.totalorder 1, %s20
      %p341 = scmp.lt.s32.totalorder %s20, 3
      %p342 = pnand %p340, %p341
      %p343 = pneg %p342
      // Predicated region
      $region61: #{lenet_forward.1} parent=5 // pred_check
        _
      $region62: #{lenet_forward.1} parent=5 // pred_check_branch
        %345 = sbr.rel (%p342) target = $region64
      $region63: #{lenet_forward.1} parent=5 // pred_region
        %s346 = ssub.s32 %s20, 1
        %s347 = smul.u32 96, %s25
        %p348 = scmp.lt.s32.totalorder %s347, 191
        %s349 = scalar_select %p348, %s347, 191
        %s350 = smul.addr %s349, 8
        %s351 = scalar_lea.vmem %s0, %s350
        %p352 = pneg %p46
        %p353 = pneg %p43
        %p354 = pneg %p67
        %p355 = pneg %p64
        %p356 = pneg %p88
        %p357 = pneg %p85
        %p358 = pneg %p109
        %p359 = pneg %p106
        %p360 = pneg %p130
        %p361 = pneg %p127
        %p362 = pneg %p151
        %p363 = pneg %p148
        %p364 = pneg %p172
        %p365 = pneg %p169
        %p366 = pneg %p193
        %p367 = pneg %p190
        %p368 = pneg %p214
        %p369 = pneg %p211
        %p370 = pneg %p235
        %p371 = pneg %p232
        %p372 = pneg %p256
        %p373 = pneg %p253
        %p374 = pneg %p282
        %p375 = pneg %p279
        %s376 = sand.u32 %s269, 1
        %s377 = scalar_lea.sflag [#allocation6], %s376
        %s378 = sand.u32 %s269, 1
        %s379 = scalar_lea.vmem [#allocation5], %s378
        %s380 = smul.u32 96, %s25
        %p381 = scmp.lt.s32.totalorder %s380, 191
        %s382 = scalar_select %p381, %s380, 191
        %s383 = smul.addr %s382, 8
        %s384 = scalar_lea.vmem %s0, %s383
        %s385 = smul.u32 96, %s25
        %v386 = vld [vmem:[%s384] sm:$0xff]
        %v387 = vld [vmem:[%s384 + $0x8] sm:$0xff]
        %v388 = vld [vmem:[%s384 + $0x10] sm:$0xff]
        %v389 = vld [vmem:[%s384 + $0x18] sm:$0xff]
        %v390 = vld [vmem:[%s384 + $0x20] sm:$0xff]
        %v391 = vld [vmem:[%s384 + $0x28] sm:$0xff]
        %v392 = vld [vmem:[%s384 + $0x30] sm:$0xff]
        %v393 = vld [vmem:[%s384 + $0x38] sm:$0xff]
        %v394 = vld [vmem:[%s384 + $0x40] sm:$0xff]
        %v395 = vld [vmem:[%s384 + $0x48] sm:$0xff]
        %v396 = vld [vmem:[%s384 + $0x50] sm:$0xff]
        %v397 = vld [vmem:[%s384 + $0x58] sm:$0xff]
        %v398 = vld [vmem:[%s384 + $0x60] sm:$0xff]
        %v399 = vld [vmem:[%s384 + $0x68] sm:$0xff]
        %v400 = vld [vmem:[%s384 + $0x70] sm:$0xff]
        %v401 = vld [vmem:[%s384 + $0x78] sm:$0xff]
        %v402 = vld [vmem:[%s384 + $0x80] sm:$0xff]
        %v403 = vld [vmem:[%s384 + $0x88] sm:$0xff]
        %v404 = vld [vmem:[%s384 + $0x90] sm:$0xff]
        %v405 = vld [vmem:[%s384 + $0x98] sm:$0xff]
        %v406 = vld [vmem:[%s384 + $0xa0] sm:$0xff]
        %v407 = vld [vmem:[%s384 + $0xa8] sm:$0xff]
        %v408 = vld [vmem:[%s384 + $0xb0] sm:$0xff]
        %v409 = vld [vmem:[%s384 + $0xb8] sm:$0xff]
        %v410 = vld [vmem:[%s384 + $0xc0] sm:$0xff]
        %v411 = vld [vmem:[%s384 + $0xc8] sm:$0xff]
        %v412 = vld [vmem:[%s384 + $0xd0] sm:$0xff]
        %v413 = vld [vmem:[%s384 + $0xd8] sm:$0xff]
        %v414 = vld [vmem:[%s384 + $0xe0] sm:$0xff]
        %v415 = vld [vmem:[%s384 + $0xe8] sm:$0xff]
        %v416 = vld [vmem:[%s384 + $0xf0] sm:$0xff]
        %v417 = vld [vmem:[%s384 + $0xf8] sm:$0xff]
        %v418 = vld [vmem:[%s384 + $0x100] sm:$0xff]
        %v419 = vld [vmem:[%s384 + $0x108] sm:$0xff]
        %v420 = vld [vmem:[%s384 + $0x110] sm:$0xff]
        %v421 = vld [vmem:[%s384 + $0x118] sm:$0xff]
        %v422 = vld [vmem:[%s384 + $0x120] sm:$0xff]
        %v423 = vld [vmem:[%s384 + $0x128] sm:$0xff]
        %v424 = vld [vmem:[%s384 + $0x130] sm:$0xff]
        %v425 = vld [vmem:[%s384 + $0x138] sm:$0xff]
        %v426 = vld [vmem:[%s384 + $0x140] sm:$0xff]
        %v427 = vld [vmem:[%s384 + $0x148] sm:$0xff]
        %v428 = vld [vmem:[%s384 + $0x150] sm:$0xff]
        %v429 = vld [vmem:[%s384 + $0x158] sm:$0xff]
        %v430 = vld [vmem:[%s384 + $0x160] sm:$0xff]
        %v431 = vld [vmem:[%s384 + $0x168] sm:$0xff]
        %v432 = vld [vmem:[%s384 + $0x170] sm:$0xff]
        %v433 = vld [vmem:[%s384 + $0x178] sm:$0xff]
        %v434 = vld [vmem:[%s384 + $0x180] sm:$0xff]
        %v435 = vld [vmem:[%s384 + $0x188] sm:$0xff]
        %v436 = vld [vmem:[%s384 + $0x190] sm:$0xff]
        %v437 = vld [vmem:[%s384 + $0x198] sm:$0xff]
        %v438 = vld [vmem:[%s384 + $0x1a0] sm:$0xff]
        %v439 = vld [vmem:[%s384 + $0x1a8] sm:$0xff]
        %v440 = vld [vmem:[%s384 + $0x1b0] sm:$0xff]
        %v441 = vld [vmem:[%s384 + $0x1b8] sm:$0xff]
        %v442 = vld [vmem:[%s384 + $0x1c0] sm:$0xff]
        %v443 = vld [vmem:[%s384 + $0x1c8] sm:$0xff]
        %v444 = vld [vmem:[%s384 + $0x1d0] sm:$0xff]
        %v445 = vld [vmem:[%s384 + $0x1d8] sm:$0xff]
        %v446 = vld [vmem:[%s384 + $0x1e0] sm:$0xff]
        %v447 = vld [vmem:[%s384 + $0x1e8] sm:$0xff]
        %v448 = vld [vmem:[%s384 + $0x1f0] sm:$0xff]
        %v449 = vld [vmem:[%s384 + $0x1f8] sm:$0xff]
        %v450 = vld [vmem:[%s384 + $0x200] sm:$0xff]
        %v451 = vld [vmem:[%s384 + $0x208] sm:$0xff]
        %v452 = vld [vmem:[%s384 + $0x210] sm:$0xff]
        %v453 = vld [vmem:[%s384 + $0x218] sm:$0xff]
        %v454 = vld [vmem:[%s384 + $0x220] sm:$0xff]
        %v455 = vld [vmem:[%s384 + $0x228] sm:$0xff]
        %v456 = vld [vmem:[%s384 + $0x230] sm:$0xff]
        %v457 = vld [vmem:[%s384 + $0x238] sm:$0xff]
        %v458 = vld [vmem:[%s384 + $0x240] sm:$0xff]
        %v459 = vld [vmem:[%s384 + $0x248] sm:$0xff]
        %v460 = vld [vmem:[%s384 + $0x250] sm:$0xff]
        %v461 = vld [vmem:[%s384 + $0x258] sm:$0xff]
        %v462 = vld [vmem:[%s384 + $0x260] sm:$0xff]
        %v463 = vld [vmem:[%s384 + $0x268] sm:$0xff]
        %v464 = vld [vmem:[%s384 + $0x270] sm:$0xff]
        %v465 = vld [vmem:[%s384 + $0x278] sm:$0xff]
        %v466 = vld [vmem:[%s384 + $0x280] sm:$0xff]
        %v467 = vld [vmem:[%s384 + $0x288] sm:$0xff]
        %v468 = vld [vmem:[%s384 + $0x290] sm:$0xff]
        %v469 = vld [vmem:[%s384 + $0x298] sm:$0xff]
        %v470 = vld [vmem:[%s384 + $0x2a0] sm:$0xff]
        %v471 = vld [vmem:[%s384 + $0x2a8] sm:$0xff]
        %v472 = vld [vmem:[%s384 + $0x2b0] sm:$0xff]
        %v473 = vld [vmem:[%s384 + $0x2b8] sm:$0xff]
        %v474 = vld [vmem:[%s384 + $0x2c0] sm:$0xff]
        %v475 = vld [vmem:[%s384 + $0x2c8] sm:$0xff]
        %v476 = vld [vmem:[%s384 + $0x2d0] sm:$0xff]
        %v477 = vld [vmem:[%s384 + $0x2d8] sm:$0xff]
        %v478 = vld [vmem:[%s384 + $0x2e0] sm:$0xff]
        %v479 = vld [vmem:[%s384 + $0x2e8] sm:$0xff]
        %v480 = vld [vmem:[%s384 + $0x2f0] sm:$0xff]
        %v481 = vld [vmem:[%s384 + $0x2f8] sm:$0xff]
        %v482 = vld [vmem:[%s1] sm:$0xff]
        %v483 = vld [vmem:[%s1 + $0x8] sm:$0xff]
        %v484 = vld [vmem:[%s1 + $0x10] sm:$0xff]
        %v485 = vld [vmem:[%s1 + $0x18] sm:$0x1]
        %vm486 = vcmask 203776
        %v488 = vsel %vm486, %v386, 0
        %v491 = vsel %vm486, %v387, 0
        %v494 = vsel %vm486, %v388, 0
        %v497 = vsel %vm486, %v389, 0
        %v500 = vsel %vm486, %v390, 0
        %v503 = vsel %vm486, %v391, 0
        %v506 = vsel %vm486, %v392, 0
        %v509 = vsel %vm486, %v393, 0
        %v512 = vsel %vm486, %v394, 0
        %v515 = vsel %vm486, %v395, 0
        %v518 = vsel %vm486, %v396, 0
        %v521 = vsel %vm486, %v397, 0
        %v524 = vsel %vm486, %v398, 0
        %v527 = vsel %vm486, %v399, 0
        %v530 = vsel %vm486, %v400, 0
        %v533 = vsel %vm486, %v401, 0
        %v536 = vsel %vm486, %v402, 0
        %v539 = vsel %vm486, %v403, 0
        %v542 = vsel %vm486, %v404, 0
        %v545 = vsel %vm486, %v405, 0
        %v548 = vsel %vm486, %v406, 0
        %v551 = vsel %vm486, %v407, 0
        %v554 = vsel %vm486, %v408, 0
        %v557 = vsel %vm486, %v409, 0
        %v560 = vsel %vm486, %v410, 0
        %v563 = vsel %vm486, %v411, 0
        %v566 = vsel %vm486, %v412, 0
        %v569 = vsel %vm486, %v413, 0
        %v572 = vsel %vm486, %v414, 0
        %v575 = vsel %vm486, %v415, 0
        %v578 = vsel %vm486, %v416, 0
        %v581 = vsel %vm486, %v417, 0
        %v584 = vsel %vm486, %v418, 0
        %v587 = vsel %vm486, %v419, 0
        %v590 = vsel %vm486, %v420, 0
        %v593 = vsel %vm486, %v421, 0
        %v596 = vsel %vm486, %v422, 0
        %v599 = vsel %vm486, %v423, 0
        %v602 = vsel %vm486, %v424, 0
        %v605 = vsel %vm486, %v425, 0
        %v608 = vsel %vm486, %v426, 0
        %v611 = vsel %vm486, %v427, 0
        %v614 = vsel %vm486, %v428, 0
        %v617 = vsel %vm486, %v429, 0
        %v620 = vsel %vm486, %v430, 0
        %v623 = vsel %vm486, %v431, 0
        %v626 = vsel %vm486, %v432, 0
        %v629 = vsel %vm486, %v433, 0
        %v632 = vsel %vm486, %v434, 0
        %v635 = vsel %vm486, %v435, 0
        %v638 = vsel %vm486, %v436, 0
        %v641 = vsel %vm486, %v437, 0
        %v644 = vsel %vm486, %v438, 0
        %v647 = vsel %vm486, %v439, 0
        %v650 = vsel %vm486, %v440, 0
        %v653 = vsel %vm486, %v441, 0
        %v656 = vsel %vm486, %v442, 0
        %v659 = vsel %vm486, %v443, 0
        %v662 = vsel %vm486, %v444, 0
        %v665 = vsel %vm486, %v445, 0
        %v668 = vsel %vm486, %v446, 0
        %v671 = vsel %vm486, %v447, 0
        %v674 = vsel %vm486, %v448, 0
        %v677 = vsel %vm486, %v449, 0
        %v680 = vsel %vm486, %v450, 0
        %v683 = vsel %vm486, %v451, 0
        %v686 = vsel %vm486, %v452, 0
        %v689 = vsel %vm486, %v453, 0
        %v692 = vsel %vm486, %v454, 0
        %v695 = vsel %vm486, %v455, 0
        %v698 = vsel %vm486, %v456, 0
        %v701 = vsel %vm486, %v457, 0
        %v704 = vsel %vm486, %v458, 0
        %v707 = vsel %vm486, %v459, 0
        %v710 = vsel %vm486, %v460, 0
        %v713 = vsel %vm486, %v461, 0
        %v716 = vsel %vm486, %v462, 0
        %v719 = vsel %vm486, %v463, 0
        %v722 = vsel %vm486, %v464, 0
        %v725 = vsel %vm486, %v465, 0
        %v728 = vsel %vm486, %v466, 0
        %v731 = vsel %vm486, %v467, 0
        %v734 = vsel %vm486, %v468, 0
        %v737 = vsel %vm486, %v469, 0
        %v740 = vsel %vm486, %v470, 0
        %v743 = vsel %vm486, %v471, 0
        %v746 = vsel %vm486, %v472, 0
        %v749 = vsel %vm486, %v473, 0
        %v752 = vsel %vm486, %v474, 0
        %v755 = vsel %vm486, %v475, 0
        %v758 = vsel %vm486, %v476, 0
        %v761 = vsel %vm486, %v477, 0
        %v764 = vsel %vm486, %v478, 0
        %v767 = vsel %vm486, %v479, 0
        %v770 = vsel %vm486, %v480, 0
        %v773 = vsel %vm486, %v481, 0
        %vm775 = vcmask 1040384
        %v777 = vsel %vm775, %v485, 0
        %779 = vmatprep.subr.mxu0 0.0
        %780 = vmatpush1.msra.mxu0 %v482
        %781 = vmatprep.subr.mxu0 0.0
        %782 = vmatpush1.msra.mxu0 %v483
        %783 = vmatprep.subr.mxu0 0.0
        %784 = vmatpush1.msra.mxu0 %v484
        %785 = vmatprep.subr.mxu0 0.0
        %786 = vmatpush1.msra.mxu0 %v777
        %787 = vmatprep.subr.mxu0 0.0
        %788 = vmatpush1.msra.mxu0 0.0
        %789 = vmatprep.subr.mxu0 0.0
        %790 = vmatpush1.msra.mxu0 0.0
        %791 = vmatprep.subr.mxu0 0.0
        %792 = vmatpush1.msra.mxu0 0.0
        %793 = vmatprep.subr.mxu0 0.0
        %794 = vmatpush1.msra.mxu0 0.0
        %795 = vmatprep.subr.mxu0 0.0
        %796 = vmatpush1.msra.mxu0 0.0
        %797 = vmatprep.subr.mxu0 0.0
        %798 = vmatpush1.msra.mxu0 0.0
        %799 = vmatprep.subr.mxu0 0.0
        %800 = vmatpush1.msra.mxu0 0.0
        %801 = vmatprep.subr.mxu0 0.0
        %802 = vmatpush1.msra.mxu0 0.0
        %803 = vmatprep.subr.mxu0 0.0
        %804 = vmatpush1.msra.mxu0 0.0
        %805 = vmatprep.subr.mxu0 0.0
        %806 = vmatpush1.msra.mxu0 0.0
        %807 = vmatprep.subr.mxu0 0.0
        %808 = vmatpush1.msra.mxu0 0.0
        %809 = vmatprep.subr.mxu0 0.0
        %810 = vmatpush1.msra.mxu0 0.0
        %811 = vmatprep.subr.mxu0 0.0
        %812 = vmatpush1.msra.mxu0 0.0
        %813 = vmatprep.subr.mxu0 0.0
        %814 = vmatpush1.msra.mxu0 0.0
        %815 = vmatprep.subr.mxu0 0.0
        %816 = vmatpush1.msra.mxu0 0.0
        %817 = vmatprep.subr.mxu0 0.0
        %818 = vmatpush1.msra.mxu0 0.0
        %819 = vmatprep.subr.mxu0 0.0
        %820 = vmatpush1.msra.mxu0 0.0
        %821 = vmatprep.subr.mxu0 0.0
        %822 = vmatpush1.msra.mxu0 0.0
        %823 = vmatprep.subr.mxu0 0.0
        %824 = vmatpush1.msra.mxu0 0.0
        %825 = vmatprep.subr.mxu0 0.0
        %826 = vmatpush1.msra.mxu0 0.0
        %827 = vmatprep.subr.mxu0 0.0
        %828 = vmatpush1.msra.mxu0 0.0
        %829 = vmatprep.subr.mxu0 0.0
        %830 = vmatpush1.msra.mxu0 0.0
        %831 = vmatprep.subr.mxu0 0.0
        %832 = vmatpush1.msra.mxu0 0.0
        %833 = vmatprep.subr.mxu0 0.0
        %834 = vmatpush1.msra.mxu0 0.0
        %835 = vmatprep.subr.mxu0 0.0
        %836 = vmatpush1.msra.mxu0 0.0
        %837 = vmatprep.subr.mxu0 0.0
        %838 = vmatpush1.msra.mxu0 0.0
        %839 = vmatprep.subr.mxu0 0.0
        %840 = vmatpush1.msra.mxu0 0.0
        %841 = vmatprep.subr.mxu0 0.0
        %842 = vmatpush1.msra.mxu0 0.0
        %843 = vmatprep.mubr.f32.mxu0 0.0
        %844 = vmatmul.mubr.f32.gmra.mrb[0].mxu0 %v488
        %v845 = vpop.f32.mrb[0].mxu0
        %v846 = vadd.f32 0.0, %v845
        %v847 = vpop.f32.mrb[0].mxu0
        %848 = vmatprep.mubr.f32.mxu0 0.0
        %849 = vmatmul.mubr.f32.gmra.mrb[0].mxu0 %v491
        %v850 = vpop.f32.mrb[0].mxu0
        %v851 = vadd.f32 0.0, %v850
        %v852 = vpop.f32.mrb[0].mxu0
        %853 = vmatprep.mubr.f32.mxu0 0.0
        %854 = vmatmul.mubr.f32.gmra.mrb[0].mxu0 %v494
        %v855 = vpop.f32.mrb[0].mxu0
        %v856 = vadd.f32 0.0, %v855
        %v857 = vpop.f32.mrb[0].mxu0
        %858 = vmatprep.mubr.f32.mxu0 0.0
        %859 = vmatmul.mubr.f32.gmra.mrb[0].mxu0 %v497
        %v860 = vpop.f32.mrb[0].mxu0
        %v861 = vadd.f32 0.0, %v860
        %v862 = vpop.f32.mrb[0].mxu0
        %863 = vmatprep.mubr.f32.mxu0 0.0
        %864 = vmatmul.mubr.f32.gmra.mrb[0].mxu0 %v500
        %v865 = vpop.f32.mrb[0].mxu0
        %v866 = vadd.f32 0.0, %v865
        %v867 = vpop.f32.mrb[0].mxu0
        %868 = vmatprep.mubr.f32.mxu0 0.0
        %869 = vmatmul.mubr.f32.gmra.mrb[0].mxu0 %v503
        %v870 = vpop.f32.mrb[0].mxu0
        %v871 = vadd.f32 0.0, %v870
        %v872 = vpop.f32.mrb[0].mxu0
        %873 = vmatprep.mubr.f32.mxu0 0.0
        %874 = vmatmul.mubr.f32.gmra.mrb[0].mxu0 %v506
        %v875 = vpop.f32.mrb[0].mxu0
        %v876 = vadd.f32 0.0, %v875
        %v877 = vpop.f32.mrb[0].mxu0
        %878 = vmatprep.mubr.f32.mxu0 0.0
        %879 = vmatmul.mubr.f32.gmra.mrb[0].mxu0 %v509
        %v880 = vpop.f32.mrb[0].mxu0
        %v881 = vadd.f32 0.0, %v880
        %v882 = vpop.f32.mrb[0].mxu0
        %883 = vmatprep.mubr.f32.mxu0 0.0
        %884 = vmatmul.mubr.f32.gmra.mrb[0].mxu0 %v512
        %v885 = vpop.f32.mrb[0].mxu0
        %v886 = vadd.f32 0.0, %v885
        %v887 = vpop.f32.mrb[0].mxu0
        %888 = vmatprep.mubr.f32.mxu0 0.0
        %889 = vmatmul.mubr.f32.gmra.mrb[0].mxu0 %v515
        %v890 = vpop.f32.mrb[0].mxu0
        %v891 = vadd.f32 0.0, %v890
        %v892 = vpop.f32.mrb[0].mxu0
        %893 = vmatprep.mubr.f32.mxu0 0.0
        %894 = vmatmul.mubr.f32.gmra.mrb[0].mxu0 %v518
        %v895 = vpop.f32.mrb[0].mxu0
        %v896 = vadd.f32 0.0, %v895
        %v897 = vpop.f32.mrb[0].mxu0
        %898 = vmatprep.mubr.f32.mxu0 0.0
        %899 = vmatmul.mubr.f32.gmra.mrb[0].mxu0 %v521
        %v900 = vpop.f32.mrb[0].mxu0
        %v901 = vadd.f32 0.0, %v900
        %v902 = vpop.f32.mrb[0].mxu0
        %903 = vmatprep.mubr.f32.mxu0 0.0
        %904 = vmatmul.mubr.f32.gmra.mrb[0].mxu0 %v524
        %v905 = vpop.f32.mrb[0].mxu0
        %v906 = vadd.f32 0.0, %v905
        %v907 = vpop.f32.mrb[0].mxu0
        %908 = vmatprep.mubr.f32.mxu0 0.0
        %909 = vmatmul.mubr.f32.gmra.mrb[0].mxu0 %v527
        %v910 = vpop.f32.mrb[0].mxu0
        %v911 = vadd.f32 0.0, %v910
        %v912 = vpop.f32.mrb[0].mxu0
        %913 = vmatprep.mubr.f32.mxu0 0.0
        %914 = vmatmul.mubr.f32.gmra.mrb[0].mxu0 %v530
        %v915 = vpop.f32.mrb[0].mxu0
        %v916 = vadd.f32 0.0, %v915
        %v917 = vpop.f32.mrb[0].mxu0
        %918 = vmatprep.mubr.f32.mxu0 0.0
        %919 = vmatmul.mubr.f32.gmra.mrb[0].mxu0 %v533
        %v920 = vpop.f32.mrb[0].mxu0
        %v921 = vadd.f32 0.0, %v920
        %v922 = vpop.f32.mrb[0].mxu0
        %923 = vmatprep.mubr.f32.mxu0 0.0
        %924 = vmatmul.mubr.f32.gmra.mrb[0].mxu0 %v536
        %v925 = vpop.f32.mrb[0].mxu0
        %v926 = vadd.f32 0.0, %v925
        %v927 = vpop.f32.mrb[0].mxu0
        %928 = vmatprep.mubr.f32.mxu0 0.0
        %929 = vmatmul.mubr.f32.gmra.mrb[0].mxu0 %v539
        %v930 = vpop.f32.mrb[0].mxu0
        %v931 = vadd.f32 0.0, %v930
        %v932 = vpop.f32.mrb[0].mxu0
        %933 = vmatprep.mubr.f32.mxu0 0.0
        %934 = vmatmul.mubr.f32.gmra.mrb[0].mxu0 %v542
        %v935 = vpop.f32.mrb[0].mxu0
        %v936 = vadd.f32 0.0, %v935
        %v937 = vpop.f32.mrb[0].mxu0
        %938 = vmatprep.mubr.f32.mxu0 0.0
        %939 = vmatmul.mubr.f32.gmra.mrb[0].mxu0 %v545
        %v940 = vpop.f32.mrb[0].mxu0
        %v941 = vadd.f32 0.0, %v940
        %v942 = vpop.f32.mrb[0].mxu0
        %943 = vmatprep.mubr.f32.mxu0 0.0
        %944 = vmatmul.mubr.f32.gmra.mrb[0].mxu0 %v548
        %v945 = vpop.f32.mrb[0].mxu0
        %v946 = vadd.f32 0.0, %v945
        %v947 = vpop.f32.mrb[0].mxu0
        %948 = vmatprep.mubr.f32.mxu0 0.0
        %949 = vmatmul.mubr.f32.gmra.mrb[0].mxu0 %v551
        %v950 = vpop.f32.mrb[0].mxu0
        %v951 = vadd.f32 0.0, %v950
        %v952 = vpop.f32.mrb[0].mxu0
        %953 = vmatprep.mubr.f32.mxu0 0.0
        %954 = vmatmul.mubr.f32.gmra.mrb[0].mxu0 %v554
        %v955 = vpop.f32.mrb[0].mxu0
        %v956 = vadd.f32 0.0, %v955
        %v957 = vpop.f32.mrb[0].mxu0
        %958 = vmatprep.mubr.f32.mxu0 0.0
        %959 = vmatmul.mubr.f32.gmra.mrb[0].mxu0 %v557
        %v960 = vpop.f32.mrb[0].mxu0
        %v961 = vadd.f32 0.0, %v960
        %v962 = vpop.f32.mrb[0].mxu0
        %963 = vmatprep.mubr.f32.mxu0 0.0
        %964 = vmatmul.mubr.f32.gmra.mrb[0].mxu0 %v560
        %v965 = vpop.f32.mrb[0].mxu0
        %v966 = vadd.f32 0.0, %v965
        %v967 = vpop.f32.mrb[0].mxu0
        %968 = vmatprep.mubr.f32.mxu0 0.0
        %969 = vmatmul.mubr.f32.gmra.mrb[0].mxu0 %v563
        %v970 = vpop.f32.mrb[0].mxu0
        %v971 = vadd.f32 0.0, %v970
        %v972 = vpop.f32.mrb[0].mxu0
        %973 = vmatprep.mubr.f32.mxu0 0.0
        %974 = vmatmul.mubr.f32.gmra.mrb[0].mxu0 %v566
        %v975 = vpop.f32.mrb[0].mxu0
        %v976 = vadd.f32 0.0, %v975
        %v977 = vpop.f32.mrb[0].mxu0
        %978 = vmatprep.mubr.f32.mxu0 0.0
        %979 = vmatmul.mubr.f32.gmra.mrb[0].mxu0 %v569
        %v980 = vpop.f32.mrb[0].mxu0
        %v981 = vadd.f32 0.0, %v980
        %v982 = vpop.f32.mrb[0].mxu0
        %983 = vmatprep.mubr.f32.mxu0 0.0
        %984 = vmatmul.mubr.f32.gmra.mrb[0].mxu0 %v572
        %v985 = vpop.f32.mrb[0].mxu0
        %v986 = vadd.f32 0.0, %v985
        %v987 = vpop.f32.mrb[0].mxu0
        %988 = vmatprep.mubr.f32.mxu0 0.0
        %989 = vmatmul.mubr.f32.gmra.mrb[0].mxu0 %v575
        %v990 = vpop.f32.mrb[0].mxu0
        %v991 = vadd.f32 0.0, %v990
        %v992 = vpop.f32.mrb[0].mxu0
        %993 = vmatprep.mubr.f32.mxu0 0.0
        %994 = vmatmul.mubr.f32.gmra.mrb[0].mxu0 %v578
        %v995 = vpop.f32.mrb[0].mxu0
        %v996 = vadd.f32 0.0, %v995
        %v997 = vpop.f32.mrb[0].mxu0
        %998 = vmatprep.mubr.f32.mxu0 0.0
        %999 = vmatmul.mubr.f32.gmra.mrb[0].mxu0 %v581
        %v1000 = vpop.f32.mrb[0].mxu0
        %v1001 = vadd.f32 0.0, %v1000
        %v1002 = vpop.f32.mrb[0].mxu0
        %1003 = vmatprep.mubr.f32.mxu0 0.0
        %1004 = vmatmul.mubr.f32.gmra.mrb[0].mxu0 %v584
        %v1005 = vpop.f32.mrb[0].mxu0
        %v1006 = vadd.f32 0.0, %v1005
        %v1007 = vpop.f32.mrb[0].mxu0
        %1008 = vmatprep.mubr.f32.mxu0 0.0
        %1009 = vmatmul.mubr.f32.gmra.mrb[0].mxu0 %v587
        %v1010 = vpop.f32.mrb[0].mxu0
        %v1011 = vadd.f32 0.0, %v1010
        %v1012 = vpop.f32.mrb[0].mxu0
        %1013 = vmatprep.mubr.f32.mxu0 0.0
        %1014 = vmatmul.mubr.f32.gmra.mrb[0].mxu0 %v590
        %v1015 = vpop.f32.mrb[0].mxu0
        %v1016 = vadd.f32 0.0, %v1015
        %v1017 = vpop.f32.mrb[0].mxu0
        %1018 = vmatprep.mubr.f32.mxu0 0.0
        %1019 = vmatmul.mubr.f32.gmra.mrb[0].mxu0 %v593
        %v1020 = vpop.f32.mrb[0].mxu0
        %v1021 = vadd.f32 0.0, %v1020
        %v1022 = vpop.f32.mrb[0].mxu0
        %1023 = vmatprep.mubr.f32.mxu0 0.0
        %1024 = vmatmul.mubr.f32.gmra.mrb[0].mxu0 %v596
        %v1025 = vpop.f32.mrb[0].mxu0
        %v1026 = vadd.f32 0.0, %v1025
        %v1027 = vpop.f32.mrb[0].mxu0
        %1028 = vmatprep.mubr.f32.mxu0 0.0
        %1029 = vmatmul.mubr.f32.gmra.mrb[0].mxu0 %v599
        %v1030 = vpop.f32.mrb[0].mxu0
        %v1031 = vadd.f32 0.0, %v1030
        %v1032 = vpop.f32.mrb[0].mxu0
        %1033 = vmatprep.mubr.f32.mxu0 0.0
        %1034 = vmatmul.mubr.f32.gmra.mrb[0].mxu0 %v602
        %v1035 = vpop.f32.mrb[0].mxu0
        %v1036 = vadd.f32 0.0, %v1035
        %v1037 = vpop.f32.mrb[0].mxu0
        %1038 = vmatprep.mubr.f32.mxu0 0.0
        %1039 = vmatmul.mubr.f32.gmra.mrb[0].mxu0 %v605
        %v1040 = vpop.f32.mrb[0].mxu0
        %v1041 = vadd.f32 0.0, %v1040
        %v1042 = vpop.f32.mrb[0].mxu0
        %1043 = vmatprep.mubr.f32.mxu0 0.0
        %1044 = vmatmul.mubr.f32.gmra.mrb[0].mxu0 %v608
        %v1045 = vpop.f32.mrb[0].mxu0
        %v1046 = vadd.f32 0.0, %v1045
        %v1047 = vpop.f32.mrb[0].mxu0
        %1048 = vmatprep.mubr.f32.mxu0 0.0
        %1049 = vmatmul.mubr.f32.gmra.mrb[0].mxu0 %v611
        %v1050 = vpop.f32.mrb[0].mxu0
        %v1051 = vadd.f32 0.0, %v1050
        %v1052 = vpop.f32.mrb[0].mxu0
        %1053 = vmatprep.mubr.f32.mxu0 0.0
        %1054 = vmatmul.mubr.f32.gmra.mrb[0].mxu0 %v614
        %v1055 = vpop.f32.mrb[0].mxu0
        %v1056 = vadd.f32 0.0, %v1055
        %v1057 = vpop.f32.mrb[0].mxu0
        %1058 = vmatprep.mubr.f32.mxu0 0.0
        %1059 = vmatmul.mubr.f32.gmra.mrb[0].mxu0 %v617
        %v1060 = vpop.f32.mrb[0].mxu0
        %v1061 = vadd.f32 0.0, %v1060
        %v1062 = vpop.f32.mrb[0].mxu0
        %1063 = vmatprep.mubr.f32.mxu0 0.0
        %1064 = vmatmul.mubr.f32.gmra.mrb[0].mxu0 %v620
        %v1065 = vpop.f32.mrb[0].mxu0
        %v1066 = vadd.f32 0.0, %v1065
        %v1067 = vpop.f32.mrb[0].mxu0
        %1068 = vmatprep.mubr.f32.mxu0 0.0
        %1069 = vmatmul.mubr.f32.gmra.mrb[0].mxu0 %v623
        %v1070 = vpop.f32.mrb[0].mxu0
        %v1071 = vadd.f32 0.0, %v1070
        %v1072 = vpop.f32.mrb[0].mxu0
        %1073 = vmatprep.mubr.f32.mxu0 0.0
        %1074 = vmatmul.mubr.f32.gmra.mrb[0].mxu0 %v626
        %v1075 = vpop.f32.mrb[0].mxu0
        %v1076 = vadd.f32 0.0, %v1075
        %v1077 = vpop.f32.mrb[0].mxu0
        %1078 = vmatprep.mubr.f32.mxu0 0.0
        %1079 = vmatmul.mubr.f32.gmra.mrb[0].mxu0 %v629
        %v1080 = vpop.f32.mrb[0].mxu0
        %v1081 = vadd.f32 0.0, %v1080
        %v1082 = vpop.f32.mrb[0].mxu0
        %1083 = vmatprep.mubr.f32.mxu0 0.0
        %1084 = vmatmul.mubr.f32.gmra.mrb[0].mxu0 %v632
        %v1085 = vpop.f32.mrb[0].mxu0
        %v1086 = vadd.f32 0.0, %v1085
        %v1087 = vpop.f32.mrb[0].mxu0
        %1088 = vmatprep.mubr.f32.mxu0 0.0
        %1089 = vmatmul.mubr.f32.gmra.mrb[0].mxu0 %v635
        %v1090 = vpop.f32.mrb[0].mxu0
        %v1091 = vadd.f32 0.0, %v1090
        %v1092 = vpop.f32.mrb[0].mxu0
        %1093 = vmatprep.mubr.f32.mxu0 0.0
        %1094 = vmatmul.mubr.f32.gmra.mrb[0].mxu0 %v638
        %v1095 = vpop.f32.mrb[0].mxu0
        %v1096 = vadd.f32 0.0, %v1095
        %v1097 = vpop.f32.mrb[0].mxu0
        %1098 = vmatprep.mubr.f32.mxu0 0.0
        %1099 = vmatmul.mubr.f32.gmra.mrb[0].mxu0 %v641
        %v1100 = vpop.f32.mrb[0].mxu0
        %v1101 = vadd.f32 0.0, %v1100
        %v1102 = vpop.f32.mrb[0].mxu0
        %1103 = vmatprep.mubr.f32.mxu0 0.0
        %1104 = vmatmul.mubr.f32.gmra.mrb[0].mxu0 %v644
        %v1105 = vpop.f32.mrb[0].mxu0
        %v1106 = vadd.f32 0.0, %v1105
        %v1107 = vpop.f32.mrb[0].mxu0
        %1108 = vmatprep.mubr.f32.mxu0 0.0
        %1109 = vmatmul.mubr.f32.gmra.mrb[0].mxu0 %v647
        %v1110 = vpop.f32.mrb[0].mxu0
        %v1111 = vadd.f32 0.0, %v1110
        %v1112 = vpop.f32.mrb[0].mxu0
        %1113 = vmatprep.mubr.f32.mxu0 0.0
        %1114 = vmatmul.mubr.f32.gmra.mrb[0].mxu0 %v650
        %v1115 = vpop.f32.mrb[0].mxu0
        %v1116 = vadd.f32 0.0, %v1115
        %v1117 = vpop.f32.mrb[0].mxu0
        %1118 = vmatprep.mubr.f32.mxu0 0.0
        %1119 = vmatmul.mubr.f32.gmra.mrb[0].mxu0 %v653
        %v1120 = vpop.f32.mrb[0].mxu0
        %v1121 = vadd.f32 0.0, %v1120
        %v1122 = vpop.f32.mrb[0].mxu0
        %1123 = vmatprep.mubr.f32.mxu0 0.0
        %1124 = vmatmul.mubr.f32.gmra.mrb[0].mxu0 %v656
        %v1125 = vpop.f32.mrb[0].mxu0
        %v1126 = vadd.f32 0.0, %v1125
        %v1127 = vpop.f32.mrb[0].mxu0
        %1128 = vmatprep.mubr.f32.mxu0 0.0
        %1129 = vmatmul.mubr.f32.gmra.mrb[0].mxu0 %v659
        %v1130 = vpop.f32.mrb[0].mxu0
        %v1131 = vadd.f32 0.0, %v1130
        %v1132 = vpop.f32.mrb[0].mxu0
        %1133 = vmatprep.mubr.f32.mxu0 0.0
        %1134 = vmatmul.mubr.f32.gmra.mrb[0].mxu0 %v662
        %v1135 = vpop.f32.mrb[0].mxu0
        %v1136 = vadd.f32 0.0, %v1135
        %v1137 = vpop.f32.mrb[0].mxu0
        %1138 = vmatprep.mubr.f32.mxu0 0.0
        %1139 = vmatmul.mubr.f32.gmra.mrb[0].mxu0 %v665
        %v1140 = vpop.f32.mrb[0].mxu0
        %v1141 = vadd.f32 0.0, %v1140
        %v1142 = vpop.f32.mrb[0].mxu0
        %1143 = vmatprep.mubr.f32.mxu0 0.0
        %1144 = vmatmul.mubr.f32.gmra.mrb[0].mxu0 %v668
        %v1145 = vpop.f32.mrb[0].mxu0
        %v1146 = vadd.f32 0.0, %v1145
        %v1147 = vpop.f32.mrb[0].mxu0
        %1148 = vmatprep.mubr.f32.mxu0 0.0
        %1149 = vmatmul.mubr.f32.gmra.mrb[0].mxu0 %v671
        %v1150 = vpop.f32.mrb[0].mxu0
        %v1151 = vadd.f32 0.0, %v1150
        %v1152 = vpop.f32.mrb[0].mxu0
        %1153 = vmatprep.mubr.f32.mxu0 0.0
        %1154 = vmatmul.mubr.f32.gmra.mrb[0].mxu0 %v674
        %v1155 = vpop.f32.mrb[0].mxu0
        %v1156 = vadd.f32 0.0, %v1155
        %v1157 = vpop.f32.mrb[0].mxu0
        %1158 = vmatprep.mubr.f32.mxu0 0.0
        %1159 = vmatmul.mubr.f32.gmra.mrb[0].mxu0 %v677
        %v1160 = vpop.f32.mrb[0].mxu0
        %v1161 = vadd.f32 0.0, %v1160
        %v1162 = vpop.f32.mrb[0].mxu0
        %1163 = vmatprep.mubr.f32.mxu0 0.0
        %1164 = vmatmul.mubr.f32.gmra.mrb[0].mxu0 %v680
        %v1165 = vpop.f32.mrb[0].mxu0
        %v1166 = vadd.f32 0.0, %v1165
        %v1167 = vpop.f32.mrb[0].mxu0
        %1168 = vmatprep.mubr.f32.mxu0 0.0
        %1169 = vmatmul.mubr.f32.gmra.mrb[0].mxu0 %v683
        %v1170 = vpop.f32.mrb[0].mxu0
        %v1171 = vadd.f32 0.0, %v1170
        %v1172 = vpop.f32.mrb[0].mxu0
        %1173 = vmatprep.mubr.f32.mxu0 0.0
        %1174 = vmatmul.mubr.f32.gmra.mrb[0].mxu0 %v686
        %v1175 = vpop.f32.mrb[0].mxu0
        %v1176 = vadd.f32 0.0, %v1175
        %v1177 = vpop.f32.mrb[0].mxu0
        %1178 = vmatprep.mubr.f32.mxu0 0.0
        %1179 = vmatmul.mubr.f32.gmra.mrb[0].mxu0 %v689
        %v1180 = vpop.f32.mrb[0].mxu0
        %v1181 = vadd.f32 0.0, %v1180
        %v1182 = vpop.f32.mrb[0].mxu0
        %1183 = vmatprep.mubr.f32.mxu0 0.0
        %1184 = vmatmul.mubr.f32.gmra.mrb[0].mxu0 %v692
        %v1185 = vpop.f32.mrb[0].mxu0
        %v1186 = vadd.f32 0.0, %v1185
        %v1187 = vpop.f32.mrb[0].mxu0
        %1188 = vmatprep.mubr.f32.mxu0 0.0
        %1189 = vmatmul.mubr.f32.gmra.mrb[0].mxu0 %v695
        %v1190 = vpop.f32.mrb[0].mxu0
        %v1191 = vadd.f32 0.0, %v1190
        %v1192 = vpop.f32.mrb[0].mxu0
        %1193 = vmatprep.mubr.f32.mxu0 0.0
        %1194 = vmatmul.mubr.f32.gmra.mrb[0].mxu0 %v698
        %v1195 = vpop.f32.mrb[0].mxu0
        %v1196 = vadd.f32 0.0, %v1195
        %v1197 = vpop.f32.mrb[0].mxu0
        %1198 = vmatprep.mubr.f32.mxu0 0.0
        %1199 = vmatmul.mubr.f32.gmra.mrb[0].mxu0 %v701
        %v1200 = vpop.f32.mrb[0].mxu0
        %v1201 = vadd.f32 0.0, %v1200
        %v1202 = vpop.f32.mrb[0].mxu0
        %1203 = vmatprep.mubr.f32.mxu0 0.0
        %1204 = vmatmul.mubr.f32.gmra.mrb[0].mxu0 %v704
        %v1205 = vpop.f32.mrb[0].mxu0
        %v1206 = vadd.f32 0.0, %v1205
        %v1207 = vpop.f32.mrb[0].mxu0
        %1208 = vmatprep.mubr.f32.mxu0 0.0
        %1209 = vmatmul.mubr.f32.gmra.mrb[0].mxu0 %v707
        %v1210 = vpop.f32.mrb[0].mxu0
        %v1211 = vadd.f32 0.0, %v1210
        %v1212 = vpop.f32.mrb[0].mxu0
        %1213 = vmatprep.mubr.f32.mxu0 0.0
        %1214 = vmatmul.mubr.f32.gmra.mrb[0].mxu0 %v710
        %v1215 = vpop.f32.mrb[0].mxu0
        %v1216 = vadd.f32 0.0, %v1215
        %v1217 = vpop.f32.mrb[0].mxu0
        %1218 = vmatprep.mubr.f32.mxu0 0.0
        %1219 = vmatmul.mubr.f32.gmra.mrb[0].mxu0 %v713
        %v1220 = vpop.f32.mrb[0].mxu0
        %v1221 = vadd.f32 0.0, %v1220
        %v1222 = vpop.f32.mrb[0].mxu0
        %1223 = vmatprep.mubr.f32.mxu0 0.0
        %1224 = vmatmul.mubr.f32.gmra.mrb[0].mxu0 %v716
        %v1225 = vpop.f32.mrb[0].mxu0
        %v1226 = vadd.f32 0.0, %v1225
        %v1227 = vpop.f32.mrb[0].mxu0
        %1228 = vmatprep.mubr.f32.mxu0 0.0
        %1229 = vmatmul.mubr.f32.gmra.mrb[0].mxu0 %v719
        %v1230 = vpop.f32.mrb[0].mxu0
        %v1231 = vadd.f32 0.0, %v1230
        %v1232 = vpop.f32.mrb[0].mxu0
        %1233 = vmatprep.mubr.f32.mxu0 0.0
        %1234 = vmatmul.mubr.f32.gmra.mrb[0].mxu0 %v722
        %v1235 = vpop.f32.mrb[0].mxu0
        %v1236 = vadd.f32 0.0, %v1235
        %v1237 = vpop.f32.mrb[0].mxu0
        %1238 = vmatprep.mubr.f32.mxu0 0.0
        %1239 = vmatmul.mubr.f32.gmra.mrb[0].mxu0 %v725
        %v1240 = vpop.f32.mrb[0].mxu0
        %v1241 = vadd.f32 0.0, %v1240
        %v1242 = vpop.f32.mrb[0].mxu0
        %1243 = vmatprep.mubr.f32.mxu0 0.0
        %1244 = vmatmul.mubr.f32.gmra.mrb[0].mxu0 %v728
        %v1245 = vpop.f32.mrb[0].mxu0
        %v1246 = vadd.f32 0.0, %v1245
        %v1247 = vpop.f32.mrb[0].mxu0
        %1248 = vmatprep.mubr.f32.mxu0 0.0
        %1249 = vmatmul.mubr.f32.gmra.mrb[0].mxu0 %v731
        %v1250 = vpop.f32.mrb[0].mxu0
        %v1251 = vadd.f32 0.0, %v1250
        %v1252 = vpop.f32.mrb[0].mxu0
        %1253 = vmatprep.mubr.f32.mxu0 0.0
        %1254 = vmatmul.mubr.f32.gmra.mrb[0].mxu0 %v734
        %v1255 = vpop.f32.mrb[0].mxu0
        %v1256 = vadd.f32 0.0, %v1255
        %v1257 = vpop.f32.mrb[0].mxu0
        %1258 = vmatprep.mubr.f32.mxu0 0.0
        %1259 = vmatmul.mubr.f32.gmra.mrb[0].mxu0 %v737
        %v1260 = vpop.f32.mrb[0].mxu0
        %v1261 = vadd.f32 0.0, %v1260
        %v1262 = vpop.f32.mrb[0].mxu0
        %1263 = vmatprep.mubr.f32.mxu0 0.0
        %1264 = vmatmul.mubr.f32.gmra.mrb[0].mxu0 %v740
        %v1265 = vpop.f32.mrb[0].mxu0
        %v1266 = vadd.f32 0.0, %v1265
        %v1267 = vpop.f32.mrb[0].mxu0
        %1268 = vmatprep.mubr.f32.mxu0 0.0
        %1269 = vmatmul.mubr.f32.gmra.mrb[0].mxu0 %v743
        %v1270 = vpop.f32.mrb[0].mxu0
        %v1271 = vadd.f32 0.0, %v1270
        %v1272 = vpop.f32.mrb[0].mxu0
        %1273 = vmatprep.mubr.f32.mxu0 0.0
        %1274 = vmatmul.mubr.f32.gmra.mrb[0].mxu0 %v746
        %v1275 = vpop.f32.mrb[0].mxu0
        %v1276 = vadd.f32 0.0, %v1275
        %v1277 = vpop.f32.mrb[0].mxu0
        %1278 = vmatprep.mubr.f32.mxu0 0.0
        %1279 = vmatmul.mubr.f32.gmra.mrb[0].mxu0 %v749
        %v1280 = vpop.f32.mrb[0].mxu0
        %v1281 = vadd.f32 0.0, %v1280
        %v1282 = vpop.f32.mrb[0].mxu0
        %1283 = vmatprep.mubr.f32.mxu0 0.0
        %1284 = vmatmul.mubr.f32.gmra.mrb[0].mxu0 %v752
        %v1285 = vpop.f32.mrb[0].mxu0
        %v1286 = vadd.f32 0.0, %v1285
        %v1287 = vpop.f32.mrb[0].mxu0
        %1288 = vmatprep.mubr.f32.mxu0 0.0
        %1289 = vmatmul.mubr.f32.gmra.mrb[0].mxu0 %v755
        %v1290 = vpop.f32.mrb[0].mxu0
        %v1291 = vadd.f32 0.0, %v1290
        %v1292 = vpop.f32.mrb[0].mxu0
        %1293 = vmatprep.mubr.f32.mxu0 0.0
        %1294 = vmatmul.mubr.f32.gmra.mrb[0].mxu0 %v758
        %v1295 = vpop.f32.mrb[0].mxu0
        %v1296 = vadd.f32 0.0, %v1295
        %v1297 = vpop.f32.mrb[0].mxu0
        %1298 = vmatprep.mubr.f32.mxu0 0.0
        %1299 = vmatmul.mubr.f32.gmra.mrb[0].mxu0 %v761
        %v1300 = vpop.f32.mrb[0].mxu0
        %v1301 = vadd.f32 0.0, %v1300
        %v1302 = vpop.f32.mrb[0].mxu0
        %1303 = vmatprep.mubr.f32.mxu0 0.0
        %1304 = vmatmul.mubr.f32.gmra.mrb[0].mxu0 %v764
        %v1305 = vpop.f32.mrb[0].mxu0
        %v1306 = vadd.f32 0.0, %v1305
        %v1307 = vpop.f32.mrb[0].mxu0
        %1308 = vmatprep.mubr.f32.mxu0 0.0
        %1309 = vmatmul.mubr.f32.gmra.mrb[0].mxu0 %v767
        %v1310 = vpop.f32.mrb[0].mxu0
        %v1311 = vadd.f32 0.0, %v1310
        %v1312 = vpop.f32.mrb[0].mxu0
        %1313 = vmatprep.mubr.f32.mxu0 0.0
        %1314 = vmatmul.mubr.f32.gmra.mrb[0].mxu0 %v770
        %v1315 = vpop.f32.mrb[0].mxu0
        %v1316 = vadd.f32 0.0, %v1315
        %v1317 = vpop.f32.mrb[0].mxu0
        %1318 = vmatprep.mubr.f32.mxu0 0.0
        %1319 = vmatmul.mubr.f32.gmra.mrb[0].mxu0 %v773
        %v1320 = vpop.f32.mrb[0].mxu0
        %v1321 = vadd.f32 0.0, %v1320
        %v1322 = vpop.f32.mrb[0].mxu0
        %1323 = vdwg.mxu0
        %v1324 = vmax.f32 %v846, %v966
        %v1325 = vmax.f32 %v851, %v971
        %v1326 = vmax.f32 %v856, %v976
        %v1327 = vmax.f32 %v861, %v981
        %v1328 = vmax.f32 %v866, %v986
        %v1329 = vmax.f32 %v871, %v991
        %v1330 = vmax.f32 %v876, %v996
        %v1331 = vmax.f32 %v881, %v1001
        %v1332 = vmax.f32 %v886, %v1006
        %v1333 = vmax.f32 %v891, %v1011
        %v1334 = vmax.f32 %v896, %v1016
        %v1335 = vmax.f32 %v901, %v1021
        %v1336 = vmax.f32 %v906, %v1026
        %v1337 = vmax.f32 %v911, %v1031
        %v1338 = vmax.f32 %v916, %v1036
        %v1339 = vmax.f32 %v921, %v1041
        %v1340 = vmax.f32 %v926, %v1046
        %v1341 = vmax.f32 %v931, %v1051
        %v1342 = vmax.f32 %v936, %v1056
        %v1343 = vmax.f32 %v941, %v1061
        %v1344 = vmax.f32 %v946, %v1066
        %v1345 = vmax.f32 %v951, %v1071
        %v1346 = vmax.f32 %v956, %v1076
        %v1347 = vmax.f32 %v961, %v1081
        %v1348 = vmax.f32 %v1086, %v1206
        %v1349 = vmax.f32 %v1091, %v1211
        %v1350 = vmax.f32 %v1096, %v1216
        %v1351 = vmax.f32 %v1101, %v1221
        %v1352 = vmax.f32 %v1106, %v1226
        %v1353 = vmax.f32 %v1111, %v1231
        %v1354 = vmax.f32 %v1116, %v1236
        %v1355 = vmax.f32 %v1121, %v1241
        %v1356 = vmax.f32 %v1126, %v1246
        %v1357 = vmax.f32 %v1131, %v1251
        %v1358 = vmax.f32 %v1136, %v1256
        %v1359 = vmax.f32 %v1141, %v1261
        %v1360 = vmax.f32 %v1146, %v1266
        %v1361 = vmax.f32 %v1151, %v1271
        %v1362 = vmax.f32 %v1156, %v1276
        %v1363 = vmax.f32 %v1161, %v1281
        %v1364 = vmax.f32 %v1166, %v1286
        %v1365 = vmax.f32 %v1171, %v1291
        %v1366 = vmax.f32 %v1176, %v1296
        %v1367 = vmax.f32 %v1181, %v1301
        %v1368 = vmax.f32 %v1186, %v1306
        %v1369 = vmax.f32 %v1191, %v1311
        %v1370 = vmax.f32 %v1196, %v1316
        %v1371 = vmax.f32 %v1201, %v1321
        %v1372 = vmax.f32 %v1324, %v1348
        %v1373 = vmax.f32 %v1325, %v1349
        %v1374 = vmax.f32 %v1326, %v1350
        %v1375 = vmax.f32 %v1327, %v1351
        %v1376 = vmax.f32 %v1328, %v1352
        %v1377 = vmax.f32 %v1329, %v1353
        %v1378 = vmax.f32 %v1330, %v1354
        %v1379 = vmax.f32 %v1331, %v1355
        %v1380 = vmax.f32 %v1332, %v1356
        %v1381 = vmax.f32 %v1333, %v1357
        %v1382 = vmax.f32 %v1334, %v1358
        %v1383 = vmax.f32 %v1335, %v1359
        %v1384 = vmax.f32 %v1336, %v1360
        %v1385 = vmax.f32 %v1337, %v1361
        %v1386 = vmax.f32 %v1338, %v1362
        %v1387 = vmax.f32 %v1339, %v1363
        %v1388 = vmax.f32 %v1340, %v1364
        %v1389 = vmax.f32 %v1341, %v1365
        %v1390 = vmax.f32 %v1342, %v1366
        %v1391 = vmax.f32 %v1343, %v1367
        %v1392 = vmax.f32 %v1344, %v1368
        %v1393 = vmax.f32 %v1345, %v1369
        %v1394 = vmax.f32 %v1346, %v1370
        %v1395 = vmax.f32 %v1347, %v1371
        %v1396 = vld [vmem:[%s2] sm:$0x1]
        %v1398 = vlaneseq
        %v1399 = vshrl.u32 %v1398, 7
        %v1400 = vsub.s32 0, %v1399
        %v1401 = vrot.slane %v1396, %v1400
        %v1403 = vadd.f32 %v1372, %v1401
        %v1404 = vadd.f32 %v1373, %v1401
        %v1405 = vadd.f32 %v1374, %v1401
        %v1406 = vadd.f32 %v1375, %v1401
        %v1407 = vadd.f32 %v1376, %v1401
        %v1408 = vadd.f32 %v1377, %v1401
        %v1409 = vadd.f32 %v1378, %v1401
        %v1410 = vadd.f32 %v1379, %v1401
        %v1411 = vadd.f32 %v1380, %v1401
        %v1412 = vadd.f32 %v1381, %v1401
        %v1413 = vadd.f32 %v1382, %v1401
        %v1414 = vadd.f32 %v1383, %v1401
        %v1415 = vadd.f32 %v1384, %v1401
        %v1416 = vadd.f32 %v1385, %v1401
        %v1417 = vadd.f32 %v1386, %v1401
        %v1418 = vadd.f32 %v1387, %v1401
        %v1419 = vadd.f32 %v1388, %v1401
        %v1420 = vadd.f32 %v1389, %v1401
        %v1421 = vadd.f32 %v1390, %v1401
        %v1422 = vadd.f32 %v1391, %v1401
        %v1423 = vadd.f32 %v1392, %v1401
        %v1424 = vadd.f32 %v1393, %v1401
        %v1425 = vadd.f32 %v1394, %v1401
        %v1426 = vadd.f32 %v1395, %v1401
        %v1427 = vmax.f32 %v1403, 0.0
        %v1428 = vmax.f32 %v1404, 0.0
        %v1429 = vmax.f32 %v1405, 0.0
        %v1430 = vmax.f32 %v1406, 0.0
        %v1431 = vmax.f32 %v1407, 0.0
        %v1432 = vmax.f32 %v1408, 0.0
        %v1433 = vmax.f32 %v1409, 0.0
        %v1434 = vmax.f32 %v1410, 0.0
        %v1435 = vmax.f32 %v1411, 0.0
        %v1436 = vmax.f32 %v1412, 0.0
        %v1437 = vmax.f32 %v1413, 0.0
        %v1438 = vmax.f32 %v1414, 0.0
        %v1439 = vmax.f32 %v1415, 0.0
        %v1440 = vmax.f32 %v1416, 0.0
        %v1441 = vmax.f32 %v1417, 0.0
        %v1442 = vmax.f32 %v1418, 0.0
        %v1443 = vmax.f32 %v1419, 0.0
        %v1444 = vmax.f32 %v1420, 0.0
        %v1445 = vmax.f32 %v1421, 0.0
        %v1446 = vmax.f32 %v1422, 0.0
        %v1447 = vmax.f32 %v1423, 0.0
        %v1448 = vmax.f32 %v1424, 0.0
        %v1449 = vmax.f32 %v1425, 0.0
        %v1450 = vmax.f32 %v1426, 0.0
        %vm1451 = vcmask 31744
        %1452 = vst.msk [vmem:[#allocation2] sm:$0xff] %vm1451, %v1427
        %1453 = vst.msk [vmem:[#allocation2 + $0x8] sm:$0xff] %vm1451, %v1428
        %1454 = vst.msk [vmem:[#allocation2 + $0x10] sm:$0xff] %vm1451, %v1429
        %1455 = vst.msk [vmem:[#allocation2 + $0x18] sm:$0xff] %vm1451, %v1430
        %1456 = vst.msk [vmem:[#allocation2 + $0x20] sm:$0xff] %vm1451, %v1431
        %1457 = vst.msk [vmem:[#allocation2 + $0x28] sm:$0xff] %vm1451, %v1432
        %1458 = vst.msk [vmem:[#allocation2 + $0x30] sm:$0xff] %vm1451, %v1433
        %1459 = vst.msk [vmem:[#allocation2 + $0x38] sm:$0xff] %vm1451, %v1434
        %1460 = vst.msk [vmem:[#allocation2 + $0x40] sm:$0xff] %vm1451, %v1435
        %1461 = vst.msk [vmem:[#allocation2 + $0x48] sm:$0xff] %vm1451, %v1436
        %1462 = vst.msk [vmem:[#allocation2 + $0x50] sm:$0xff] %vm1451, %v1437
        %1463 = vst.msk [vmem:[#allocation2 + $0x58] sm:$0xff] %vm1451, %v1438
        %1464 = vst.msk [vmem:[#allocation2 + $0x60] sm:$0xff] %vm1451, %v1439
        %1465 = vst.msk [vmem:[#allocation2 + $0x68] sm:$0xff] %vm1451, %v1440
        %1466 = vst.msk [vmem:[#allocation2 + $0x70] sm:$0xff] %vm1451, %v1441
        %1467 = vst.msk [vmem:[#allocation2 + $0x78] sm:$0xff] %vm1451, %v1442
        %1468 = vst.msk [vmem:[#allocation2 + $0x80] sm:$0xff] %vm1451, %v1443
        %1469 = vst.msk [vmem:[#allocation2 + $0x88] sm:$0xff] %vm1451, %v1444
        %1470 = vst.msk [vmem:[#allocation2 + $0x90] sm:$0xff] %vm1451, %v1445
        %1471 = vst.msk [vmem:[#allocation2 + $0x98] sm:$0xff] %vm1451, %v1446
        %1472 = vst.msk [vmem:[#allocation2 + $0xa0] sm:$0xff] %vm1451, %v1447
        %1473 = vst.msk [vmem:[#allocation2 + $0xa8] sm:$0xff] %vm1451, %v1448
        %1474 = vst.msk [vmem:[#allocation2 + $0xb0] sm:$0xff] %vm1451, %v1449
        %1475 = vst.msk [vmem:[#allocation2 + $0xb8] sm:$0xff] %vm1451, %v1450
        %v1476 = vld [vmem:[#allocation2] sm:$0xff]
        %v1477 = vld [vmem:[#allocation2 + $0x10] sm:$0xff]
        %v1478 = vld [vmem:[#allocation2 + $0x20] sm:$0xff]
        %v1479 = vld [vmem:[#allocation2 + $0x30] sm:$0xff]
        %v1480 = vld [vmem:[#allocation2 + $0x40] sm:$0xff]
        %v1481 = vld [vmem:[#allocation2 + $0x50] sm:$0xff]
        %v1482 = vld [vmem:[#allocation2 + $0x60] sm:$0xff]
        %v1483 = vld [vmem:[#allocation2 + $0x70] sm:$0xff]
        %1484 = vst.msk [vmem:[#allocation3] sm:$0xff] %vm1451, %v1476
        %1485 = vst.msk [vmem:[#allocation3 + $0x8] sm:$0xff] %vm1451, %v1477
        %1486 = vst.msk [vmem:[#allocation3 + $0x10] sm:$0xff] %vm1451, %v1478
        %1487 = vst.msk [vmem:[#allocation3 + $0x18] sm:$0xff] %vm1451, %v1479
        %1488 = vst.msk [vmem:[#allocation3 + $0x20] sm:$0xff] %vm1451, %v1480
        %1489 = vst.msk [vmem:[#allocation3 + $0x28] sm:$0xff] %vm1451, %v1481
        %1490 = vst.msk [vmem:[#allocation3 + $0x30] sm:$0xff] %vm1451, %v1482
        %1491 = vst.msk [vmem:[#allocation3 + $0x38] sm:$0xff] %vm1451, %v1483
        %v1492 = vld [vmem:[#allocation2 + $0x1] sm:$0xff]
        %v1493 = vld [vmem:[#allocation2 + $0x11] sm:$0xff]
        %v1494 = vld [vmem:[#allocation2 + $0x21] sm:$0xff]
        %v1495 = vld [vmem:[#allocation2 + $0x31] sm:$0xff]
        %v1496 = vld [vmem:[#allocation2 + $0x41] sm:$0xff]
        %v1497 = vld [vmem:[#allocation2 + $0x51] sm:$0xff]
        %v1498 = vld [vmem:[#allocation2 + $0x61] sm:$0xff]
        %v1499 = vld [vmem:[#allocation2 + $0x71] sm:$0xff]
        %1508 = vrot.lane.b32.xlu0 %v1492, 4
        %v1509 = vpop.permute.xlu0 %1508
        %1510 = vrot.lane.b32.xlu0 %v1493, 4
        %v1511 = vpop.permute.xlu0 %1510
        %1512 = vrot.lane.b32.xlu0 %v1494, 4
        %v1513 = vpop.permute.xlu0 %1512
        %1514 = vrot.lane.b32.xlu0 %v1495, 4
        %v1515 = vpop.permute.xlu0 %1514
        %1516 = vrot.lane.b32.xlu0 %v1496, 4
        %v1517 = vpop.permute.xlu0 %1516
        %1518 = vrot.lane.b32.xlu0 %v1497, 4
        %v1519 = vpop.permute.xlu0 %1518
        %1520 = vrot.lane.b32.xlu0 %v1498, 4
        %v1521 = vpop.permute.xlu0 %1520
        %1522 = vrot.lane.b32.xlu0 %v1499, 4
        %v1523 = vpop.permute.xlu0 %1522
        %vm1532 = vcmask 64544
        %1533 = vst.msk [vmem:[#allocation3] sm:$0xff] %vm1532, %v1509
        %1534 = vst.msk [vmem:[#allocation3 + $0x8] sm:$0xff] %vm1532, %v1511
        %1535 = vst.msk [vmem:[#allocation3 + $0x10] sm:$0xff] %vm1532, %v1513
        %1536 = vst.msk [vmem:[#allocation3 + $0x18] sm:$0xff] %vm1532, %v1515
        %1537 = vst.msk [vmem:[#allocation3 + $0x20] sm:$0xff] %vm1532, %v1517
        %1538 = vst.msk [vmem:[#allocation3 + $0x28] sm:$0xff] %vm1532, %v1519
        %1539 = vst.msk [vmem:[#allocation3 + $0x30] sm:$0xff] %vm1532, %v1521
        %1540 = vst.msk [vmem:[#allocation3 + $0x38] sm:$0xff] %vm1532, %v1523
        %v1541 = vld [vmem:[#allocation2 + $0x2] sm:$0xff]
        %v1542 = vld [vmem:[#allocation2 + $0x12] sm:$0xff]
        %v1543 = vld [vmem:[#allocation2 + $0x22] sm:$0xff]
        %v1544 = vld [vmem:[#allocation2 + $0x32] sm:$0xff]
        %v1545 = vld [vmem:[#allocation2 + $0x42] sm:$0xff]
        %v1546 = vld [vmem:[#allocation2 + $0x52] sm:$0xff]
        %v1547 = vld [vmem:[#allocation2 + $0x62] sm:$0xff]
        %v1548 = vld [vmem:[#allocation2 + $0x72] sm:$0xff]
        %1557 = vrot.lane.b32.xlu0 %v1541, 8
        %v1558 = vpop.permute.xlu0 %1557
        %1559 = vrot.lane.b32.xlu0 %v1542, 8
        %v1560 = vpop.permute.xlu0 %1559
        %1561 = vrot.lane.b32.xlu0 %v1543, 8
        %v1562 = vpop.permute.xlu0 %1561
        %1563 = vrot.lane.b32.xlu0 %v1544, 8
        %v1564 = vpop.permute.xlu0 %1563
        %1565 = vrot.lane.b32.xlu0 %v1545, 8
        %v1566 = vpop.permute.xlu0 %1565
        %1567 = vrot.lane.b32.xlu0 %v1546, 8
        %v1568 = vpop.permute.xlu0 %1567
        %1569 = vrot.lane.b32.xlu0 %v1547, 8
        %v1570 = vpop.permute.xlu0 %1569
        %1571 = vrot.lane.b32.xlu0 %v1548, 8
        %v1572 = vpop.permute.xlu0 %1571
        %vm1581 = vcmask 97344
        %1582 = vst.msk [vmem:[#allocation3] sm:$0xff] %vm1581, %v1558
        %1583 = vst.msk [vmem:[#allocation3 + $0x8] sm:$0xff] %vm1581, %v1560
        %1584 = vst.msk [vmem:[#allocation3 + $0x10] sm:$0xff] %vm1581, %v1562
        %1585 = vst.msk [vmem:[#allocation3 + $0x18] sm:$0xff] %vm1581, %v1564
        %1586 = vst.msk [vmem:[#allocation3 + $0x20] sm:$0xff] %vm1581, %v1566
        %1587 = vst.msk [vmem:[#allocation3 + $0x28] sm:$0xff] %vm1581, %v1568
        %1588 = vst.msk [vmem:[#allocation3 + $0x30] sm:$0xff] %vm1581, %v1570
        %1589 = vst.msk [vmem:[#allocation3 + $0x38] sm:$0xff] %vm1581, %v1572
        %v1590 = vld [vmem:[#allocation2 + $0x3] sm:$0xff]
        %v1591 = vld [vmem:[#allocation2 + $0x13] sm:$0xff]
        %v1592 = vld [vmem:[#allocation2 + $0x23] sm:$0xff]
        %v1593 = vld [vmem:[#allocation2 + $0x33] sm:$0xff]
        %v1594 = vld [vmem:[#allocation2 + $0x43] sm:$0xff]
        %v1595 = vld [vmem:[#allocation2 + $0x53] sm:$0xff]
        %v1596 = vld [vmem:[#allocation2 + $0x63] sm:$0xff]
        %v1597 = vld [vmem:[#allocation2 + $0x73] sm:$0xff]
        %1606 = vrot.lane.b32.xlu0 %v1590, 12
        %v1607 = vpop.permute.xlu0 %1606
        %1608 = vrot.lane.b32.xlu0 %v1591, 12
        %v1609 = vpop.permute.xlu0 %1608
        %1610 = vrot.lane.b32.xlu0 %v1592, 12
        %v1611 = vpop.permute.xlu0 %1610
        %1612 = vrot.lane.b32.xlu0 %v1593, 12
        %v1613 = vpop.permute.xlu0 %1612
        %1614 = vrot.lane.b32.xlu0 %v1594, 12
        %v1615 = vpop.permute.xlu0 %1614
        %1616 = vrot.lane.b32.xlu0 %v1595, 12
        %v1617 = vpop.permute.xlu0 %1616
        %1618 = vrot.lane.b32.xlu0 %v1596, 12
        %v1619 = vpop.permute.xlu0 %1618
        %1620 = vrot.lane.b32.xlu0 %v1597, 12
        %v1621 = vpop.permute.xlu0 %1620
        %vm1630 = vcmask 130144
        %1631 = vst.msk [vmem:[#allocation3] sm:$0xff] %vm1630, %v1607
        %1632 = vst.msk [vmem:[#allocation3 + $0x8] sm:$0xff] %vm1630, %v1609
        %1633 = vst.msk [vmem:[#allocation3 + $0x10] sm:$0xff] %vm1630, %v1611
        %1634 = vst.msk [vmem:[#allocation3 + $0x18] sm:$0xff] %vm1630, %v1613
        %1635 = vst.msk [vmem:[#allocation3 + $0x20] sm:$0xff] %vm1630, %v1615
        %1636 = vst.msk [vmem:[#allocation3 + $0x28] sm:$0xff] %vm1630, %v1617
        %1637 = vst.msk [vmem:[#allocation3 + $0x30] sm:$0xff] %vm1630, %v1619
        %1638 = vst.msk [vmem:[#allocation3 + $0x38] sm:$0xff] %vm1630, %v1621
        %v1639 = vld [vmem:[#allocation2 + $0x4] sm:$0xff]
        %v1640 = vld [vmem:[#allocation2 + $0x14] sm:$0xff]
        %v1641 = vld [vmem:[#allocation2 + $0x24] sm:$0xff]
        %v1642 = vld [vmem:[#allocation2 + $0x34] sm:$0xff]
        %v1643 = vld [vmem:[#allocation2 + $0x44] sm:$0xff]
        %v1644 = vld [vmem:[#allocation2 + $0x54] sm:$0xff]
        %v1645 = vld [vmem:[#allocation2 + $0x64] sm:$0xff]
        %v1646 = vld [vmem:[#allocation2 + $0x74] sm:$0xff]
        %1655 = vrot.lane.b32.xlu0 %v1639, 16
        %v1656 = vpop.permute.xlu0 %1655
        %1657 = vrot.lane.b32.xlu0 %v1640, 16
        %v1658 = vpop.permute.xlu0 %1657
        %1659 = vrot.lane.b32.xlu0 %v1641, 16
        %v1660 = vpop.permute.xlu0 %1659
        %1661 = vrot.lane.b32.xlu0 %v1642, 16
        %v1662 = vpop.permute.xlu0 %1661
        %1663 = vrot.lane.b32.xlu0 %v1643, 16
        %v1664 = vpop.permute.xlu0 %1663
        %1665 = vrot.lane.b32.xlu0 %v1644, 16
        %v1666 = vpop.permute.xlu0 %1665
        %1667 = vrot.lane.b32.xlu0 %v1645, 16
        %v1668 = vpop.permute.xlu0 %1667
        %1669 = vrot.lane.b32.xlu0 %v1646, 16
        %v1670 = vpop.permute.xlu0 %1669
        %vm1679 = vcmask 162944
        %1680 = vst.msk [vmem:[#allocation3] sm:$0xff] %vm1679, %v1656
        %1681 = vst.msk [vmem:[#allocation3 + $0x8] sm:$0xff] %vm1679, %v1658
        %1682 = vst.msk [vmem:[#allocation3 + $0x10] sm:$0xff] %vm1679, %v1660
        %1683 = vst.msk [vmem:[#allocation3 + $0x18] sm:$0xff] %vm1679, %v1662
        %1684 = vst.msk [vmem:[#allocation3 + $0x20] sm:$0xff] %vm1679, %v1664
        %1685 = vst.msk [vmem:[#allocation3 + $0x28] sm:$0xff] %vm1679, %v1666
        %1686 = vst.msk [vmem:[#allocation3 + $0x30] sm:$0xff] %vm1679, %v1668
        %1687 = vst.msk [vmem:[#allocation3 + $0x38] sm:$0xff] %vm1679, %v1670
        %s1688 = scalar_lea.vmem [#allocation2], 16
        %v1689 = vld [vmem:[%s1688] sm:$0xff]
        %v1690 = vld [vmem:[%s1688 + $0x10] sm:$0xff]
        %v1691 = vld [vmem:[%s1688 + $0x20] sm:$0xff]
        %v1692 = vld [vmem:[%s1688 + $0x30] sm:$0xff]
        %v1693 = vld [vmem:[%s1688 + $0x40] sm:$0xff]
        %v1694 = vld [vmem:[%s1688 + $0x50] sm:$0xff]
        %v1695 = vld [vmem:[%s1688 + $0x60] sm:$0xff]
        %v1696 = vld [vmem:[%s1688 + $0x70] sm:$0xff]
        %1705 = vrot.lane.b32.xlu0 %v1689, 20
        %v1706 = vpop.permute.xlu0 %1705
        %1707 = vrot.lane.b32.xlu0 %v1690, 20
        %v1708 = vpop.permute.xlu0 %1707
        %1709 = vrot.lane.b32.xlu0 %v1691, 20
        %v1710 = vpop.permute.xlu0 %1709
        %1711 = vrot.lane.b32.xlu0 %v1692, 20
        %v1712 = vpop.permute.xlu0 %1711
        %1713 = vrot.lane.b32.xlu0 %v1693, 20
        %v1714 = vpop.permute.xlu0 %1713
        %1715 = vrot.lane.b32.xlu0 %v1694, 20
        %v1716 = vpop.permute.xlu0 %1715
        %1717 = vrot.lane.b32.xlu0 %v1695, 20
        %v1718 = vpop.permute.xlu0 %1717
        %1719 = vrot.lane.b32.xlu0 %v1696, 20
        %v1720 = vpop.permute.xlu0 %1719
        %vm1729 = vcmask 195744
        %1730 = vst.msk [vmem:[#allocation3] sm:$0xff] %vm1729, %v1706
        %1731 = vst.msk [vmem:[#allocation3 + $0x8] sm:$0xff] %vm1729, %v1708
        %1732 = vst.msk [vmem:[#allocation3 + $0x10] sm:$0xff] %vm1729, %v1710
        %1733 = vst.msk [vmem:[#allocation3 + $0x18] sm:$0xff] %vm1729, %v1712
        %1734 = vst.msk [vmem:[#allocation3 + $0x20] sm:$0xff] %vm1729, %v1714
        %1735 = vst.msk [vmem:[#allocation3 + $0x28] sm:$0xff] %vm1729, %v1716
        %1736 = vst.msk [vmem:[#allocation3 + $0x30] sm:$0xff] %vm1729, %v1718
        %1737 = vst.msk [vmem:[#allocation3 + $0x38] sm:$0xff] %vm1729, %v1720
        %v1738 = vld [vmem:[%s1688 + $0x1] sm:$0xff]
        %v1739 = vld [vmem:[%s1688 + $0x11] sm:$0xff]
        %v1740 = vld [vmem:[%s1688 + $0x21] sm:$0xff]
        %v1741 = vld [vmem:[%s1688 + $0x31] sm:$0xff]
        %v1742 = vld [vmem:[%s1688 + $0x41] sm:$0xff]
        %v1743 = vld [vmem:[%s1688 + $0x51] sm:$0xff]
        %v1744 = vld [vmem:[%s1688 + $0x61] sm:$0xff]
        %v1745 = vld [vmem:[%s1688 + $0x71] sm:$0xff]
        %1754 = vrot.lane.b32.xlu0 %v1738, 24
        %v1755 = vpop.permute.xlu0 %1754
        %1756 = vrot.lane.b32.xlu0 %v1739, 24
        %v1757 = vpop.permute.xlu0 %1756
        %1758 = vrot.lane.b32.xlu0 %v1740, 24
        %v1759 = vpop.permute.xlu0 %1758
        %1760 = vrot.lane.b32.xlu0 %v1741, 24
        %v1761 = vpop.permute.xlu0 %1760
        %1762 = vrot.lane.b32.xlu0 %v1742, 24
        %v1763 = vpop.permute.xlu0 %1762
        %1764 = vrot.lane.b32.xlu0 %v1743, 24
        %v1765 = vpop.permute.xlu0 %1764
        %1766 = vrot.lane.b32.xlu0 %v1744, 24
        %v1767 = vpop.permute.xlu0 %1766
        %1768 = vrot.lane.b32.xlu0 %v1745, 24
        %v1769 = vpop.permute.xlu0 %1768
        %vm1778 = vcmask 228544
        %1779 = vst.msk [vmem:[#allocation3] sm:$0xff] %vm1778, %v1755
        %1780 = vst.msk [vmem:[#allocation3 + $0x8] sm:$0xff] %vm1778, %v1757
        %1781 = vst.msk [vmem:[#allocation3 + $0x10] sm:$0xff] %vm1778, %v1759
        %1782 = vst.msk [vmem:[#allocation3 + $0x18] sm:$0xff] %vm1778, %v1761
        %1783 = vst.msk [vmem:[#allocation3 + $0x20] sm:$0xff] %vm1778, %v1763
        %1784 = vst.msk [vmem:[#allocation3 + $0x28] sm:$0xff] %vm1778, %v1765
        %1785 = vst.msk [vmem:[#allocation3 + $0x30] sm:$0xff] %vm1778, %v1767
        %1786 = vst.msk [vmem:[#allocation3 + $0x38] sm:$0xff] %vm1778, %v1769
        %v1787 = vld [vmem:[%s1688 + $0x2] sm:$0xff]
        %v1788 = vld [vmem:[%s1688 + $0x12] sm:$0xff]
        %v1789 = vld [vmem:[%s1688 + $0x22] sm:$0xff]
        %v1790 = vld [vmem:[%s1688 + $0x32] sm:$0xff]
        %v1791 = vld [vmem:[%s1688 + $0x42] sm:$0xff]
        %v1792 = vld [vmem:[%s1688 + $0x52] sm:$0xff]
        %v1793 = vld [vmem:[%s1688 + $0x62] sm:$0xff]
        %v1794 = vld [vmem:[%s1688 + $0x72] sm:$0xff]
        %1803 = vrot.lane.b32.xlu0 %v1787, 28
        %v1804 = vpop.permute.xlu0 %1803
        %1805 = vrot.lane.b32.xlu0 %v1788, 28
        %v1806 = vpop.permute.xlu0 %1805
        %1807 = vrot.lane.b32.xlu0 %v1789, 28
        %v1808 = vpop.permute.xlu0 %1807
        %1809 = vrot.lane.b32.xlu0 %v1790, 28
        %v1810 = vpop.permute.xlu0 %1809
        %1811 = vrot.lane.b32.xlu0 %v1791, 28
        %v1812 = vpop.permute.xlu0 %1811
        %1813 = vrot.lane.b32.xlu0 %v1792, 28
        %v1814 = vpop.permute.xlu0 %1813
        %1815 = vrot.lane.b32.xlu0 %v1793, 28
        %v1816 = vpop.permute.xlu0 %1815
        %1817 = vrot.lane.b32.xlu0 %v1794, 28
        %v1818 = vpop.permute.xlu0 %1817
        %vm1827 = vcmask 261344
        %1828 = vst.msk [vmem:[#allocation3] sm:$0xff] %vm1827, %v1804
        %1829 = vst.msk [vmem:[#allocation3 + $0x8] sm:$0xff] %vm1827, %v1806
        %1830 = vst.msk [vmem:[#allocation3 + $0x10] sm:$0xff] %vm1827, %v1808
        %1831 = vst.msk [vmem:[#allocation3 + $0x18] sm:$0xff] %vm1827, %v1810
        %1832 = vst.msk [vmem:[#allocation3 + $0x20] sm:$0xff] %vm1827, %v1812
        %1833 = vst.msk [vmem:[#allocation3 + $0x28] sm:$0xff] %vm1827, %v1814
        %1834 = vst.msk [vmem:[#allocation3 + $0x30] sm:$0xff] %vm1827, %v1816
        %1835 = vst.msk [vmem:[#allocation3 + $0x38] sm:$0xff] %vm1827, %v1818
        %v1836 = vld [vmem:[%s1688 + $0x3] sm:$0xff]
        %v1837 = vld [vmem:[%s1688 + $0x13] sm:$0xff]
        %v1838 = vld [vmem:[%s1688 + $0x23] sm:$0xff]
        %v1839 = vld [vmem:[%s1688 + $0x33] sm:$0xff]
        %v1840 = vld [vmem:[%s1688 + $0x43] sm:$0xff]
        %v1841 = vld [vmem:[%s1688 + $0x53] sm:$0xff]
        %v1842 = vld [vmem:[%s1688 + $0x63] sm:$0xff]
        %v1843 = vld [vmem:[%s1688 + $0x73] sm:$0xff]
        %1852 = vrot.lane.b32.xlu0 %v1836, 32
        %v1853 = vpop.permute.xlu0 %1852
        %1854 = vrot.lane.b32.xlu0 %v1837, 32
        %v1855 = vpop.permute.xlu0 %1854
        %1856 = vrot.lane.b32.xlu0 %v1838, 32
        %v1857 = vpop.permute.xlu0 %1856
        %1858 = vrot.lane.b32.xlu0 %v1839, 32
        %v1859 = vpop.permute.xlu0 %1858
        %1860 = vrot.lane.b32.xlu0 %v1840, 32
        %v1861 = vpop.permute.xlu0 %1860
        %1862 = vrot.lane.b32.xlu0 %v1841, 32
        %v1863 = vpop.permute.xlu0 %1862
        %1864 = vrot.lane.b32.xlu0 %v1842, 32
        %v1865 = vpop.permute.xlu0 %1864
        %1866 = vrot.lane.b32.xlu0 %v1843, 32
        %v1867 = vpop.permute.xlu0 %1866
        %vm1876 = vcmask 294144
        %1877 = vst.msk [vmem:[#allocation3] sm:$0xff] %vm1876, %v1853
        %1878 = vst.msk [vmem:[#allocation3 + $0x8] sm:$0xff] %vm1876, %v1855
        %1879 = vst.msk [vmem:[#allocation3 + $0x10] sm:$0xff] %vm1876, %v1857
        %1880 = vst.msk [vmem:[#allocation3 + $0x18] sm:$0xff] %vm1876, %v1859
        %1881 = vst.msk [vmem:[#allocation3 + $0x20] sm:$0xff] %vm1876, %v1861
        %1882 = vst.msk [vmem:[#allocation3 + $0x28] sm:$0xff] %vm1876, %v1863
        %1883 = vst.msk [vmem:[#allocation3 + $0x30] sm:$0xff] %vm1876, %v1865
        %1884 = vst.msk [vmem:[#allocation3 + $0x38] sm:$0xff] %vm1876, %v1867
        %v1885 = vld [vmem:[%s1688 + $0x4] sm:$0xff]
        %v1886 = vld [vmem:[%s1688 + $0x14] sm:$0xff]
        %v1887 = vld [vmem:[%s1688 + $0x24] sm:$0xff]
        %v1888 = vld [vmem:[%s1688 + $0x34] sm:$0xff]
        %v1889 = vld [vmem:[%s1688 + $0x44] sm:$0xff]
        %v1890 = vld [vmem:[%s1688 + $0x54] sm:$0xff]
        %v1891 = vld [vmem:[%s1688 + $0x64] sm:$0xff]
        %v1892 = vld [vmem:[%s1688 + $0x74] sm:$0xff]
        %1901 = vrot.lane.b32.xlu0 %v1885, 36
        %v1902 = vpop.permute.xlu0 %1901
        %1903 = vrot.lane.b32.xlu0 %v1886, 36
        %v1904 = vpop.permute.xlu0 %1903
        %1905 = vrot.lane.b32.xlu0 %v1887, 36
        %v1906 = vpop.permute.xlu0 %1905
        %1907 = vrot.lane.b32.xlu0 %v1888, 36
        %v1908 = vpop.permute.xlu0 %1907
        %1909 = vrot.lane.b32.xlu0 %v1889, 36
        %v1910 = vpop.permute.xlu0 %1909
        %1911 = vrot.lane.b32.xlu0 %v1890, 36
        %v1912 = vpop.permute.xlu0 %1911
        %1913 = vrot.lane.b32.xlu0 %v1891, 36
        %v1914 = vpop.permute.xlu0 %1913
        %1915 = vrot.lane.b32.xlu0 %v1892, 36
        %v1916 = vpop.permute.xlu0 %1915
        %vm1925 = vcmask 326944
        %1926 = vst.msk [vmem:[#allocation3] sm:$0xff] %vm1925, %v1902
        %1927 = vst.msk [vmem:[#allocation3 + $0x8] sm:$0xff] %vm1925, %v1904
        %1928 = vst.msk [vmem:[#allocation3 + $0x10] sm:$0xff] %vm1925, %v1906
        %1929 = vst.msk [vmem:[#allocation3 + $0x18] sm:$0xff] %vm1925, %v1908
        %1930 = vst.msk [vmem:[#allocation3 + $0x20] sm:$0xff] %vm1925, %v1910
        %1931 = vst.msk [vmem:[#allocation3 + $0x28] sm:$0xff] %vm1925, %v1912
        %1932 = vst.msk [vmem:[#allocation3 + $0x30] sm:$0xff] %vm1925, %v1914
        %1933 = vst.msk [vmem:[#allocation3 + $0x38] sm:$0xff] %vm1925, %v1916
        %s1934 = scalar_lea.vmem [#allocation2], 32
        %v1935 = vld [vmem:[%s1934] sm:$0xff]
        %v1936 = vld [vmem:[%s1934 + $0x10] sm:$0xff]
        %v1937 = vld [vmem:[%s1934 + $0x20] sm:$0xff]
        %v1938 = vld [vmem:[%s1934 + $0x30] sm:$0xff]
        %v1939 = vld [vmem:[%s1934 + $0x40] sm:$0xff]
        %v1940 = vld [vmem:[%s1934 + $0x50] sm:$0xff]
        %v1941 = vld [vmem:[%s1934 + $0x60] sm:$0xff]
        %v1942 = vld [vmem:[%s1934 + $0x70] sm:$0xff]
        %1951 = vrot.lane.b32.xlu0 %v1935, 40
        %v1952 = vpop.permute.xlu0 %1951
        %1953 = vrot.lane.b32.xlu0 %v1936, 40
        %v1954 = vpop.permute.xlu0 %1953
        %1955 = vrot.lane.b32.xlu0 %v1937, 40
        %v1956 = vpop.permute.xlu0 %1955
        %1957 = vrot.lane.b32.xlu0 %v1938, 40
        %v1958 = vpop.permute.xlu0 %1957
        %1959 = vrot.lane.b32.xlu0 %v1939, 40
        %v1960 = vpop.permute.xlu0 %1959
        %1961 = vrot.lane.b32.xlu0 %v1940, 40
        %v1962 = vpop.permute.xlu0 %1961
        %1963 = vrot.lane.b32.xlu0 %v1941, 40
        %v1964 = vpop.permute.xlu0 %1963
        %1965 = vrot.lane.b32.xlu0 %v1942, 40
        %v1966 = vpop.permute.xlu0 %1965
        %vm1975 = vcmask 359744
        %1976 = vst.msk [vmem:[#allocation3] sm:$0xff] %vm1975, %v1952
        %1977 = vst.msk [vmem:[#allocation3 + $0x8] sm:$0xff] %vm1975, %v1954
        %1978 = vst.msk [vmem:[#allocation3 + $0x10] sm:$0xff] %vm1975, %v1956
        %1979 = vst.msk [vmem:[#allocation3 + $0x18] sm:$0xff] %vm1975, %v1958
        %1980 = vst.msk [vmem:[#allocation3 + $0x20] sm:$0xff] %vm1975, %v1960
        %1981 = vst.msk [vmem:[#allocation3 + $0x28] sm:$0xff] %vm1975, %v1962
        %1982 = vst.msk [vmem:[#allocation3 + $0x30] sm:$0xff] %vm1975, %v1964
        %1983 = vst.msk [vmem:[#allocation3 + $0x38] sm:$0xff] %vm1975, %v1966
        %v1984 = vld [vmem:[%s1934 + $0x1] sm:$0xff]
        %v1985 = vld [vmem:[%s1934 + $0x11] sm:$0xff]
        %v1986 = vld [vmem:[%s1934 + $0x21] sm:$0xff]
        %v1987 = vld [vmem:[%s1934 + $0x31] sm:$0xff]
        %v1988 = vld [vmem:[%s1934 + $0x41] sm:$0xff]
        %v1989 = vld [vmem:[%s1934 + $0x51] sm:$0xff]
        %v1990 = vld [vmem:[%s1934 + $0x61] sm:$0xff]
        %v1991 = vld [vmem:[%s1934 + $0x71] sm:$0xff]
        %2000 = vrot.lane.b32.xlu0 %v1984, 44
        %v2001 = vpop.permute.xlu0 %2000
        %2002 = vrot.lane.b32.xlu0 %v1985, 44
        %v2003 = vpop.permute.xlu0 %2002
        %2004 = vrot.lane.b32.xlu0 %v1986, 44
        %v2005 = vpop.permute.xlu0 %2004
        %2006 = vrot.lane.b32.xlu0 %v1987, 44
        %v2007 = vpop.permute.xlu0 %2006
        %2008 = vrot.lane.b32.xlu0 %v1988, 44
        %v2009 = vpop.permute.xlu0 %2008
        %2010 = vrot.lane.b32.xlu0 %v1989, 44
        %v2011 = vpop.permute.xlu0 %2010
        %2012 = vrot.lane.b32.xlu0 %v1990, 44
        %v2013 = vpop.permute.xlu0 %2012
        %2014 = vrot.lane.b32.xlu0 %v1991, 44
        %v2015 = vpop.permute.xlu0 %2014
        %vm2024 = vcmask 392544
        %2025 = vst.msk [vmem:[#allocation3] sm:$0xff] %vm2024, %v2001
        %2026 = vst.msk [vmem:[#allocation3 + $0x8] sm:$0xff] %vm2024, %v2003
        %2027 = vst.msk [vmem:[#allocation3 + $0x10] sm:$0xff] %vm2024, %v2005
        %2028 = vst.msk [vmem:[#allocation3 + $0x18] sm:$0xff] %vm2024, %v2007
        %2029 = vst.msk [vmem:[#allocation3 + $0x20] sm:$0xff] %vm2024, %v2009
        %2030 = vst.msk [vmem:[#allocation3 + $0x28] sm:$0xff] %vm2024, %v2011
        %2031 = vst.msk [vmem:[#allocation3 + $0x30] sm:$0xff] %vm2024, %v2013
        %2032 = vst.msk [vmem:[#allocation3 + $0x38] sm:$0xff] %vm2024, %v2015
        %v2033 = vld [vmem:[%s1934 + $0x2] sm:$0xff]
        %v2034 = vld [vmem:[%s1934 + $0x12] sm:$0xff]
        %v2035 = vld [vmem:[%s1934 + $0x22] sm:$0xff]
        %v2036 = vld [vmem:[%s1934 + $0x32] sm:$0xff]
        %v2037 = vld [vmem:[%s1934 + $0x42] sm:$0xff]
        %v2038 = vld [vmem:[%s1934 + $0x52] sm:$0xff]
        %v2039 = vld [vmem:[%s1934 + $0x62] sm:$0xff]
        %v2040 = vld [vmem:[%s1934 + $0x72] sm:$0xff]
        %2049 = vrot.lane.b32.xlu0 %v2033, 48
        %v2050 = vpop.permute.xlu0 %2049
        %2051 = vrot.lane.b32.xlu0 %v2034, 48
        %v2052 = vpop.permute.xlu0 %2051
        %2053 = vrot.lane.b32.xlu0 %v2035, 48
        %v2054 = vpop.permute.xlu0 %2053
        %2055 = vrot.lane.b32.xlu0 %v2036, 48
        %v2056 = vpop.permute.xlu0 %2055
        %2057 = vrot.lane.b32.xlu0 %v2037, 48
        %v2058 = vpop.permute.xlu0 %2057
        %2059 = vrot.lane.b32.xlu0 %v2038, 48
        %v2060 = vpop.permute.xlu0 %2059
        %2061 = vrot.lane.b32.xlu0 %v2039, 48
        %v2062 = vpop.permute.xlu0 %2061
        %2063 = vrot.lane.b32.xlu0 %v2040, 48
        %v2064 = vpop.permute.xlu0 %2063
        %vm2073 = vcmask 425344
        %2074 = vst.msk [vmem:[#allocation3] sm:$0xff] %vm2073, %v2050
        %2075 = vst.msk [vmem:[#allocation3 + $0x8] sm:$0xff] %vm2073, %v2052
        %2076 = vst.msk [vmem:[#allocation3 + $0x10] sm:$0xff] %vm2073, %v2054
        %2077 = vst.msk [vmem:[#allocation3 + $0x18] sm:$0xff] %vm2073, %v2056
        %2078 = vst.msk [vmem:[#allocation3 + $0x20] sm:$0xff] %vm2073, %v2058
        %2079 = vst.msk [vmem:[#allocation3 + $0x28] sm:$0xff] %vm2073, %v2060
        %2080 = vst.msk [vmem:[#allocation3 + $0x30] sm:$0xff] %vm2073, %v2062
        %2081 = vst.msk [vmem:[#allocation3 + $0x38] sm:$0xff] %vm2073, %v2064
        %v2082 = vld [vmem:[%s1934 + $0x3] sm:$0xff]
        %v2083 = vld [vmem:[%s1934 + $0x13] sm:$0xff]
        %v2084 = vld [vmem:[%s1934 + $0x23] sm:$0xff]
        %v2085 = vld [vmem:[%s1934 + $0x33] sm:$0xff]
        %v2086 = vld [vmem:[%s1934 + $0x43] sm:$0xff]
        %v2087 = vld [vmem:[%s1934 + $0x53] sm:$0xff]
        %v2088 = vld [vmem:[%s1934 + $0x63] sm:$0xff]
        %v2089 = vld [vmem:[%s1934 + $0x73] sm:$0xff]
        %2098 = vrot.lane.b32.xlu0 %v2082, 52
        %v2099 = vpop.permute.xlu0 %2098
        %2100 = vrot.lane.b32.xlu0 %v2083, 52
        %v2101 = vpop.permute.xlu0 %2100
        %2102 = vrot.lane.b32.xlu0 %v2084, 52
        %v2103 = vpop.permute.xlu0 %2102
        %2104 = vrot.lane.b32.xlu0 %v2085, 52
        %v2105 = vpop.permute.xlu0 %2104
        %2106 = vrot.lane.b32.xlu0 %v2086, 52
        %v2107 = vpop.permute.xlu0 %2106
        %2108 = vrot.lane.b32.xlu0 %v2087, 52
        %v2109 = vpop.permute.xlu0 %2108
        %2110 = vrot.lane.b32.xlu0 %v2088, 52
        %v2111 = vpop.permute.xlu0 %2110
        %2112 = vrot.lane.b32.xlu0 %v2089, 52
        %v2113 = vpop.permute.xlu0 %2112
        %vm2122 = vcmask 458144
        %2123 = vst.msk [vmem:[#allocation3] sm:$0xff] %vm2122, %v2099
        %2124 = vst.msk [vmem:[#allocation3 + $0x8] sm:$0xff] %vm2122, %v2101
        %2125 = vst.msk [vmem:[#allocation3 + $0x10] sm:$0xff] %vm2122, %v2103
        %2126 = vst.msk [vmem:[#allocation3 + $0x18] sm:$0xff] %vm2122, %v2105
        %2127 = vst.msk [vmem:[#allocation3 + $0x20] sm:$0xff] %vm2122, %v2107
        %2128 = vst.msk [vmem:[#allocation3 + $0x28] sm:$0xff] %vm2122, %v2109
        %2129 = vst.msk [vmem:[#allocation3 + $0x30] sm:$0xff] %vm2122, %v2111
        %2130 = vst.msk [vmem:[#allocation3 + $0x38] sm:$0xff] %vm2122, %v2113
        %v2131 = vld [vmem:[%s1934 + $0x4] sm:$0xff]
        %v2132 = vld [vmem:[%s1934 + $0x14] sm:$0xff]
        %v2133 = vld [vmem:[%s1934 + $0x24] sm:$0xff]
        %v2134 = vld [vmem:[%s1934 + $0x34] sm:$0xff]
        %v2135 = vld [vmem:[%s1934 + $0x44] sm:$0xff]
        %v2136 = vld [vmem:[%s1934 + $0x54] sm:$0xff]
        %v2137 = vld [vmem:[%s1934 + $0x64] sm:$0xff]
        %v2138 = vld [vmem:[%s1934 + $0x74] sm:$0xff]
        %2147 = vrot.lane.b32.xlu0 %v2131, 56
        %v2148 = vpop.permute.xlu0 %2147
        %2149 = vrot.lane.b32.xlu0 %v2132, 56
        %v2150 = vpop.permute.xlu0 %2149
        %2151 = vrot.lane.b32.xlu0 %v2133, 56
        %v2152 = vpop.permute.xlu0 %2151
        %2153 = vrot.lane.b32.xlu0 %v2134, 56
        %v2154 = vpop.permute.xlu0 %2153
        %2155 = vrot.lane.b32.xlu0 %v2135, 56
        %v2156 = vpop.permute.xlu0 %2155
        %2157 = vrot.lane.b32.xlu0 %v2136, 56
        %v2158 = vpop.permute.xlu0 %2157
        %2159 = vrot.lane.b32.xlu0 %v2137, 56
        %v2160 = vpop.permute.xlu0 %2159
        %2161 = vrot.lane.b32.xlu0 %v2138, 56
        %v2162 = vpop.permute.xlu0 %2161
        %vm2171 = vcmask 490944
        %2172 = vst.msk [vmem:[#allocation3] sm:$0xff] %vm2171, %v2148
        %2173 = vst.msk [vmem:[#allocation3 + $0x8] sm:$0xff] %vm2171, %v2150
        %2174 = vst.msk [vmem:[#allocation3 + $0x10] sm:$0xff] %vm2171, %v2152
        %2175 = vst.msk [vmem:[#allocation3 + $0x18] sm:$0xff] %vm2171, %v2154
        %2176 = vst.msk [vmem:[#allocation3 + $0x20] sm:$0xff] %vm2171, %v2156
        %2177 = vst.msk [vmem:[#allocation3 + $0x28] sm:$0xff] %vm2171, %v2158
        %2178 = vst.msk [vmem:[#allocation3 + $0x30] sm:$0xff] %vm2171, %v2160
        %2179 = vst.msk [vmem:[#allocation3 + $0x38] sm:$0xff] %vm2171, %v2162
        %s2180 = scalar_lea.vmem [#allocation2], 48
        %v2181 = vld [vmem:[%s2180] sm:$0xff]
        %v2182 = vld [vmem:[%s2180 + $0x10] sm:$0xff]
        %v2183 = vld [vmem:[%s2180 + $0x20] sm:$0xff]
        %v2184 = vld [vmem:[%s2180 + $0x30] sm:$0xff]
        %v2185 = vld [vmem:[%s2180 + $0x40] sm:$0xff]
        %v2186 = vld [vmem:[%s2180 + $0x50] sm:$0xff]
        %v2187 = vld [vmem:[%s2180 + $0x60] sm:$0xff]
        %v2188 = vld [vmem:[%s2180 + $0x70] sm:$0xff]
        %2197 = vrot.lane.b32.xlu0 %v2181, 60
        %v2198 = vpop.permute.xlu0 %2197
        %2199 = vrot.lane.b32.xlu0 %v2182, 60
        %v2200 = vpop.permute.xlu0 %2199
        %2201 = vrot.lane.b32.xlu0 %v2183, 60
        %v2202 = vpop.permute.xlu0 %2201
        %2203 = vrot.lane.b32.xlu0 %v2184, 60
        %v2204 = vpop.permute.xlu0 %2203
        %2205 = vrot.lane.b32.xlu0 %v2185, 60
        %v2206 = vpop.permute.xlu0 %2205
        %2207 = vrot.lane.b32.xlu0 %v2186, 60
        %v2208 = vpop.permute.xlu0 %2207
        %2209 = vrot.lane.b32.xlu0 %v2187, 60
        %v2210 = vpop.permute.xlu0 %2209
        %2211 = vrot.lane.b32.xlu0 %v2188, 60
        %v2212 = vpop.permute.xlu0 %2211
        %vm2221 = vcmask 523744
        %2222 = vst.msk [vmem:[#allocation3] sm:$0xff] %vm2221, %v2198
        %2223 = vst.msk [vmem:[#allocation3 + $0x8] sm:$0xff] %vm2221, %v2200
        %2224 = vst.msk [vmem:[#allocation3 + $0x10] sm:$0xff] %vm2221, %v2202
        %2225 = vst.msk [vmem:[#allocation3 + $0x18] sm:$0xff] %vm2221, %v2204
        %2226 = vst.msk [vmem:[#allocation3 + $0x20] sm:$0xff] %vm2221, %v2206
        %2227 = vst.msk [vmem:[#allocation3 + $0x28] sm:$0xff] %vm2221, %v2208
        %2228 = vst.msk [vmem:[#allocation3 + $0x30] sm:$0xff] %vm2221, %v2210
        %2229 = vst.msk [vmem:[#allocation3 + $0x38] sm:$0xff] %vm2221, %v2212
        %v2230 = vld [vmem:[%s2180 + $0x1] sm:$0xff]
        %v2231 = vld [vmem:[%s2180 + $0x11] sm:$0xff]
        %v2232 = vld [vmem:[%s2180 + $0x21] sm:$0xff]
        %v2233 = vld [vmem:[%s2180 + $0x31] sm:$0xff]
        %v2234 = vld [vmem:[%s2180 + $0x41] sm:$0xff]
        %v2235 = vld [vmem:[%s2180 + $0x51] sm:$0xff]
        %v2236 = vld [vmem:[%s2180 + $0x61] sm:$0xff]
        %v2237 = vld [vmem:[%s2180 + $0x71] sm:$0xff]
        %2246 = vrot.lane.b32.xlu0 %v2230, 64
        %v2247 = vpop.permute.xlu0 %2246
        %2248 = vrot.lane.b32.xlu0 %v2231, 64
        %v2249 = vpop.permute.xlu0 %2248
        %2250 = vrot.lane.b32.xlu0 %v2232, 64
        %v2251 = vpop.permute.xlu0 %2250
        %2252 = vrot.lane.b32.xlu0 %v2233, 64
        %v2253 = vpop.permute.xlu0 %2252
        %2254 = vrot.lane.b32.xlu0 %v2234, 64
        %v2255 = vpop.permute.xlu0 %2254
        %2256 = vrot.lane.b32.xlu0 %v2235, 64
        %v2257 = vpop.permute.xlu0 %2256
        %2258 = vrot.lane.b32.xlu0 %v2236, 64
        %v2259 = vpop.permute.xlu0 %2258
        %2260 = vrot.lane.b32.xlu0 %v2237, 64
        %v2261 = vpop.permute.xlu0 %2260
        %vm2270 = vcmask 556544
        %2271 = vst.msk [vmem:[#allocation3] sm:$0xff] %vm2270, %v2247
        %2272 = vst.msk [vmem:[#allocation3 + $0x8] sm:$0xff] %vm2270, %v2249
        %2273 = vst.msk [vmem:[#allocation3 + $0x10] sm:$0xff] %vm2270, %v2251
        %2274 = vst.msk [vmem:[#allocation3 + $0x18] sm:$0xff] %vm2270, %v2253
        %2275 = vst.msk [vmem:[#allocation3 + $0x20] sm:$0xff] %vm2270, %v2255
        %2276 = vst.msk [vmem:[#allocation3 + $0x28] sm:$0xff] %vm2270, %v2257
        %2277 = vst.msk [vmem:[#allocation3 + $0x30] sm:$0xff] %vm2270, %v2259
        %2278 = vst.msk [vmem:[#allocation3 + $0x38] sm:$0xff] %vm2270, %v2261
        %v2279 = vld [vmem:[%s2180 + $0x2] sm:$0xff]
        %v2280 = vld [vmem:[%s2180 + $0x12] sm:$0xff]
        %v2281 = vld [vmem:[%s2180 + $0x22] sm:$0xff]
        %v2282 = vld [vmem:[%s2180 + $0x32] sm:$0xff]
        %v2283 = vld [vmem:[%s2180 + $0x42] sm:$0xff]
        %v2284 = vld [vmem:[%s2180 + $0x52] sm:$0xff]
        %v2285 = vld [vmem:[%s2180 + $0x62] sm:$0xff]
        %v2286 = vld [vmem:[%s2180 + $0x72] sm:$0xff]
        %2295 = vrot.lane.b32.xlu0 %v2279, 68
        %v2296 = vpop.permute.xlu0 %2295
        %2297 = vrot.lane.b32.xlu0 %v2280, 68
        %v2298 = vpop.permute.xlu0 %2297
        %2299 = vrot.lane.b32.xlu0 %v2281, 68
        %v2300 = vpop.permute.xlu0 %2299
        %2301 = vrot.lane.b32.xlu0 %v2282, 68
        %v2302 = vpop.permute.xlu0 %2301
        %2303 = vrot.lane.b32.xlu0 %v2283, 68
        %v2304 = vpop.permute.xlu0 %2303
        %2305 = vrot.lane.b32.xlu0 %v2284, 68
        %v2306 = vpop.permute.xlu0 %2305
        %2307 = vrot.lane.b32.xlu0 %v2285, 68
        %v2308 = vpop.permute.xlu0 %2307
        %2309 = vrot.lane.b32.xlu0 %v2286, 68
        %v2310 = vpop.permute.xlu0 %2309
        %vm2319 = vcmask 589344
        %2320 = vst.msk [vmem:[#allocation3] sm:$0xff] %vm2319, %v2296
        %2321 = vst.msk [vmem:[#allocation3 + $0x8] sm:$0xff] %vm2319, %v2298
        %2322 = vst.msk [vmem:[#allocation3 + $0x10] sm:$0xff] %vm2319, %v2300
        %2323 = vst.msk [vmem:[#allocation3 + $0x18] sm:$0xff] %vm2319, %v2302
        %2324 = vst.msk [vmem:[#allocation3 + $0x20] sm:$0xff] %vm2319, %v2304
        %2325 = vst.msk [vmem:[#allocation3 + $0x28] sm:$0xff] %vm2319, %v2306
        %2326 = vst.msk [vmem:[#allocation3 + $0x30] sm:$0xff] %vm2319, %v2308
        %2327 = vst.msk [vmem:[#allocation3 + $0x38] sm:$0xff] %vm2319, %v2310
        %v2328 = vld [vmem:[%s2180 + $0x3] sm:$0xff]
        %v2329 = vld [vmem:[%s2180 + $0x13] sm:$0xff]
        %v2330 = vld [vmem:[%s2180 + $0x23] sm:$0xff]
        %v2331 = vld [vmem:[%s2180 + $0x33] sm:$0xff]
        %v2332 = vld [vmem:[%s2180 + $0x43] sm:$0xff]
        %v2333 = vld [vmem:[%s2180 + $0x53] sm:$0xff]
        %v2334 = vld [vmem:[%s2180 + $0x63] sm:$0xff]
        %v2335 = vld [vmem:[%s2180 + $0x73] sm:$0xff]
        %2344 = vrot.lane.b32.xlu0 %v2328, 72
        %v2345 = vpop.permute.xlu0 %2344
        %2346 = vrot.lane.b32.xlu0 %v2329, 72
        %v2347 = vpop.permute.xlu0 %2346
        %2348 = vrot.lane.b32.xlu0 %v2330, 72
        %v2349 = vpop.permute.xlu0 %2348
        %2350 = vrot.lane.b32.xlu0 %v2331, 72
        %v2351 = vpop.permute.xlu0 %2350
        %2352 = vrot.lane.b32.xlu0 %v2332, 72
        %v2353 = vpop.permute.xlu0 %2352
        %2354 = vrot.lane.b32.xlu0 %v2333, 72
        %v2355 = vpop.permute.xlu0 %2354
        %2356 = vrot.lane.b32.xlu0 %v2334, 72
        %v2357 = vpop.permute.xlu0 %2356
        %2358 = vrot.lane.b32.xlu0 %v2335, 72
        %v2359 = vpop.permute.xlu0 %2358
        %vm2368 = vcmask 622144
        %2369 = vst.msk [vmem:[#allocation3] sm:$0xff] %vm2368, %v2345
        %2370 = vst.msk [vmem:[#allocation3 + $0x8] sm:$0xff] %vm2368, %v2347
        %2371 = vst.msk [vmem:[#allocation3 + $0x10] sm:$0xff] %vm2368, %v2349
        %2372 = vst.msk [vmem:[#allocation3 + $0x18] sm:$0xff] %vm2368, %v2351
        %2373 = vst.msk [vmem:[#allocation3 + $0x20] sm:$0xff] %vm2368, %v2353
        %2374 = vst.msk [vmem:[#allocation3 + $0x28] sm:$0xff] %vm2368, %v2355
        %2375 = vst.msk [vmem:[#allocation3 + $0x30] sm:$0xff] %vm2368, %v2357
        %2376 = vst.msk [vmem:[#allocation3 + $0x38] sm:$0xff] %vm2368, %v2359
        %v2377 = vld [vmem:[%s2180 + $0x4] sm:$0xff]
        %v2378 = vld [vmem:[%s2180 + $0x14] sm:$0xff]
        %v2379 = vld [vmem:[%s2180 + $0x24] sm:$0xff]
        %v2380 = vld [vmem:[%s2180 + $0x34] sm:$0xff]
        %v2381 = vld [vmem:[%s2180 + $0x44] sm:$0xff]
        %v2382 = vld [vmem:[%s2180 + $0x54] sm:$0xff]
        %v2383 = vld [vmem:[%s2180 + $0x64] sm:$0xff]
        %v2384 = vld [vmem:[%s2180 + $0x74] sm:$0xff]
        %2393 = vrot.lane.b32.xlu0 %v2377, 76
        %v2394 = vpop.permute.xlu0 %2393
        %2395 = vrot.lane.b32.xlu0 %v2378, 76
        %v2396 = vpop.permute.xlu0 %2395
        %2397 = vrot.lane.b32.xlu0 %v2379, 76
        %v2398 = vpop.permute.xlu0 %2397
        %2399 = vrot.lane.b32.xlu0 %v2380, 76
        %v2400 = vpop.permute.xlu0 %2399
        %2401 = vrot.lane.b32.xlu0 %v2381, 76
        %v2402 = vpop.permute.xlu0 %2401
        %2403 = vrot.lane.b32.xlu0 %v2382, 76
        %v2404 = vpop.permute.xlu0 %2403
        %2405 = vrot.lane.b32.xlu0 %v2383, 76
        %v2406 = vpop.permute.xlu0 %2405
        %2407 = vrot.lane.b32.xlu0 %v2384, 76
        %v2408 = vpop.permute.xlu0 %2407
        %vm2417 = vcmask 654944
        %2418 = vst.msk [vmem:[#allocation3] sm:$0xff] %vm2417, %v2394
        %2419 = vst.msk [vmem:[#allocation3 + $0x8] sm:$0xff] %vm2417, %v2396
        %2420 = vst.msk [vmem:[#allocation3 + $0x10] sm:$0xff] %vm2417, %v2398
        %2421 = vst.msk [vmem:[#allocation3 + $0x18] sm:$0xff] %vm2417, %v2400
        %2422 = vst.msk [vmem:[#allocation3 + $0x20] sm:$0xff] %vm2417, %v2402
        %2423 = vst.msk [vmem:[#allocation3 + $0x28] sm:$0xff] %vm2417, %v2404
        %2424 = vst.msk [vmem:[#allocation3 + $0x30] sm:$0xff] %vm2417, %v2406
        %2425 = vst.msk [vmem:[#allocation3 + $0x38] sm:$0xff] %vm2417, %v2408
        %s2426 = scalar_lea.vmem [#allocation2], 64
        %v2427 = vld [vmem:[%s2426] sm:$0xff]
        %v2428 = vld [vmem:[%s2426 + $0x10] sm:$0xff]
        %v2429 = vld [vmem:[%s2426 + $0x20] sm:$0xff]
        %v2430 = vld [vmem:[%s2426 + $0x30] sm:$0xff]
        %v2431 = vld [vmem:[%s2426 + $0x40] sm:$0xff]
        %v2432 = vld [vmem:[%s2426 + $0x50] sm:$0xff]
        %v2433 = vld [vmem:[%s2426 + $0x60] sm:$0xff]
        %v2434 = vld [vmem:[%s2426 + $0x70] sm:$0xff]
        %2443 = vrot.lane.b32.xlu0 %v2427, 80
        %v2444 = vpop.permute.xlu0 %2443
        %2445 = vrot.lane.b32.xlu0 %v2428, 80
        %v2446 = vpop.permute.xlu0 %2445
        %2447 = vrot.lane.b32.xlu0 %v2429, 80
        %v2448 = vpop.permute.xlu0 %2447
        %2449 = vrot.lane.b32.xlu0 %v2430, 80
        %v2450 = vpop.permute.xlu0 %2449
        %2451 = vrot.lane.b32.xlu0 %v2431, 80
        %v2452 = vpop.permute.xlu0 %2451
        %2453 = vrot.lane.b32.xlu0 %v2432, 80
        %v2454 = vpop.permute.xlu0 %2453
        %2455 = vrot.lane.b32.xlu0 %v2433, 80
        %v2456 = vpop.permute.xlu0 %2455
        %2457 = vrot.lane.b32.xlu0 %v2434, 80
        %v2458 = vpop.permute.xlu0 %2457
        %vm2467 = vcmask 687744
        %2468 = vst.msk [vmem:[#allocation3] sm:$0xff] %vm2467, %v2444
        %2469 = vst.msk [vmem:[#allocation3 + $0x8] sm:$0xff] %vm2467, %v2446
        %2470 = vst.msk [vmem:[#allocation3 + $0x10] sm:$0xff] %vm2467, %v2448
        %2471 = vst.msk [vmem:[#allocation3 + $0x18] sm:$0xff] %vm2467, %v2450
        %2472 = vst.msk [vmem:[#allocation3 + $0x20] sm:$0xff] %vm2467, %v2452
        %2473 = vst.msk [vmem:[#allocation3 + $0x28] sm:$0xff] %vm2467, %v2454
        %2474 = vst.msk [vmem:[#allocation3 + $0x30] sm:$0xff] %vm2467, %v2456
        %2475 = vst.msk [vmem:[#allocation3 + $0x38] sm:$0xff] %vm2467, %v2458
        %v2476 = vld [vmem:[%s2426 + $0x1] sm:$0xff]
        %v2477 = vld [vmem:[%s2426 + $0x11] sm:$0xff]
        %v2478 = vld [vmem:[%s2426 + $0x21] sm:$0xff]
        %v2479 = vld [vmem:[%s2426 + $0x31] sm:$0xff]
        %v2480 = vld [vmem:[%s2426 + $0x41] sm:$0xff]
        %v2481 = vld [vmem:[%s2426 + $0x51] sm:$0xff]
        %v2482 = vld [vmem:[%s2426 + $0x61] sm:$0xff]
        %v2483 = vld [vmem:[%s2426 + $0x71] sm:$0xff]
        %2492 = vrot.lane.b32.xlu0 %v2476, 84
        %v2493 = vpop.permute.xlu0 %2492
        %2494 = vrot.lane.b32.xlu0 %v2477, 84
        %v2495 = vpop.permute.xlu0 %2494
        %2496 = vrot.lane.b32.xlu0 %v2478, 84
        %v2497 = vpop.permute.xlu0 %2496
        %2498 = vrot.lane.b32.xlu0 %v2479, 84
        %v2499 = vpop.permute.xlu0 %2498
        %2500 = vrot.lane.b32.xlu0 %v2480, 84
        %v2501 = vpop.permute.xlu0 %2500
        %2502 = vrot.lane.b32.xlu0 %v2481, 84
        %v2503 = vpop.permute.xlu0 %2502
        %2504 = vrot.lane.b32.xlu0 %v2482, 84
        %v2505 = vpop.permute.xlu0 %2504
        %2506 = vrot.lane.b32.xlu0 %v2483, 84
        %v2507 = vpop.permute.xlu0 %2506
        %vm2516 = vcmask 720544
        %2517 = vst.msk [vmem:[#allocation3] sm:$0xff] %vm2516, %v2493
        %2518 = vst.msk [vmem:[#allocation3 + $0x8] sm:$0xff] %vm2516, %v2495
        %2519 = vst.msk [vmem:[#allocation3 + $0x10] sm:$0xff] %vm2516, %v2497
        %2520 = vst.msk [vmem:[#allocation3 + $0x18] sm:$0xff] %vm2516, %v2499
        %2521 = vst.msk [vmem:[#allocation3 + $0x20] sm:$0xff] %vm2516, %v2501
        %2522 = vst.msk [vmem:[#allocation3 + $0x28] sm:$0xff] %vm2516, %v2503
        %2523 = vst.msk [vmem:[#allocation3 + $0x30] sm:$0xff] %vm2516, %v2505
        %2524 = vst.msk [vmem:[#allocation3 + $0x38] sm:$0xff] %vm2516, %v2507
        %v2525 = vld [vmem:[%s2426 + $0x2] sm:$0xff]
        %v2526 = vld [vmem:[%s2426 + $0x12] sm:$0xff]
        %v2527 = vld [vmem:[%s2426 + $0x22] sm:$0xff]
        %v2528 = vld [vmem:[%s2426 + $0x32] sm:$0xff]
        %v2529 = vld [vmem:[%s2426 + $0x42] sm:$0xff]
        %v2530 = vld [vmem:[%s2426 + $0x52] sm:$0xff]
        %v2531 = vld [vmem:[%s2426 + $0x62] sm:$0xff]
        %v2532 = vld [vmem:[%s2426 + $0x72] sm:$0xff]
        %2541 = vrot.lane.b32.xlu0 %v2525, 88
        %v2542 = vpop.permute.xlu0 %2541
        %2543 = vrot.lane.b32.xlu0 %v2526, 88
        %v2544 = vpop.permute.xlu0 %2543
        %2545 = vrot.lane.b32.xlu0 %v2527, 88
        %v2546 = vpop.permute.xlu0 %2545
        %2547 = vrot.lane.b32.xlu0 %v2528, 88
        %v2548 = vpop.permute.xlu0 %2547
        %2549 = vrot.lane.b32.xlu0 %v2529, 88
        %v2550 = vpop.permute.xlu0 %2549
        %2551 = vrot.lane.b32.xlu0 %v2530, 88
        %v2552 = vpop.permute.xlu0 %2551
        %2553 = vrot.lane.b32.xlu0 %v2531, 88
        %v2554 = vpop.permute.xlu0 %2553
        %2555 = vrot.lane.b32.xlu0 %v2532, 88
        %v2556 = vpop.permute.xlu0 %2555
        %vm2565 = vcmask 753344
        %2566 = vst.msk [vmem:[#allocation3] sm:$0xff] %vm2565, %v2542
        %2567 = vst.msk [vmem:[#allocation3 + $0x8] sm:$0xff] %vm2565, %v2544
        %2568 = vst.msk [vmem:[#allocation3 + $0x10] sm:$0xff] %vm2565, %v2546
        %2569 = vst.msk [vmem:[#allocation3 + $0x18] sm:$0xff] %vm2565, %v2548
        %2570 = vst.msk [vmem:[#allocation3 + $0x20] sm:$0xff] %vm2565, %v2550
        %2571 = vst.msk [vmem:[#allocation3 + $0x28] sm:$0xff] %vm2565, %v2552
        %2572 = vst.msk [vmem:[#allocation3 + $0x30] sm:$0xff] %vm2565, %v2554
        %2573 = vst.msk [vmem:[#allocation3 + $0x38] sm:$0xff] %vm2565, %v2556
        %v2574 = vld [vmem:[%s2426 + $0x3] sm:$0xff]
        %v2575 = vld [vmem:[%s2426 + $0x13] sm:$0xff]
        %v2576 = vld [vmem:[%s2426 + $0x23] sm:$0xff]
        %v2577 = vld [vmem:[%s2426 + $0x33] sm:$0xff]
        %v2578 = vld [vmem:[%s2426 + $0x43] sm:$0xff]
        %v2579 = vld [vmem:[%s2426 + $0x53] sm:$0xff]
        %v2580 = vld [vmem:[%s2426 + $0x63] sm:$0xff]
        %v2581 = vld [vmem:[%s2426 + $0x73] sm:$0xff]
        %2590 = vrot.lane.b32.xlu0 %v2574, 92
        %v2591 = vpop.permute.xlu0 %2590
        %2592 = vrot.lane.b32.xlu0 %v2575, 92
        %v2593 = vpop.permute.xlu0 %2592
        %2594 = vrot.lane.b32.xlu0 %v2576, 92
        %v2595 = vpop.permute.xlu0 %2594
        %2596 = vrot.lane.b32.xlu0 %v2577, 92
        %v2597 = vpop.permute.xlu0 %2596
        %2598 = vrot.lane.b32.xlu0 %v2578, 92
        %v2599 = vpop.permute.xlu0 %2598
        %2600 = vrot.lane.b32.xlu0 %v2579, 92
        %v2601 = vpop.permute.xlu0 %2600
        %2602 = vrot.lane.b32.xlu0 %v2580, 92
        %v2603 = vpop.permute.xlu0 %2602
        %2604 = vrot.lane.b32.xlu0 %v2581, 92
        %v2605 = vpop.permute.xlu0 %2604
        %vm2614 = vcmask 786144
        %2615 = vst.msk [vmem:[#allocation3] sm:$0xff] %vm2614, %v2591
        %2616 = vst.msk [vmem:[#allocation3 + $0x8] sm:$0xff] %vm2614, %v2593
        %2617 = vst.msk [vmem:[#allocation3 + $0x10] sm:$0xff] %vm2614, %v2595
        %2618 = vst.msk [vmem:[#allocation3 + $0x18] sm:$0xff] %vm2614, %v2597
        %2619 = vst.msk [vmem:[#allocation3 + $0x20] sm:$0xff] %vm2614, %v2599
        %2620 = vst.msk [vmem:[#allocation3 + $0x28] sm:$0xff] %vm2614, %v2601
        %2621 = vst.msk [vmem:[#allocation3 + $0x30] sm:$0xff] %vm2614, %v2603
        %2622 = vst.msk [vmem:[#allocation3 + $0x38] sm:$0xff] %vm2614, %v2605
        %v2623 = vld [vmem:[%s2426 + $0x4] sm:$0xff]
        %v2624 = vld [vmem:[%s2426 + $0x14] sm:$0xff]
        %v2625 = vld [vmem:[%s2426 + $0x24] sm:$0xff]
        %v2626 = vld [vmem:[%s2426 + $0x34] sm:$0xff]
        %v2627 = vld [vmem:[%s2426 + $0x44] sm:$0xff]
        %v2628 = vld [vmem:[%s2426 + $0x54] sm:$0xff]
        %v2629 = vld [vmem:[%s2426 + $0x64] sm:$0xff]
        %v2630 = vld [vmem:[%s2426 + $0x74] sm:$0xff]
        %2639 = vrot.lane.b32.xlu0 %v2623, 96
        %v2640 = vpop.permute.xlu0 %2639
        %2641 = vrot.lane.b32.xlu0 %v2624, 96
        %v2642 = vpop.permute.xlu0 %2641
        %2643 = vrot.lane.b32.xlu0 %v2625, 96
        %v2644 = vpop.permute.xlu0 %2643
        %2645 = vrot.lane.b32.xlu0 %v2626, 96
        %v2646 = vpop.permute.xlu0 %2645
        %2647 = vrot.lane.b32.xlu0 %v2627, 96
        %v2648 = vpop.permute.xlu0 %2647
        %2649 = vrot.lane.b32.xlu0 %v2628, 96
        %v2650 = vpop.permute.xlu0 %2649
        %2651 = vrot.lane.b32.xlu0 %v2629, 96
        %v2652 = vpop.permute.xlu0 %2651
        %2653 = vrot.lane.b32.xlu0 %v2630, 96
        %v2654 = vpop.permute.xlu0 %2653
        %vm2663 = vcmask 818944
        %2664 = vst.msk [vmem:[#allocation3] sm:$0xff] %vm2663, %v2640
        %2665 = vst.msk [vmem:[#allocation3 + $0x8] sm:$0xff] %vm2663, %v2642
        %2666 = vst.msk [vmem:[#allocation3 + $0x10] sm:$0xff] %vm2663, %v2644
        %2667 = vst.msk [vmem:[#allocation3 + $0x18] sm:$0xff] %vm2663, %v2646
        %2668 = vst.msk [vmem:[#allocation3 + $0x20] sm:$0xff] %vm2663, %v2648
        %2669 = vst.msk [vmem:[#allocation3 + $0x28] sm:$0xff] %vm2663, %v2650
        %2670 = vst.msk [vmem:[#allocation3 + $0x30] sm:$0xff] %vm2663, %v2652
        %2671 = vst.msk [vmem:[#allocation3 + $0x38] sm:$0xff] %vm2663, %v2654
        %v2672 = vld [vmem:[#allocation3] sm:$0xff]
        %v2673 = vld [vmem:[#allocation3 + $0x8] sm:$0xff]
        %v2674 = vld [vmem:[#allocation3 + $0x10] sm:$0xff]
        %v2675 = vld [vmem:[#allocation3 + $0x18] sm:$0xff]
        %v2676 = vld [vmem:[#allocation3 + $0x20] sm:$0xff]
        %v2677 = vld [vmem:[#allocation3 + $0x28] sm:$0xff]
        %v2678 = vld [vmem:[#allocation3 + $0x30] sm:$0xff]
        %v2679 = vld [vmem:[#allocation3 + $0x38] sm:$0xff]
        %v2680 = vld [vmem:[%s3] sm:$0xff]
        %v2681 = vld [vmem:[%s3 + $0x8] sm:$0xff]
        %v2682 = vld [vmem:[%s3 + $0x10] sm:$0xff]
        %v2683 = vld [vmem:[%s3 + $0x18] sm:$0xff]
        %v2684 = vld [vmem:[%s3 + $0x20] sm:$0xff]
        %v2685 = vld [vmem:[%s3 + $0x28] sm:$0xff]
        %v2686 = vld [vmem:[%s3 + $0x30] sm:$0xff]
        %v2687 = vld [vmem:[%s3 + $0x38] sm:$0xff]
        %v2688 = vld [vmem:[%s3 + $0x40] sm:$0xff]
        %v2689 = vld [vmem:[%s3 + $0x48] sm:$0xff]
        %v2690 = vld [vmem:[%s3 + $0x50] sm:$0xff]
        %v2691 = vld [vmem:[%s3 + $0x58] sm:$0xff]
        %v2692 = vld [vmem:[%s3 + $0x60] sm:$0xf]
        %vm2693 = vcmask 818176
        %v2695 = vsel %vm2693, %v2672, 0
        %v2698 = vsel %vm2693, %v2673, 0
        %v2701 = vsel %vm2693, %v2674, 0
        %v2704 = vsel %vm2693, %v2675, 0
        %v2707 = vsel %vm2693, %v2676, 0
        %v2710 = vsel %vm2693, %v2677, 0
        %v2713 = vsel %vm2693, %v2678, 0
        %v2716 = vsel %vm2693, %v2679, 0
        %vm2718 = vcmask 1043456
        %v2720 = vsel %vm2718, %v2692, 0
        %2722 = vmatprep.subr.mxu0 0.0
        %2723 = vmatpush1.msra.mxu0 %v2680
        %2724 = vmatprep.subr.mxu0 0.0
        %2725 = vmatpush1.msra.mxu0 %v2681
        %2726 = vmatprep.subr.mxu0 0.0
        %2727 = vmatpush1.msra.mxu0 %v2682
        %2728 = vmatprep.subr.mxu0 0.0
        %2729 = vmatpush1.msra.mxu0 %v2683
        %2730 = vmatprep.subr.mxu0 0.0
        %2731 = vmatpush1.msra.mxu0 %v2684
        %2732 = vmatprep.subr.mxu0 0.0
        %2733 = vmatpush1.msra.mxu0 %v2685
        %2734 = vmatprep.subr.mxu0 0.0
        %2735 = vmatpush1.msra.mxu0 %v2686
        %2736 = vmatprep.subr.mxu0 0.0
        %2737 = vmatpush1.msra.mxu0 %v2687
        %2738 = vmatprep.subr.mxu0 0.0
        %2739 = vmatpush1.msra.mxu0 %v2688
        %2740 = vmatprep.subr.mxu0 0.0
        %2741 = vmatpush1.msra.mxu0 %v2689
        %2742 = vmatprep.subr.mxu0 0.0
        %2743 = vmatpush1.msra.mxu0 %v2690
        %2744 = vmatprep.subr.mxu0 0.0
        %2745 = vmatpush1.msra.mxu0 %v2691
        %2746 = vmatprep.subr.mxu0 0.0
        %2747 = vmatpush1.msra.mxu0 %v2720
        %2748 = vmatprep.subr.mxu0 0.0
        %2749 = vmatpush1.msra.mxu0 0.0
        %2750 = vmatprep.subr.mxu0 0.0
        %2751 = vmatpush1.msra.mxu0 0.0
        %2752 = vmatprep.subr.mxu0 0.0
        %2753 = vmatpush1.msra.mxu0 0.0
        %2754 = vmatprep.subr.mxu0 0.0
        %2755 = vmatpush1.msra.mxu0 0.0
        %2756 = vmatprep.subr.mxu0 0.0
        %2757 = vmatpush1.msra.mxu0 0.0
        %2758 = vmatprep.subr.mxu0 0.0
        %2759 = vmatpush1.msra.mxu0 0.0
        %2760 = vmatprep.subr.mxu0 0.0
        %2761 = vmatpush1.msra.mxu0 0.0
        %2762 = vmatprep.subr.mxu0 0.0
        %2763 = vmatpush1.msra.mxu0 0.0
        %2764 = vmatprep.subr.mxu0 0.0
        %2765 = vmatpush1.msra.mxu0 0.0
        %2766 = vmatprep.subr.mxu0 0.0
        %2767 = vmatpush1.msra.mxu0 0.0
        %2768 = vmatprep.subr.mxu0 0.0
        %2769 = vmatpush1.msra.mxu0 0.0
        %2770 = vmatprep.subr.mxu0 0.0
        %2771 = vmatpush1.msra.mxu0 0.0
        %2772 = vmatprep.subr.mxu0 0.0
        %2773 = vmatpush1.msra.mxu0 0.0
        %2774 = vmatprep.subr.mxu0 0.0
        %2775 = vmatpush1.msra.mxu0 0.0
        %2776 = vmatprep.subr.mxu0 0.0
        %2777 = vmatpush1.msra.mxu0 0.0
        %2778 = vmatprep.subr.mxu0 0.0
        %2779 = vmatpush1.msra.mxu0 0.0
        %2780 = vmatprep.subr.mxu0 0.0
        %2781 = vmatpush1.msra.mxu0 0.0
        %2782 = vmatprep.subr.mxu0 0.0
        %2783 = vmatpush1.msra.mxu0 0.0
        %2784 = vmatprep.subr.mxu0 0.0
        %2785 = vmatpush1.msra.mxu0 0.0
        %2786 = vmatprep.mubr.f32.mxu0 0.0
        %2787 = vmatmul.mubr.f32.gmra.mrb[0].mxu0 %v2695
        %v2788 = vpop.f32.mrb[0].mxu0
        %v2789 = vadd.f32 0.0, %v2788
        %v2790 = vpop.f32.mrb[0].mxu0
        %2791 = vmatprep.mubr.f32.mxu0 0.0
        %2792 = vmatmul.mubr.f32.gmra.mrb[0].mxu0 %v2698
        %v2793 = vpop.f32.mrb[0].mxu0
        %v2794 = vadd.f32 0.0, %v2793
        %v2795 = vpop.f32.mrb[0].mxu0
        %2796 = vmatprep.mubr.f32.mxu0 0.0
        %2797 = vmatmul.mubr.f32.gmra.mrb[0].mxu0 %v2701
        %v2798 = vpop.f32.mrb[0].mxu0
        %v2799 = vadd.f32 0.0, %v2798
        %v2800 = vpop.f32.mrb[0].mxu0
        %2801 = vmatprep.mubr.f32.mxu0 0.0
        %2802 = vmatmul.mubr.f32.gmra.mrb[0].mxu0 %v2704
        %v2803 = vpop.f32.mrb[0].mxu0
        %v2804 = vadd.f32 0.0, %v2803
        %v2805 = vpop.f32.mrb[0].mxu0
        %2806 = vmatprep.mubr.f32.mxu0 0.0
        %2807 = vmatmul.mubr.f32.gmra.mrb[0].mxu0 %v2707
        %v2808 = vpop.f32.mrb[0].mxu0
        %v2809 = vadd.f32 0.0, %v2808
        %v2810 = vpop.f32.mrb[0].mxu0
        %2811 = vmatprep.mubr.f32.mxu0 0.0
        %2812 = vmatmul.mubr.f32.gmra.mrb[0].mxu0 %v2710
        %v2813 = vpop.f32.mrb[0].mxu0
        %v2814 = vadd.f32 0.0, %v2813
        %v2815 = vpop.f32.mrb[0].mxu0
        %2816 = vmatprep.mubr.f32.mxu0 0.0
        %2817 = vmatmul.mubr.f32.gmra.mrb[0].mxu0 %v2713
        %v2818 = vpop.f32.mrb[0].mxu0
        %v2819 = vadd.f32 0.0, %v2818
        %v2820 = vpop.f32.mrb[0].mxu0
        %2821 = vmatprep.mubr.f32.mxu0 0.0
        %2822 = vmatmul.mubr.f32.gmra.mrb[0].mxu0 %v2716
        %v2823 = vpop.f32.mrb[0].mxu0
        %v2824 = vadd.f32 0.0, %v2823
        %v2825 = vpop.f32.mrb[0].mxu0
        %2826 = vdwg.mxu0
        %v2827 = vmax.f32 %v2789, %v2794
        %v2828 = vmax.f32 %v2799, %v2804
        %v2829 = vmax.f32 %v2809, %v2814
        %v2830 = vmax.f32 %v2819, %v2824
        %v2831 = vld [vmem:[%s4] sm:$0x1]
        %v2833 = vlaneseq
        %v2834 = vshrl.u32 %v2833, 7
        %v2835 = vsub.s32 0, %v2834
        %v2836 = vrot.slane %v2831, %v2835
        %v2838 = vadd.f32 %v2827, %v2836
        %v2839 = vadd.f32 %v2828, %v2836
        %v2840 = vadd.f32 %v2829, %v2836
        %v2841 = vadd.f32 %v2830, %v2836
        %v2843 = vrot.slane %v2838, 1
        %v2845 = vmax.f32 %v2838, %v2843
        %vm2846 = vcmask 57344
        %2847 = vst.msk [vmem:[#allocation4] sm:$0x1] %vm2846, %v2845
        %2849 = vrot.lane.b32.xlu0 %v2845, 8
        %v2850 = vpop.permute.xlu0 %2849
        %vm2852 = vcmask 124994
        %2853 = vst.msk [vmem:[#allocation4 - $0x2] sm:$0x4] %vm2852, %v2850
        %2854 = vrot.lane.b32.xlu0 %v2845, 16
        %v2855 = vpop.permute.xlu0 %2854
        %vm2857 = vcmask 192644
        %2858 = vst.msk [vmem:[#allocation4 - $0x4] sm:$0x10] %vm2857, %v2855
        %2859 = vrot.lane.b32.xlu0 %v2845, 24
        %v2860 = vpop.permute.xlu0 %2859
        %vm2862 = vcmask 260294
        %2863 = vst.msk [vmem:[#allocation4 - $0x6] sm:$0x40] %vm2862, %v2860
        %v2865 = vrot.slane %v2839, 1
        %v2867 = vmax.f32 %v2839, %v2865
        %2869 = vrot.lane.b32.xlu0 %v2867, 32
        %v2870 = vpop.permute.xlu0 %2869
        %vm2872 = vcmask 319744
        %2873 = vst.msk [vmem:[#allocation4] sm:$0x1] %vm2872, %v2870
        %2874 = vrot.lane.b32.xlu0 %v2867, 40
        %v2875 = vpop.permute.xlu0 %2874
        %vm2877 = vcmask 387394
        %2878 = vst.msk [vmem:[#allocation4 - $0x2] sm:$0x4] %vm2877, %v2875
        %2879 = vrot.lane.b32.xlu0 %v2867, 48
        %v2880 = vpop.permute.xlu0 %2879
        %vm2882 = vcmask 455044
        %2883 = vst.msk [vmem:[#allocation4 - $0x4] sm:$0x10] %vm2882, %v2880
        %2884 = vrot.lane.b32.xlu0 %v2867, 56
        %v2885 = vpop.permute.xlu0 %2884
        %vm2887 = vcmask 522694
        %2888 = vst.msk [vmem:[#allocation4 - $0x6] sm:$0x40] %vm2887, %v2885
        %v2890 = vrot.slane %v2840, 1
        %v2892 = vmax.f32 %v2840, %v2890
        %2894 = vrot.lane.b32.xlu0 %v2892, 64
        %v2895 = vpop.permute.xlu0 %2894
        %vm2897 = vcmask 582144
        %2898 = vst.msk [vmem:[#allocation4] sm:$0x1] %vm2897, %v2895
        %2899 = vrot.lane.b32.xlu0 %v2892, 72
        %v2900 = vpop.permute.xlu0 %2899
        %vm2902 = vcmask 649794
        %2903 = vst.msk [vmem:[#allocation4 - $0x2] sm:$0x4] %vm2902, %v2900
        %2904 = vrot.lane.b32.xlu0 %v2892, 80
        %v2905 = vpop.permute.xlu0 %2904
        %vm2907 = vcmask 717444
        %2908 = vst.msk [vmem:[#allocation4 - $0x4] sm:$0x10] %vm2907, %v2905
        %2909 = vrot.lane.b32.xlu0 %v2892, 88
        %v2910 = vpop.permute.xlu0 %2909
        %vm2912 = vcmask 785094
        %2913 = vst.msk [vmem:[#allocation4 - $0x6] sm:$0x40] %vm2912, %v2910
        %v2915 = vrot.slane %v2841, 1
        %v2917 = vmax.f32 %v2841, %v2915
        %2919 = vrot.lane.b32.xlu0 %v2917, 96
        %v2920 = vpop.permute.xlu0 %2919
        %vm2922 = vcmask 844544
        %2923 = vst.msk [vmem:[#allocation4] sm:$0x1] %vm2922, %v2920
        %2924 = vrot.lane.b32.xlu0 %v2917, 104
        %v2925 = vpop.permute.xlu0 %2924
        %vm2927 = vcmask 912194
        %2928 = vst.msk [vmem:[#allocation4 - $0x2] sm:$0x4] %vm2927, %v2925
        %2929 = vrot.lane.b32.xlu0 %v2917, 112
        %v2930 = vpop.permute.xlu0 %2929
        %vm2932 = vcmask 979844
        %2933 = vst.msk [vmem:[#allocation4 - $0x4] sm:$0x10] %vm2932, %v2930
        %2934 = vrot.lane.b32.xlu0 %v2917, 120
        %v2935 = vpop.permute.xlu0 %2934
        %vm2937 = vcmask 1047494
        %2938 = vst.msk [vmem:[#allocation4 - $0x6] sm:$0x40] %vm2937, %v2935
        %v2939 = vld [vmem:[#allocation4] sm:$0x1]
        %v2940 = vmax.f32 %v2939, 0.0
        %v2941 = vld [vmem:[%s5] sm:$0xff]
        %v2942 = vld [vmem:[%s5 + $0x8] sm:$0xff]
        %v2943 = vld [vmem:[%s5 + $0x10] sm:$0xff]
        %v2944 = vld [vmem:[%s5 + $0x18] sm:$0xff]
        %v2945 = vld [vmem:[%s5 + $0x20] sm:$0xff]
        %v2946 = vld [vmem:[%s5 + $0x28] sm:$0xff]
        %v2947 = vld [vmem:[%s5 + $0x30] sm:$0xff]
        %v2948 = vld [vmem:[%s5 + $0x38] sm:$0xff]
        %v2949 = vld [vmem:[%s5 + $0x40] sm:$0xff]
        %v2950 = vld [vmem:[%s5 + $0x48] sm:$0xff]
        %v2951 = vld [vmem:[%s5 + $0x50] sm:$0xff]
        %v2952 = vld [vmem:[%s5 + $0x58] sm:$0xff]
        %v2953 = vld [vmem:[%s5 + $0x60] sm:$0xff]
        %v2954 = vld [vmem:[%s5 + $0x68] sm:$0xff]
        %v2955 = vld [vmem:[%s5 + $0x70] sm:$0xff]
        %v2956 = vld [vmem:[%s5 + $0x78] sm:$0xff]
        %v2957 = vld [vmem:[%s6] sm:$0x1]
        %2958 = vmatprep.subr.mxu0 0.0
        %2959 = vmatpush1.msra.mxu0 %v2941
        %2960 = vmatprep.subr.mxu0 0.0
        %2961 = vmatpush1.msra.mxu0 %v2942
        %2962 = vmatprep.subr.mxu0 0.0
        %2963 = vmatpush1.msra.mxu0 %v2943
        %2964 = vmatprep.subr.mxu0 0.0
        %2965 = vmatpush1.msra.mxu0 %v2944
        %2966 = vmatprep.subr.mxu0 0.0
        %2967 = vmatpush1.msra.mxu0 %v2945
        %2968 = vmatprep.subr.mxu0 0.0
        %2969 = vmatpush1.msra.mxu0 %v2946
        %2970 = vmatprep.subr.mxu0 0.0
        %2971 = vmatpush1.msra.mxu0 %v2947
        %2972 = vmatprep.subr.mxu0 0.0
        %2973 = vmatpush1.msra.mxu0 %v2948
        %2974 = vmatprep.subr.mxu0 0.0
        %2975 = vmatpush1.msra.mxu0 %v2949
        %2976 = vmatprep.subr.mxu0 0.0
        %2977 = vmatpush1.msra.mxu0 %v2950
        %2978 = vmatprep.subr.mxu0 0.0
        %2979 = vmatpush1.msra.mxu0 %v2951
        %2980 = vmatprep.subr.mxu0 0.0
        %2981 = vmatpush1.msra.mxu0 %v2952
        %2982 = vmatprep.subr.mxu0 0.0
        %2983 = vmatpush1.msra.mxu0 %v2953
        %2984 = vmatprep.subr.mxu0 0.0
        %2985 = vmatpush1.msra.mxu0 %v2954
        %2986 = vmatprep.subr.mxu0 0.0
        %2987 = vmatpush1.msra.mxu0 %v2955
        %2988 = vmatprep.subr.mxu0 0.0
        %2989 = vmatpush1.msra.mxu0 %v2956
        %2990 = vmatprep.subr.mxu0 0.0
        %2991 = vmatpush1.msra.mxu0 0.0
        %2992 = vmatprep.subr.mxu0 0.0
        %2993 = vmatpush1.msra.mxu0 0.0
        %2994 = vmatprep.subr.mxu0 0.0
        %2995 = vmatpush1.msra.mxu0 0.0
        %2996 = vmatprep.subr.mxu0 0.0
        %2997 = vmatpush1.msra.mxu0 0.0
        %2998 = vmatprep.subr.mxu0 0.0
        %2999 = vmatpush1.msra.mxu0 0.0
        %3000 = vmatprep.subr.mxu0 0.0
        %3001 = vmatpush1.msra.mxu0 0.0
        %3002 = vmatprep.subr.mxu0 0.0
        %3003 = vmatpush1.msra.mxu0 0.0
        %3004 = vmatprep.subr.mxu0 0.0
        %3005 = vmatpush1.msra.mxu0 0.0
        %3006 = vmatprep.subr.mxu0 0.0
        %3007 = vmatpush1.msra.mxu0 0.0
        %3008 = vmatprep.subr.mxu0 0.0
        %3009 = vmatpush1.msra.mxu0 0.0
        %3010 = vmatprep.subr.mxu0 0.0
        %3011 = vmatpush1.msra.mxu0 0.0
        %3012 = vmatprep.subr.mxu0 0.0
        %3013 = vmatpush1.msra.mxu0 0.0
        %3014 = vmatprep.subr.mxu0 0.0
        %3015 = vmatpush1.msra.mxu0 0.0
        %3016 = vmatprep.subr.mxu0 0.0
        %3017 = vmatpush1.msra.mxu0 0.0
        %3018 = vmatprep.subr.mxu0 0.0
        %3019 = vmatpush1.msra.mxu0 0.0
        %3020 = vmatprep.subr.mxu0 0.0
        %3021 = vmatpush1.msra.mxu0 0.0
        %3022 = vmatprep.mubr.f32.mxu0 0.0
        %3023 = vmatmul.mubr.f32.gmra.mrb[0].mxu0 %v2940
        %v3024 = vpop.f32.mrb[0].mxu0
        %v3025 = vadd.f32 %v2957, %v3024
        %v3026 = vpop.f32.mrb[0].mxu0
        %3027 = vdwg.mxu0
        %v3028 = vmax.f32 %v3025, 0.0
        %v3029 = vld [vmem:[%s7] sm:$0xff]
        %v3030 = vld [vmem:[%s7 + $0x8] sm:$0xff]
        %v3031 = vld [vmem:[%s7 + $0x10] sm:$0xff]
        %v3032 = vld [vmem:[%s7 + $0x18] sm:$0xff]
        %v3033 = vld [vmem:[%s7 + $0x20] sm:$0xff]
        %v3034 = vld [vmem:[%s7 + $0x28] sm:$0xff]
        %v3035 = vld [vmem:[%s7 + $0x30] sm:$0xff]
        %v3036 = vld [vmem:[%s7 + $0x38] sm:$0xff]
        %v3037 = vld [vmem:[%s7 + $0x40] sm:$0xff]
        %v3038 = vld [vmem:[%s7 + $0x48] sm:$0xff]
        %v3039 = vld [vmem:[%s7 + $0x50] sm:$0xff]
        %v3040 = vld [vmem:[%s7 + $0x58] sm:$0xff]
        %v3041 = vld [vmem:[%s7 + $0x60] sm:$0xff]
        %v3042 = vld [vmem:[%s7 + $0x68] sm:$0xff]
        %v3043 = vld [vmem:[%s7 + $0x70] sm:$0xff]
        %v3044 = vld [vmem:[%s8] sm:$0x1]
        %vm3045 = vcmask 982016
        %v3047 = vsel %vm3045, %v3028, 0
        %3049 = vmatprep.subr.mxu0 0.0
        %3050 = vmatpush1.msra.mxu0 %v3029
        %3051 = vmatprep.subr.mxu0 0.0
        %3052 = vmatpush1.msra.mxu0 %v3030
        %3053 = vmatprep.subr.mxu0 0.0
        %3054 = vmatpush1.msra.mxu0 %v3031
        %3055 = vmatprep.subr.mxu0 0.0
        %3056 = vmatpush1.msra.mxu0 %v3032
        %3057 = vmatprep.subr.mxu0 0.0
        %3058 = vmatpush1.msra.mxu0 %v3033
        %3059 = vmatprep.subr.mxu0 0.0
        %3060 = vmatpush1.msra.mxu0 %v3034
        %3061 = vmatprep.subr.mxu0 0.0
        %3062 = vmatpush1.msra.mxu0 %v3035
        %3063 = vmatprep.subr.mxu0 0.0
        %3064 = vmatpush1.msra.mxu0 %v3036
        %3065 = vmatprep.subr.mxu0 0.0
        %3066 = vmatpush1.msra.mxu0 %v3037
        %3067 = vmatprep.subr.mxu0 0.0
        %3068 = vmatpush1.msra.mxu0 %v3038
        %3069 = vmatprep.subr.mxu0 0.0
        %3070 = vmatpush1.msra.mxu0 %v3039
        %3071 = vmatprep.subr.mxu0 0.0
        %3072 = vmatpush1.msra.mxu0 %v3040
        %3073 = vmatprep.subr.mxu0 0.0
        %3074 = vmatpush1.msra.mxu0 %v3041
        %3075 = vmatprep.subr.mxu0 0.0
        %3076 = vmatpush1.msra.mxu0 %v3042
        %3077 = vmatprep.subr.mxu0 0.0
        %3078 = vmatpush1.msra.mxu0 %v3043
        %3079 = vmatprep.subr.mxu0 0.0
        %3080 = vmatpush1.msra.mxu0 0.0
        %3081 = vmatprep.subr.mxu0 0.0
        %3082 = vmatpush1.msra.mxu0 0.0
        %3083 = vmatprep.subr.mxu0 0.0
        %3084 = vmatpush1.msra.mxu0 0.0
        %3085 = vmatprep.subr.mxu0 0.0
        %3086 = vmatpush1.msra.mxu0 0.0
        %3087 = vmatprep.subr.mxu0 0.0
        %3088 = vmatpush1.msra.mxu0 0.0
        %3089 = vmatprep.subr.mxu0 0.0
        %3090 = vmatpush1.msra.mxu0 0.0
        %3091 = vmatprep.subr.mxu0 0.0
        %3092 = vmatpush1.msra.mxu0 0.0
        %3093 = vmatprep.subr.mxu0 0.0
        %3094 = vmatpush1.msra.mxu0 0.0
        %3095 = vmatprep.subr.mxu0 0.0
        %3096 = vmatpush1.msra.mxu0 0.0
        %3097 = vmatprep.subr.mxu0 0.0
        %3098 = vmatpush1.msra.mxu0 0.0
        %3099 = vmatprep.subr.mxu0 0.0
        %3100 = vmatpush1.msra.mxu0 0.0
        %3101 = vmatprep.subr.mxu0 0.0
        %3102 = vmatpush1.msra.mxu0 0.0
        %3103 = vmatprep.subr.mxu0 0.0
        %3104 = vmatpush1.msra.mxu0 0.0
        %3105 = vmatprep.subr.mxu0 0.0
        %3106 = vmatpush1.msra.mxu0 0.0
        %3107 = vmatprep.subr.mxu0 0.0
        %3108 = vmatpush1.msra.mxu0 0.0
        %3109 = vmatprep.subr.mxu0 0.0
        %3110 = vmatpush1.msra.mxu0 0.0
        %3111 = vmatprep.subr.mxu0 0.0
        %3112 = vmatpush1.msra.mxu0 0.0
        %3113 = vmatprep.mubr.f32.mxu0 0.0
        %3114 = vmatmul.mubr.f32.gmra.mrb[0].mxu0 %v3047
        %v3115 = vpop.f32.mrb[0].mxu0
        %v3116 = vadd.f32 %v3044, %v3115
        %v3117 = vpop.f32.mrb[0].mxu0
        %3118 = vdwg.mxu0
        %v3119 = vmax.f32 %v3116, 0.0
        %v3120 = vld [vmem:[%s9] sm:$0xff]
        %v3121 = vld [vmem:[%s9 + $0x8] sm:$0xff]
        %v3122 = vld [vmem:[%s9 + $0x10] sm:$0xff]
        %v3123 = vld [vmem:[%s9 + $0x18] sm:$0xff]
        %v3124 = vld [vmem:[%s9 + $0x20] sm:$0xff]
        %v3125 = vld [vmem:[%s9 + $0x28] sm:$0xff]
        %v3126 = vld [vmem:[%s9 + $0x30] sm:$0xff]
        %v3127 = vld [vmem:[%s9 + $0x38] sm:$0xff]
        %v3128 = vld [vmem:[%s9 + $0x40] sm:$0xff]
        %v3129 = vld [vmem:[%s9 + $0x48] sm:$0xff]
        %v3130 = vld [vmem:[%s9 + $0x50] sm:$0xf]
        %v3131 = vld [vmem:[%s10] sm:$0x1]
        %vm3132 = vcmask 687104
        %v3134 = vsel %vm3132, %v3119, 0
        %v3137 = vsel %vm2718, %v3130, 0
        %3139 = vmatprep.subr.mxu0 0.0
        %3140 = vmatpush1.msra.mxu0 %v3120
        %3141 = vmatprep.subr.mxu0 0.0
        %3142 = vmatpush1.msra.mxu0 %v3121
        %3143 = vmatprep.subr.mxu0 0.0
        %3144 = vmatpush1.msra.mxu0 %v3122
        %3145 = vmatprep.subr.mxu0 0.0
        %3146 = vmatpush1.msra.mxu0 %v3123
        %3147 = vmatprep.subr.mxu0 0.0
        %3148 = vmatpush1.msra.mxu0 %v3124
        %3149 = vmatprep.subr.mxu0 0.0
        %3150 = vmatpush1.msra.mxu0 %v3125
        %3151 = vmatprep.subr.mxu0 0.0
        %3152 = vmatpush1.msra.mxu0 %v3126
        %3153 = vmatprep.subr.mxu0 0.0
        %3154 = vmatpush1.msra.mxu0 %v3127
        %3155 = vmatprep.subr.mxu0 0.0
        %3156 = vmatpush1.msra.mxu0 %v3128
        %3157 = vmatprep.subr.mxu0 0.0
        %3158 = vmatpush1.msra.mxu0 %v3129
        %3159 = vmatprep.subr.mxu0 0.0
        %3160 = vmatpush1.msra.mxu0 %v3137
        %3161 = vmatprep.subr.mxu0 0.0
        %3162 = vmatpush1.msra.mxu0 0.0
        %3163 = vmatprep.subr.mxu0 0.0
        %3164 = vmatpush1.msra.mxu0 0.0
        %3165 = vmatprep.subr.mxu0 0.0
        %3166 = vmatpush1.msra.mxu0 0.0
        %3167 = vmatprep.subr.mxu0 0.0
        %3168 = vmatpush1.msra.mxu0 0.0
        %3169 = vmatprep.subr.mxu0 0.0
        %3170 = vmatpush1.msra.mxu0 0.0
        %3171 = vmatprep.subr.mxu0 0.0
        %3172 = vmatpush1.msra.mxu0 0.0
        %3173 = vmatprep.subr.mxu0 0.0
        %3174 = vmatpush1.msra.mxu0 0.0
        %3175 = vmatprep.subr.mxu0 0.0
        %3176 = vmatpush1.msra.mxu0 0.0
        %3177 = vmatprep.subr.mxu0 0.0
        %3178 = vmatpush1.msra.mxu0 0.0
        %3179 = vmatprep.subr.mxu0 0.0
        %3180 = vmatpush1.msra.mxu0 0.0
        %3181 = vmatprep.subr.mxu0 0.0
        %3182 = vmatpush1.msra.mxu0 0.0
        %3183 = vmatprep.subr.mxu0 0.0
        %3184 = vmatpush1.msra.mxu0 0.0
        %3185 = vmatprep.subr.mxu0 0.0
        %3186 = vmatpush1.msra.mxu0 0.0
        %3187 = vmatprep.subr.mxu0 0.0
        %3188 = vmatpush1.msra.mxu0 0.0
        %3189 = vmatprep.subr.mxu0 0.0
        %3190 = vmatpush1.msra.mxu0 0.0
        %3191 = vmatprep.subr.mxu0 0.0
        %3192 = vmatpush1.msra.mxu0 0.0
        %3193 = vmatprep.subr.mxu0 0.0
        %3194 = vmatpush1.msra.mxu0 0.0
        %3195 = vmatprep.subr.mxu0 0.0
        %3196 = vmatpush1.msra.mxu0 0.0
        %3197 = vmatprep.subr.mxu0 0.0
        %3198 = vmatpush1.msra.mxu0 0.0
        %3199 = vmatprep.subr.mxu0 0.0
        %3200 = vmatpush1.msra.mxu0 0.0
        %3201 = vmatprep.subr.mxu0 0.0
        %3202 = vmatpush1.msra.mxu0 0.0
        %3203 = vmatprep.mubr.f32.mxu0 0.0
        %3204 = vmatmul.mubr.f32.gmra.mrb[0].mxu0 %v3134
        %v3205 = vpop.f32.mrb[0].mxu0
        %v3206 = vadd.f32 %v3131, %v3205
        %v3207 = vpop.f32.mrb[0].mxu0
        %3208 = vdwg.mxu0
        %vm3209 = vcmask 73728
        %3210 = vst.msk [vmem:[%s379] sm:$0x1] %vm3209, %v3206
        %s3211 = sand.u32 %s269, 1
        %s3212 = scalar_lea.sflag [#allocation6], %s3211
        %s3213 = sand.u32 %s269, 1
        %s3214 = scalar_lea.vmem [#allocation5], %s3213
        // Predicated region
        $region65: #{lenet_forward.1} parent=63 // pred_check
          %p3215 = pneg %p279
        $region66: #{lenet_forward.1} parent=63 // pred_check_branch
          %3217 = sbr.rel (%p3215) target = $region68
        $region67: #{lenet_forward.1} parent=63 // pred_region
          %s3219 = ssub.s32 16, 16
          %3220 = vsyncadd %s3212, %s3219
          %s3221 = smul.addr %s25, 16
          %s3222 = scalar_lea.hbm %s11, %s3221
          %s3224 = sshll.u32 %s3214, 4
          %s3225 = int_to_ptr.vmem [resolvable:$true] %s3224
          %3227 = dma.vmem_to_hbm [thread:$0]  %s3225, 16, %s3222, %s3212
        $region68: #{lenet_forward.1} parent=63 // pred_fallthru
          _
      $region64: #{lenet_forward.1} parent=5 // pred_fallthru
        _
      %p3228 = scmp.le.s32.totalorder 2, %s20
      // Predicated region
      $region69: #{lenet_forward.1} parent=5 // pred_check
        %p3229 = pneg %p3228
      $region70: #{lenet_forward.1} parent=5 // pred_check_branch
        %3231 = sbr.rel (%p3229) target = $region72
      $region71: #{lenet_forward.1} parent=5 // pred_region
        %s3232 = ssub.s32 %s20, 2
        // Predicated region
        $region73: #{lenet_forward.1} parent=71 // pred_check
          %p3233 = pneg %p285
        $region74: #{lenet_forward.1} parent=71 // pred_check_branch
          %3235 = sbr.rel (%p3233) target = $region76
        $region75: #{lenet_forward.1} parent=71 // pred_region
          %s3236 = sand.u32 %s270, 1
          %s3237 = scalar_lea.sflag [#allocation6], %s3236
          %s3238 = sand.u32 %s270, 1
          %s3239 = scalar_lea.vmem [#allocation5], %s3238
          %3240 = dma.done %s3237, 16
        $region76: #{lenet_forward.1} parent=71 // pred_fallthru
          _
      $region72: #{lenet_forward.1} parent=5 // pred_fallthru
        _
    $region6: #{lenet_forward.1} parent=1 // loop_footer
      %s24 = sadd.s32 1, %s20
    $region7: #{lenet_forward.1} parent=1 // loop_footer_branch
      %19 = sbr.rel target = $region3
    $region8: #{lenet_forward.1} parent=1 // loop_exit
      _
    %3241 = vsyncpa [#allocation6], 1
    %s3242 = scalar_lea.sflag [#allocation6], 1
    %3243 = vsyncpa %s3242, 1

</llo_original>
